<compile_context>
chip_gen: v5e
topology: v5e:2x2
jax: 0.10.0
libtpu: 0.0.40
codegen_flags: <defaults>
</compile_context>

<pallas_src>
import jax
import jax.numpy as jnp
from jax import lax
from jax.experimental import pallas as pl
from jax.experimental.pallas import tpu as pltpu

HIDDEN = 50            # nn.LSTM hidden_size
INPUT = 1              # nn.LSTM input_size
HPAD = 128             # hidden padded to one 128-lane block
GPAD = 128             # lanes per gate block
NGATES = 4
GCOLS = NGATES * GPAD  # 512 packed gate columns, order (i, f, o, g)
SIG_COLS = 3 * GPAD    # sigmoid gates (i, f, o) occupy the first 384 lanes


def lstm_kernel(x_ref, wih0_ref, b0_ref, whh0_ref, w1a_ref, w1b_ref, b1_ref,
                fcw_ref, fcb_ref, out_ref, xc_ref):
    """Fused 2-layer LSTM recurrence + final Linear, fully resident in VMEM.

    x_ref   : (T, BP, 1)      time-major input, batch padded to BP=8 sublanes
    wih0    : (1, 1, 512)     layer-0 input weights, packed gates (i,f,o,g)
    b0      : (1, 1, 512)     layer-0 combined bias (b_ih + b_hh), packed
    whh0    : (128, 512)      layer-0 recurrent weights, packed
    w1a     : (128, 512)      layer-1 input weights  (rows = h0_new lanes)
    w1b     : (128, 512)      layer-1 recurrent weights (rows = h1 lanes)
    b1      : (1, 512)        layer-1 combined bias, packed
    fcw     : (128, 128)      final linear weight (only column 0 non-zero)
    fcb     : (1, 128)        final linear bias   (only column 0 non-zero)
    out_ref : (BP, 128)       lane-dense output slab (column 0 is the result)
    xc_ref  : (T, BP, 512)    VMEM scratch: hoisted layer-0 input term
    """
    T, BP, _ = x_ref.shape

    # Hoist the layer-0 input contribution + biases out of the serial loop:
    # one wide broadcast multiply-add covering all T timesteps.
    xc_ref[...] = x_ref[...] * wih0_ref[...] + b0_ref[...]          # (T, BP, 512)

    def gates(pre, c_prev=None):
        # pre: (BP, 512) packed pre-activations in gate order (i, f, o, g).
        s = jax.nn.sigmoid(pre[:, :SIG_COLS])      # i | f | o   (one wide EUP pass)
        g = jnp.tanh(pre[:, SIG_COLS:])            # g           (one EUP pass)
        i_g = s[:, 0:GPAD]
        f_g = s[:, GPAD:2 * GPAD]
        o_g = s[:, 2 * GPAD:3 * GPAD]
        # c_prev is None only for the peeled t=0 step (all state is zero).
        c_new = i_g * g if c_prev is None else f_g * c_prev + i_g * g
        h_new = o_g * jnp.tanh(c_new)
        return h_new, c_new

    # ---- peeled t = 0: h, c are all zero, so recurrent matmuls vanish. ----
    h0, c0 = gates(xc_ref[0])
    pre1_0 = (jnp.dot(h0, w1a_ref[...], preferred_element_type=jnp.float32)
              + b1_ref[...])
    h1, c1 = gates(pre1_0)

    # ---- remaining steps: 2 matmuls (layer 0) + 2 matmuls (layer 1). ----
    def step(t, carry):
        h0, c0, h1, c1 = carry
        # Layer-1 recurrent term depends only on the PREVIOUS h1: issue it
        # up front so it overlaps with layer-0's matmul + gate chain.
        rec1 = jnp.dot(h1, w1b_ref[...], preferred_element_type=jnp.float32)
        # Layer 0: single fused MXU matmul for all 4 gates.
        pre0 = xc_ref[t] + jnp.dot(h0, whh0_ref[...],
                                   preferred_element_type=jnp.float32)
        h0n, c0n = gates(pre0, c0)
        # Layer 1: input-term matmul on the freshly computed h0_new.
        pre1 = (jnp.dot(h0n, w1a_ref[...], preferred_element_type=jnp.float32)
                + rec1 + b1_ref[...])
        h1n, c1n = gates(pre1, c1)
        return h0n, c0n, h1n, c1n

    _, _, h1_last, _ = lax.fori_loop(1, T, step, (h0, c0, h1, c1),
                                     unroll=True)   # T is small & static

    # Final Linear as a lane-dense (BP, 128) slab; wrapper slices column 0.
    out_ref[...] = (jnp.dot(h1_last, fcw_ref[...],
                            preferred_element_type=jnp.float32)
                    + fcb_ref[...])


def init_params(key, H=HIDDEN):
    """Deterministic synthetic parameters, PyTorch-style U(-1/sqrt(H), 1/sqrt(H)).

    Stored in the natural (PyTorch-like) layout; the kernel layout is produced
    by pack_params()."""
    bound = 1.0 / (H ** 0.5)
    keys = jax.random.split(key, 12)

    def u(k, shape):
        return jax.random.uniform(k, shape, jnp.float32, -bound, bound)

    # gate order on the leading axis: i, f, g, o (PyTorch order)
    wih0 = u(keys[0], (4, INPUT, H))
    whh0 = u(keys[1], (4, H, H))
    b0 = u(keys[2], (4, 1, H)) + u(keys[3], (4, 1, H))      # b_ih + b_hh
    wih1 = u(keys[4], (4, H, H))
    whh1 = u(keys[5], (4, H, H))
    b1 = u(keys[6], (4, 1, H)) + u(keys[7], (4, 1, H))
    fcw = jax.random.uniform(keys[8], (H, 1), jnp.float32, -bound, bound)
    fcb = jax.random.uniform(keys[9], (1, 1), jnp.float32, -bound, bound)
    return dict(wih0=wih0, whh0=whh0, b0=b0,
                wih1=wih1, whh1=whh1, b1=b1,
                fcw=fcw, fcb=fcb)


def pack_params(p, H=HIDDEN):
    """One-time re-layout (outside the kernel): pack gates into lane-aligned
    128-wide blocks, reorder (i,f,g,o) -> (i,f,o,g), keep layer-1's W_ih / W_hh
    as two separate matrices, and zero-pad the hidden dim to 128."""
    order = (0, 1, 3, 2)   # PyTorch (i, f, g, o) -> packed (i, f, o, g)
    wih0 = jnp.zeros((1, 1, GCOLS), jnp.float32)
    b0 = jnp.zeros((1, 1, GCOLS), jnp.float32)
    whh0 = jnp.zeros((HPAD, GCOLS), jnp.float32)
    w1a = jnp.zeros((HPAD, GCOLS), jnp.float32)
    w1b = jnp.zeros((HPAD, GCOLS), jnp.float32)
    b1 = jnp.zeros((1, GCOLS), jnp.float32)
    for k, g in enumerate(order):
        c = k * GPAD
        wih0 = wih0.at[0, 0, c:c + H].set(p["wih0"][g, 0, :])
        b0 = b0.at[0, 0, c:c + H].set(p["b0"][g, 0, :])
        whh0 = whh0.at[:H, c:c + H].set(p["whh0"][g])
        w1a = w1a.at[:H, c:c + H].set(p["wih1"][g])    # rows multiply h0_new
        w1b = w1b.at[:H, c:c + H].set(p["whh1"][g])    # rows multiply h1
        b1 = b1.at[0, c:c + H].set(p["b1"][g, 0, :])
    fcw = jnp.zeros((HPAD, GPAD), jnp.float32).at[:H, 0].set(p["fcw"][:, 0])
    fcb = jnp.zeros((1, GPAD), jnp.float32).at[0, 0].set(p["fcb"][0, 0])
    return dict(wih0=wih0, b0=b0, whh0=whh0, w1a=w1a, w1b=w1b, b1=b1,
                fcw=fcw, fcb=fcb)


def lstm_forward(x, packed):
    """x: (B, T, 1) batch-first, like nn.LSTM(batch_first=True). Returns (B, 1)."""
    B, T, _ = x.shape
    BP = ((B + 7) // 8) * 8                                   # pad batch to sublanes
    x_tm = jnp.transpose(x, (1, 0, 2)).astype(jnp.float32)    # (T, B, 1) time-major
    x_tm = jnp.pad(x_tm, ((0, 0), (0, BP - B), (0, 0)))       # (T, BP, 1)

    args = (x_tm, packed["wih0"], packed["b0"], packed["whh0"],
            packed["w1a"], packed["w1b"], packed["b1"],
            packed["fcw"], packed["fcb"])

    in_specs = [pl.BlockSpec(a.shape, lambda i, n=a.ndim: (0,) * n) for a in args]
    out_spec = pl.BlockSpec((BP, GPAD), lambda i: (0, 0))

    out = pl.pallas_call(
        lstm_kernel,
        out_shape=jax.ShapeDtypeStruct((BP, GPAD), jnp.float32),
        grid=(1,),
        in_specs=in_specs,
        out_specs=out_spec,
        scratch_shapes=[pltpu.VMEM((T, BP, GCOLS), jnp.float32)],
        compiler_params=pltpu.CompilerParams(dimension_semantics=("arbitrary",)),
    )(*args)
    return out[:B, :1]


def lstm_ref(x, p):
    """Pure-JAX reference in the original (unpacked) layout, for correctness."""
    B, T, _ = x.shape
    H = HIDDEN
    h0 = c0 = h1 = c1 = jnp.zeros((B, H), jnp.float32)
    for t in range(T):
        xt = x[:, t, :]
        g0 = [xt @ p["wih0"][i] + h0 @ p["whh0"][i] + p["b0"][i] for i in range(4)]
        i0, f0 = jax.nn.sigmoid(g0[0]), jax.nn.sigmoid(g0[1])
        gg0, o0 = jnp.tanh(g0[2]), jax.nn.sigmoid(g0[3])
        c0 = f0 * c0 + i0 * gg0
        h0 = o0 * jnp.tanh(c0)
        g1 = [h0 @ p["wih1"][i] + h1 @ p["whh1"][i] + p["b1"][i] for i in range(4)]
        i1, f1 = jax.nn.sigmoid(g1[0]), jax.nn.sigmoid(g1[1])
        gg1, o1 = jnp.tanh(g1[2]), jax.nn.sigmoid(g1[3])
        c1 = f1 * c1 + i1 * gg1
        h1 = o1 * jnp.tanh(c1)
    return h1 @ p["fcw"] + p["fcb"]


if __name__ == "__main__":
    key = jax.random.PRNGKey(0)
    k_param, k_x = jax.random.split(key)

    B, T = 2, 8                      # batch=2, seq=8, input feature=1
    x = jax.random.normal(k_x, (B, T, INPUT), jnp.float32)

    params = init_params(k_param)
    packed = pack_params(params)

    out = lstm_forward(x, packed)
    out = jax.block_until_ready(out)

    ref = lstm_ref(x, params)
    if not jnp.allclose(out, ref, atol=1e-4, rtol=1e-4):
        raise AssertionError(f"Pallas output mismatch:\n{out}\nvs\n{ref}")

    print("KERNEL_OK")
</pallas_src>

<mosaic_0001>
module attributes {stable_mosaic.version = 11 : i64} {
  func.func @lstm_kernel(%arg0: i32, %arg1: memref<8x8x1xf32, #tpu.memory_space<vmem>>, %arg2: memref<1x1x512xf32, #tpu.memory_space<vmem>>, %arg3: memref<1x1x512xf32, #tpu.memory_space<vmem>>, %arg4: memref<128x512xf32, #tpu.memory_space<vmem>>, %arg5: memref<128x512xf32, #tpu.memory_space<vmem>>, %arg6: memref<128x512xf32, #tpu.memory_space<vmem>>, %arg7: memref<1x512xf32, #tpu.memory_space<vmem>>, %arg8: memref<128x128xf32, #tpu.memory_space<vmem>>, %arg9: memref<1x128xf32, #tpu.memory_space<vmem>>, %arg10: memref<8x128xf32, #tpu.memory_space<vmem>>, %arg11: memref<8x8x512xf32, #tpu.memory_space<vmem>>) attributes {dimension_semantics = [#tpu.dimension_semantics<arbitrary>], iteration_bounds = array<i64: 1>, scalar_prefetch = 0 : i64, scratch_operands = 1 : i64, tpu.core_type = #tpu.core_type<tc>, window_params = [{pipeline_mode = #tpu.pipeline_mode<synchronous>, transform_indices = @transform_0, window_bounds = array<i64: 8, 8, 1>}, {pipeline_mode = #tpu.pipeline_mode<synchronous>, transform_indices = @transform_1, window_bounds = array<i64: 1, 1, 512>}, {pipeline_mode = #tpu.pipeline_mode<synchronous>, transform_indices = @transform_2, window_bounds = array<i64: 1, 1, 512>}, {pipeline_mode = #tpu.pipeline_mode<synchronous>, transform_indices = @transform_3, window_bounds = array<i64: 128, 512>}, {pipeline_mode = #tpu.pipeline_mode<synchronous>, transform_indices = @transform_4, window_bounds = array<i64: 128, 512>}, {pipeline_mode = #tpu.pipeline_mode<synchronous>, transform_indices = @transform_5, window_bounds = array<i64: 128, 512>}, {pipeline_mode = #tpu.pipeline_mode<synchronous>, transform_indices = @transform_6, window_bounds = array<i64: 1, 512>}, {pipeline_mode = #tpu.pipeline_mode<synchronous>, transform_indices = @transform_7, window_bounds = array<i64: 128, 128>}, {pipeline_mode = #tpu.pipeline_mode<synchronous>, transform_indices = @transform_8, window_bounds = array<i64: 1, 128>}, {pipeline_mode = #tpu.pipeline_mode<synchronous>, transform_indices = @transform_9, window_bounds = array<i64: 8, 128>}]} {
    %c0 = arith.constant 0 : index
    %c0_0 = arith.constant 0 : index
    %c0_1 = arith.constant 0 : index
    %0 = vector.load %arg1[%c0, %c0_0, %c0_1] : memref<8x8x1xf32, #tpu.memory_space<vmem>>, vector<8x8x1xf32>
    %c0_2 = arith.constant 0 : index
    %c0_3 = arith.constant 0 : index
    %c0_4 = arith.constant 0 : index
    %1 = vector.load %arg2[%c0_2, %c0_3, %c0_4] : memref<1x1x512xf32, #tpu.memory_space<vmem>>, vector<1x1x512xf32>
    %2 = vector.broadcast %0 : vector<8x8x1xf32> to vector<8x8x512xf32>
    %3 = vector.broadcast %1 : vector<1x1x512xf32> to vector<8x8x512xf32>
    %4 = arith.mulf %2, %3 : vector<8x8x512xf32>
    %c0_5 = arith.constant 0 : index
    %c0_6 = arith.constant 0 : index
    %c0_7 = arith.constant 0 : index
    %5 = vector.load %arg3[%c0_5, %c0_6, %c0_7] : memref<1x1x512xf32, #tpu.memory_space<vmem>>, vector<1x1x512xf32>
    %6 = vector.broadcast %5 : vector<1x1x512xf32> to vector<8x8x512xf32>
    %7 = arith.addf %4, %6 : vector<8x8x512xf32>
    %c0_8 = arith.constant 0 : index
    %c0_9 = arith.constant 0 : index
    %c0_10 = arith.constant 0 : index
    %8 = vector.load %arg11[%c0_8, %c0_9, %c0_10] : memref<8x8x512xf32, #tpu.memory_space<vmem>>, vector<8x8x512xf32>
    tpu.vector_store %arg11[%c0_8, %c0_9, %c0_10], %7 {strides = array<i32>} : memref<8x8x512xf32, #tpu.memory_space<vmem>>, vector<8x8x512xf32>,
    %c0_11 = arith.constant 0 : index
    %c0_12 = arith.constant 0 : index
    %c0_13 = arith.constant 0 : index
    %9 = vector.load %arg11[%c0_11, %c0_12, %c0_13] : memref<8x8x512xf32, #tpu.memory_space<vmem>>, vector<1x8x512xf32>
    %10 = vector.shape_cast %9 : vector<1x8x512xf32> to vector<8x512xf32>
    %11 = vector.extract_strided_slice %10 {offsets = [0, 0], sizes = [8, 384], strides = [1, 1]} : vector<8x512xf32> to vector<8x384xf32>
    %12 = arith.negf %11 : vector<8x384xf32>
    %13 = math.exp %12 : vector<8x384xf32>
    %cst = arith.constant 1.000000e+00 : f32
    %14 = vector.broadcast %cst : f32 to vector<8x384xf32>
    %15 = arith.addf %14, %13 : vector<8x384xf32>
    %16 = arith.divf %14, %15 : vector<8x384xf32>
    %17 = vector.extract_strided_slice %10 {offsets = [0, 384], sizes = [8, 128], strides = [1, 1]} : vector<8x512xf32> to vector<8x128xf32>
    %18 = math.tanh %17 : vector<8x128xf32>
    %19 = vector.extract_strided_slice %16 {offsets = [0, 0], sizes = [8, 128], strides = [1, 1]} : vector<8x384xf32> to vector<8x128xf32>
    %20 = vector.extract_strided_slice %16 {offsets = [0, 256], sizes = [8, 128], strides = [1, 1]} : vector<8x384xf32> to vector<8x128xf32>
    %21 = arith.mulf %19, %18 : vector<8x128xf32>
    %22 = math.tanh %21 : vector<8x128xf32>
    %23 = arith.mulf %20, %22 : vector<8x128xf32>
    %c0_14 = arith.constant 0 : index
    %c0_15 = arith.constant 0 : index
    %24 = vector.load %arg5[%c0_14, %c0_15] : memref<128x512xf32, #tpu.memory_space<vmem>>, vector<128x512xf32>
    %cst_16 = arith.constant dense<0.000000e+00> : vector<8x512xf32>
    %25 = tpu.matmul %23, %24, %cst_16 {dimension_numbers = #tpu.dot_dimension_numbers<[1], [0], [0], [1], [0, 0, 1, 1], [], []>} : vector<8x128xf32>, vector<128x512xf32>, vector<8x512xf32> -> vector<8x512xf32>
    %c0_17 = arith.constant 0 : index
    %c0_18 = arith.constant 0 : index
    %26 = vector.load %arg7[%c0_17, %c0_18] : memref<1x512xf32, #tpu.memory_space<vmem>>, vector<1x512xf32>
    %27 = vector.broadcast %26 : vector<1x512xf32> to vector<8x512xf32>
    %28 = arith.addf %25, %27 : vector<8x512xf32>
    %29 = vector.extract_strided_slice %28 {offsets = [0, 0], sizes = [8, 384], strides = [1, 1]} : vector<8x512xf32> to vector<8x384xf32>
    %30 = arith.negf %29 : vector<8x384xf32>
    %31 = math.exp %30 : vector<8x384xf32>
    %cst_19 = arith.constant 1.000000e+00 : f32
    %32 = vector.broadcast %cst_19 : f32 to vector<8x384xf32>
    %33 = arith.addf %32, %31 : vector<8x384xf32>
    %34 = arith.divf %32, %33 : vector<8x384xf32>
    %35 = vector.extract_strided_slice %28 {offsets = [0, 384], sizes = [8, 128], strides = [1, 1]} : vector<8x512xf32> to vector<8x128xf32>
    %36 = math.tanh %35 : vector<8x128xf32>
    %37 = vector.extract_strided_slice %34 {offsets = [0, 0], sizes = [8, 128], strides = [1, 1]} : vector<8x384xf32> to vector<8x128xf32>
    %38 = vector.extract_strided_slice %34 {offsets = [0, 256], sizes = [8, 128], strides = [1, 1]} : vector<8x384xf32> to vector<8x128xf32>
    %39 = arith.mulf %37, %36 : vector<8x128xf32>
    %40 = math.tanh %39 : vector<8x128xf32>
    %41 = arith.mulf %38, %40 : vector<8x128xf32>
    %c1_i32 = arith.constant 1 : i32
    %c0_20 = arith.constant 0 : index
    %c0_21 = arith.constant 0 : index
    %42 = vector.load %arg6[%c0_20, %c0_21] : memref<128x512xf32, #tpu.memory_space<vmem>>, vector<128x512xf32>
    %cst_22 = arith.constant dense<0.000000e+00> : vector<8x512xf32>
    %43 = tpu.matmul %41, %42, %cst_22 {dimension_numbers = #tpu.dot_dimension_numbers<[1], [0], [0], [1], [0, 0, 1, 1], [], []>} : vector<8x128xf32>, vector<128x512xf32>, vector<8x512xf32> -> vector<8x512xf32>
    %44 = arith.index_cast %c1_i32 : i32 to index
    %c0_23 = arith.constant 0 : index
    %c0_24 = arith.constant 0 : index
    %45 = vector.load %arg11[%44, %c0_23, %c0_24] : memref<8x8x512xf32, #tpu.memory_space<vmem>>, vector<1x8x512xf32>
    %46 = vector.shape_cast %45 : vector<1x8x512xf32> to vector<8x512xf32>
    %c0_25 = arith.constant 0 : index
    %c0_26 = arith.constant 0 : index
    %47 = vector.load %arg4[%c0_25, %c0_26] : memref<128x512xf32, #tpu.memory_space<vmem>>, vector<128x512xf32>
    %cst_27 = arith.constant dense<0.000000e+00> : vector<8x512xf32>
    %48 = tpu.matmul %23, %47, %cst_27 {dimension_numbers = #tpu.dot_dimension_numbers<[1], [0], [0], [1], [0, 0, 1, 1], [], []>} : vector<8x128xf32>, vector<128x512xf32>, vector<8x512xf32> -> vector<8x512xf32>
    %49 = arith.addf %46, %48 : vector<8x512xf32>
    %50 = vector.extract_strided_slice %49 {offsets = [0, 0], sizes = [8, 384], strides = [1, 1]} : vector<8x512xf32> to vector<8x384xf32>
    %51 = arith.negf %50 : vector<8x384xf32>
    %52 = math.exp %51 : vector<8x384xf32>
    %cst_28 = arith.constant 1.000000e+00 : f32
    %53 = vector.broadcast %cst_28 : f32 to vector<8x384xf32>
    %54 = arith.addf %53, %52 : vector<8x384xf32>
    %55 = arith.divf %53, %54 : vector<8x384xf32>
    %56 = vector.extract_strided_slice %49 {offsets = [0, 384], sizes = [8, 128], strides = [1, 1]} : vector<8x512xf32> to vector<8x128xf32>
    %57 = math.tanh %56 : vector<8x128xf32>
    %58 = vector.extract_strided_slice %55 {offsets = [0, 0], sizes = [8, 128], strides = [1, 1]} : vector<8x384xf32> to vector<8x128xf32>
    %59 = vector.extract_strided_slice %55 {offsets = [0, 128], sizes = [8, 128], strides = [1, 1]} : vector<8x384xf32> to vector<8x128xf32>
    %60 = vector.extract_strided_slice %55 {offsets = [0, 256], sizes = [8, 128], strides = [1, 1]} : vector<8x384xf32> to vector<8x128xf32>
    %61 = arith.mulf %59, %21 : vector<8x128xf32>
    %62 = arith.mulf %58, %57 : vector<8x128xf32>
    %63 = arith.addf %61, %62 : vector<8x128xf32>
    %64 = math.tanh %63 : vector<8x128xf32>
    %65 = arith.mulf %60, %64 : vector<8x128xf32>
    %c0_29 = arith.constant 0 : index
    %c0_30 = arith.constant 0 : index
    %66 = vector.load %arg5[%c0_29, %c0_30] : memref<128x512xf32, #tpu.memory_space<vmem>>, vector<128x512xf32>
    %cst_31 = arith.constant dense<0.000000e+00> : vector<8x512xf32>
    %67 = tpu.matmul %65, %66, %cst_31 {dimension_numbers = #tpu.dot_dimension_numbers<[1], [0], [0], [1], [0, 0, 1, 1], [], []>} : vector<8x128xf32>, vector<128x512xf32>, vector<8x512xf32> -> vector<8x512xf32>
    %68 = arith.addf %67, %43 : vector<8x512xf32>
    %c0_32 = arith.constant 0 : index
    %c0_33 = arith.constant 0 : index
    %69 = vector.load %arg7[%c0_32, %c0_33] : memref<1x512xf32, #tpu.memory_space<vmem>>, vector<1x512xf32>
    %70 = vector.broadcast %69 : vector<1x512xf32> to vector<8x512xf32>
    %71 = arith.addf %68, %70 : vector<8x512xf32>
    %72 = vector.extract_strided_slice %71 {offsets = [0, 0], sizes = [8, 384], strides = [1, 1]} : vector<8x512xf32> to vector<8x384xf32>
    %73 = arith.negf %72 : vector<8x384xf32>
    %74 = math.exp %73 : vector<8x384xf32>
    %cst_34 = arith.constant 1.000000e+00 : f32
    %75 = vector.broadcast %cst_34 : f32 to vector<8x384xf32>
    %76 = arith.addf %75, %74 : vector<8x384xf32>
    %77 = arith.divf %75, %76 : vector<8x384xf32>
    %78 = vector.extract_strided_slice %71 {offsets = [0, 384], sizes = [8, 128], strides = [1, 1]} : vector<8x512xf32> to vector<8x128xf32>
    %79 = math.tanh %78 : vector<8x128xf32>
    %80 = vector.extract_strided_slice %77 {offsets = [0, 0], sizes = [8, 128], strides = [1, 1]} : vector<8x384xf32> to vector<8x128xf32>
    %81 = vector.extract_strided_slice %77 {offsets = [0, 128], sizes = [8, 128], strides = [1, 1]} : vector<8x384xf32> to vector<8x128xf32>
    %82 = vector.extract_strided_slice %77 {offsets = [0, 256], sizes = [8, 128], strides = [1, 1]} : vector<8x384xf32> to vector<8x128xf32>
    %83 = arith.mulf %81, %39 : vector<8x128xf32>
    %84 = arith.mulf %80, %79 : vector<8x128xf32>
    %85 = arith.addf %83, %84 : vector<8x128xf32>
    %86 = math.tanh %85 : vector<8x128xf32>
    %87 = arith.mulf %82, %86 : vector<8x128xf32>
    %c2_i32 = arith.constant 2 : i32
    %c0_35 = arith.constant 0 : index
    %c0_36 = arith.constant 0 : index
    %88 = vector.load %arg6[%c0_35, %c0_36] : memref<128x512xf32, #tpu.memory_space<vmem>>, vector<128x512xf32>
    %cst_37 = arith.constant dense<0.000000e+00> : vector<8x512xf32>
    %89 = tpu.matmul %87, %88, %cst_37 {dimension_numbers = #tpu.dot_dimension_numbers<[1], [0], [0], [1], [0, 0, 1, 1], [], []>} : vector<8x128xf32>, vector<128x512xf32>, vector<8x512xf32> -> vector<8x512xf32>
    %90 = arith.index_cast %c2_i32 : i32 to index
    %c0_38 = arith.constant 0 : index
    %c0_39 = arith.constant 0 : index
    %91 = vector.load %arg11[%90, %c0_38, %c0_39] : memref<8x8x512xf32, #tpu.memory_space<vmem>>, vector<1x8x512xf32>
    %92 = vector.shape_cast %91 : vector<1x8x512xf32> to vector<8x512xf32>
    %c0_40 = arith.constant 0 : index
    %c0_41 = arith.constant 0 : index
    %93 = vector.load %arg4[%c0_40, %c0_41] : memref<128x512xf32, #tpu.memory_space<vmem>>, vector<128x512xf32>
    %cst_42 = arith.constant dense<0.000000e+00> : vector<8x512xf32>
    %94 = tpu.matmul %65, %93, %cst_42 {dimension_numbers = #tpu.dot_dimension_numbers<[1], [0], [0], [1], [0, 0, 1, 1], [], []>} : vector<8x128xf32>, vector<128x512xf32>, vector<8x512xf32> -> vector<8x512xf32>
    %95 = arith.addf %92, %94 : vector<8x512xf32>
    %96 = vector.extract_strided_slice %95 {offsets = [0, 0], sizes = [8, 384], strides = [1, 1]} : vector<8x512xf32> to vector<8x384xf32>
    %97 = arith.negf %96 : vector<8x384xf32>
    %98 = math.exp %97 : vector<8x384xf32>
    %cst_43 = arith.constant 1.000000e+00 : f32
    %99 = vector.broadcast %cst_43 : f32 to vector<8x384xf32>
    %100 = arith.addf %99, %98 : vector<8x384xf32>
    %101 = arith.divf %99, %100 : vector<8x384xf32>
    %102 = vector.extract_strided_slice %95 {offsets = [0, 384], sizes = [8, 128], strides = [1, 1]} : vector<8x512xf32> to vector<8x128xf32>
    %103 = math.tanh %102 : vector<8x128xf32>
    %104 = vector.extract_strided_slice %101 {offsets = [0, 0], sizes = [8, 128], strides = [1, 1]} : vector<8x384xf32> to vector<8x128xf32>
    %105 = vector.extract_strided_slice %101 {offsets = [0, 128], sizes = [8, 128], strides = [1, 1]} : vector<8x384xf32> to vector<8x128xf32>
    %106 = vector.extract_strided_slice %101 {offsets = [0, 256], sizes = [8, 128], strides = [1, 1]} : vector<8x384xf32> to vector<8x128xf32>
    %107 = arith.mulf %105, %63 : vector<8x128xf32>
    %108 = arith.mulf %104, %103 : vector<8x128xf32>
    %109 = arith.addf %107, %108 : vector<8x128xf32>
    %110 = math.tanh %109 : vector<8x128xf32>
    %111 = arith.mulf %106, %110 : vector<8x128xf32>
    %c0_44 = arith.constant 0 : index
    %c0_45 = arith.constant 0 : index
    %112 = vector.load %arg5[%c0_44, %c0_45] : memref<128x512xf32, #tpu.memory_space<vmem>>, vector<128x512xf32>
    %cst_46 = arith.constant dense<0.000000e+00> : vector<8x512xf32>
    %113 = tpu.matmul %111, %112, %cst_46 {dimension_numbers = #tpu.dot_dimension_numbers<[1], [0], [0], [1], [0, 0, 1, 1], [], []>} : vector<8x128xf32>, vector<128x512xf32>, vector<8x512xf32> -> vector<8x512xf32>
    %114 = arith.addf %113, %89 : vector<8x512xf32>
    %c0_47 = arith.constant 0 : index
    %c0_48 = arith.constant 0 : index
    %115 = vector.load %arg7[%c0_47, %c0_48] : memref<1x512xf32, #tpu.memory_space<vmem>>, vector<1x512xf32>
    %116 = vector.broadcast %115 : vector<1x512xf32> to vector<8x512xf32>
    %117 = arith.addf %114, %116 : vector<8x512xf32>
    %118 = vector.extract_strided_slice %117 {offsets = [0, 0], sizes = [8, 384], strides = [1, 1]} : vector<8x512xf32> to vector<8x384xf32>
    %119 = arith.negf %118 : vector<8x384xf32>
    %120 = math.exp %119 : vector<8x384xf32>
    %cst_49 = arith.constant 1.000000e+00 : f32
    %121 = vector.broadcast %cst_49 : f32 to vector<8x384xf32>
    %122 = arith.addf %121, %120 : vector<8x384xf32>
    %123 = arith.divf %121, %122 : vector<8x384xf32>
    %124 = vector.extract_strided_slice %117 {offsets = [0, 384], sizes = [8, 128], strides = [1, 1]} : vector<8x512xf32> to vector<8x128xf32>
    %125 = math.tanh %124 : vector<8x128xf32>
    %126 = vector.extract_strided_slice %123 {offsets = [0, 0], sizes = [8, 128], strides = [1, 1]} : vector<8x384xf32> to vector<8x128xf32>
    %127 = vector.extract_strided_slice %123 {offsets = [0, 128], sizes = [8, 128], strides = [1, 1]} : vector<8x384xf32> to vector<8x128xf32>
    %128 = vector.extract_strided_slice %123 {offsets = [0, 256], sizes = [8, 128], strides = [1, 1]} : vector<8x384xf32> to vector<8x128xf32>
    %129 = arith.mulf %127, %85 : vector<8x128xf32>
    %130 = arith.mulf %126, %125 : vector<8x128xf32>
    %131 = arith.addf %129, %130 : vector<8x128xf32>
    %132 = math.tanh %131 : vector<8x128xf32>
    %133 = arith.mulf %128, %132 : vector<8x128xf32>
    %c3_i32 = arith.constant 3 : i32
    %c0_50 = arith.constant 0 : index
    %c0_51 = arith.constant 0 : index
    %134 = vector.load %arg6[%c0_50, %c0_51] : memref<128x512xf32, #tpu.memory_space<vmem>>, vector<128x512xf32>
    %cst_52 = arith.constant dense<0.000000e+00> : vector<8x512xf32>
    %135 = tpu.matmul %133, %134, %cst_52 {dimension_numbers = #tpu.dot_dimension_numbers<[1], [0], [0], [1], [0, 0, 1, 1], [], []>} : vector<8x128xf32>, vector<128x512xf32>, vector<8x512xf32> -> vector<8x512xf32>
    %136 = arith.index_cast %c3_i32 : i32 to index
    %c0_53 = arith.constant 0 : index
    %c0_54 = arith.constant 0 : index
    %137 = vector.load %arg11[%136, %c0_53, %c0_54] : memref<8x8x512xf32, #tpu.memory_space<vmem>>, vector<1x8x512xf32>
    %138 = vector.shape_cast %137 : vector<1x8x512xf32> to vector<8x512xf32>
    %c0_55 = arith.constant 0 : index
    %c0_56 = arith.constant 0 : index
    %139 = vector.load %arg4[%c0_55, %c0_56] : memref<128x512xf32, #tpu.memory_space<vmem>>, vector<128x512xf32>
    %cst_57 = arith.constant dense<0.000000e+00> : vector<8x512xf32>
    %140 = tpu.matmul %111, %139, %cst_57 {dimension_numbers = #tpu.dot_dimension_numbers<[1], [0], [0], [1], [0, 0, 1, 1], [], []>} : vector<8x128xf32>, vector<128x512xf32>, vector<8x512xf32> -> vector<8x512xf32>
    %141 = arith.addf %138, %140 : vector<8x512xf32>
    %142 = vector.extract_strided_slice %141 {offsets = [0, 0], sizes = [8, 384], strides = [1, 1]} : vector<8x512xf32> to vector<8x384xf32>
    %143 = arith.negf %142 : vector<8x384xf32>
    %144 = math.exp %143 : vector<8x384xf32>
    %cst_58 = arith.constant 1.000000e+00 : f32
    %145 = vector.broadcast %cst_58 : f32 to vector<8x384xf32>
    %146 = arith.addf %145, %144 : vector<8x384xf32>
    %147 = arith.divf %145, %146 : vector<8x384xf32>
    %148 = vector.extract_strided_slice %141 {offsets = [0, 384], sizes = [8, 128], strides = [1, 1]} : vector<8x512xf32> to vector<8x128xf32>
    %149 = math.tanh %148 : vector<8x128xf32>
    %150 = vector.extract_strided_slice %147 {offsets = [0, 0], sizes = [8, 128], strides = [1, 1]} : vector<8x384xf32> to vector<8x128xf32>
    %151 = vector.extract_strided_slice %147 {offsets = [0, 128], sizes = [8, 128], strides = [1, 1]} : vector<8x384xf32> to vector<8x128xf32>
    %152 = vector.extract_strided_slice %147 {offsets = [0, 256], sizes = [8, 128], strides = [1, 1]} : vector<8x384xf32> to vector<8x128xf32>
    %153 = arith.mulf %151, %109 : vector<8x128xf32>
    %154 = arith.mulf %150, %149 : vector<8x128xf32>
    %155 = arith.addf %153, %154 : vector<8x128xf32>
    %156 = math.tanh %155 : vector<8x128xf32>
    %157 = arith.mulf %152, %156 : vector<8x128xf32>
    %c0_59 = arith.constant 0 : index
    %c0_60 = arith.constant 0 : index
    %158 = vector.load %arg5[%c0_59, %c0_60] : memref<128x512xf32, #tpu.memory_space<vmem>>, vector<128x512xf32>
    %cst_61 = arith.constant dense<0.000000e+00> : vector<8x512xf32>
    %159 = tpu.matmul %157, %158, %cst_61 {dimension_numbers = #tpu.dot_dimension_numbers<[1], [0], [0], [1], [0, 0, 1, 1], [], []>} : vector<8x128xf32>, vector<128x512xf32>, vector<8x512xf32> -> vector<8x512xf32>
    %160 = arith.addf %159, %135 : vector<8x512xf32>
    %c0_62 = arith.constant 0 : index
    %c0_63 = arith.constant 0 : index
    %161 = vector.load %arg7[%c0_62, %c0_63] : memref<1x512xf32, #tpu.memory_space<vmem>>, vector<1x512xf32>
    %162 = vector.broadcast %161 : vector<1x512xf32> to vector<8x512xf32>
    %163 = arith.addf %160, %162 : vector<8x512xf32>
    %164 = vector.extract_strided_slice %163 {offsets = [0, 0], sizes = [8, 384], strides = [1, 1]} : vector<8x512xf32> to vector<8x384xf32>
    %165 = arith.negf %164 : vector<8x384xf32>
    %166 = math.exp %165 : vector<8x384xf32>
    %cst_64 = arith.constant 1.000000e+00 : f32
    %167 = vector.broadcast %cst_64 : f32 to vector<8x384xf32>
    %168 = arith.addf %167, %166 : vector<8x384xf32>
    %169 = arith.divf %167, %168 : vector<8x384xf32>
    %170 = vector.extract_strided_slice %163 {offsets = [0, 384], sizes = [8, 128], strides = [1, 1]} : vector<8x512xf32> to vector<8x128xf32>
    %171 = math.tanh %170 : vector<8x128xf32>
    %172 = vector.extract_strided_slice %169 {offsets = [0, 0], sizes = [8, 128], strides = [1, 1]} : vector<8x384xf32> to vector<8x128xf32>
    %173 = vector.extract_strided_slice %169 {offsets = [0, 128], sizes = [8, 128], strides = [1, 1]} : vector<8x384xf32> to vector<8x128xf32>
    %174 = vector.extract_strided_slice %169 {offsets = [0, 256], sizes = [8, 128], strides = [1, 1]} : vector<8x384xf32> to vector<8x128xf32>
    %175 = arith.mulf %173, %131 : vector<8x128xf32>
    %176 = arith.mulf %172, %171 : vector<8x128xf32>
    %177 = arith.addf %175, %176 : vector<8x128xf32>
    %178 = math.tanh %177 : vector<8x128xf32>
    %179 = arith.mulf %174, %178 : vector<8x128xf32>
    %c4_i32 = arith.constant 4 : i32
    %c0_65 = arith.constant 0 : index
    %c0_66 = arith.constant 0 : index
    %180 = vector.load %arg6[%c0_65, %c0_66] : memref<128x512xf32, #tpu.memory_space<vmem>>, vector<128x512xf32>
    %cst_67 = arith.constant dense<0.000000e+00> : vector<8x512xf32>
    %181 = tpu.matmul %179, %180, %cst_67 {dimension_numbers = #tpu.dot_dimension_numbers<[1], [0], [0], [1], [0, 0, 1, 1], [], []>} : vector<8x128xf32>, vector<128x512xf32>, vector<8x512xf32> -> vector<8x512xf32>
    %182 = arith.index_cast %c4_i32 : i32 to index
    %c0_68 = arith.constant 0 : index
    %c0_69 = arith.constant 0 : index
    %183 = vector.load %arg11[%182, %c0_68, %c0_69] : memref<8x8x512xf32, #tpu.memory_space<vmem>>, vector<1x8x512xf32>
    %184 = vector.shape_cast %183 : vector<1x8x512xf32> to vector<8x512xf32>
    %c0_70 = arith.constant 0 : index
    %c0_71 = arith.constant 0 : index
    %185 = vector.load %arg4[%c0_70, %c0_71] : memref<128x512xf32, #tpu.memory_space<vmem>>, vector<128x512xf32>
    %cst_72 = arith.constant dense<0.000000e+00> : vector<8x512xf32>
    %186 = tpu.matmul %157, %185, %cst_72 {dimension_numbers = #tpu.dot_dimension_numbers<[1], [0], [0], [1], [0, 0, 1, 1], [], []>} : vector<8x128xf32>, vector<128x512xf32>, vector<8x512xf32> -> vector<8x512xf32>
    %187 = arith.addf %184, %186 : vector<8x512xf32>
    %188 = vector.extract_strided_slice %187 {offsets = [0, 0], sizes = [8, 384], strides = [1, 1]} : vector<8x512xf32> to vector<8x384xf32>
    %189 = arith.negf %188 : vector<8x384xf32>
    %190 = math.exp %189 : vector<8x384xf32>
    %cst_73 = arith.constant 1.000000e+00 : f32
    %191 = vector.broadcast %cst_73 : f32 to vector<8x384xf32>
    %192 = arith.addf %191, %190 : vector<8x384xf32>
    %193 = arith.divf %191, %192 : vector<8x384xf32>
    %194 = vector.extract_strided_slice %187 {offsets = [0, 384], sizes = [8, 128], strides = [1, 1]} : vector<8x512xf32> to vector<8x128xf32>
    %195 = math.tanh %194 : vector<8x128xf32>
    %196 = vector.extract_strided_slice %193 {offsets = [0, 0], sizes = [8, 128], strides = [1, 1]} : vector<8x384xf32> to vector<8x128xf32>
    %197 = vector.extract_strided_slice %193 {offsets = [0, 128], sizes = [8, 128], strides = [1, 1]} : vector<8x384xf32> to vector<8x128xf32>
    %198 = vector.extract_strided_slice %193 {offsets = [0, 256], sizes = [8, 128], strides = [1, 1]} : vector<8x384xf32> to vector<8x128xf32>
    %199 = arith.mulf %197, %155 : vector<8x128xf32>
    %200 = arith.mulf %196, %195 : vector<8x128xf32>
    %201 = arith.addf %199, %200 : vector<8x128xf32>
    %202 = math.tanh %201 : vector<8x128xf32>
    %203 = arith.mulf %198, %202 : vector<8x128xf32>
    %c0_74 = arith.constant 0 : index
    %c0_75 = arith.constant 0 : index
    %204 = vector.load %arg5[%c0_74, %c0_75] : memref<128x512xf32, #tpu.memory_space<vmem>>, vector<128x512xf32>
    %cst_76 = arith.constant dense<0.000000e+00> : vector<8x512xf32>
    %205 = tpu.matmul %203, %204, %cst_76 {dimension_numbers = #tpu.dot_dimension_numbers<[1], [0], [0], [1], [0, 0, 1, 1], [], []>} : vector<8x128xf32>, vector<128x512xf32>, vector<8x512xf32> -> vector<8x512xf32>
    %206 = arith.addf %205, %181 : vector<8x512xf32>
    %c0_77 = arith.constant 0 : index
    %c0_78 = arith.constant 0 : index
    %207 = vector.load %arg7[%c0_77, %c0_78] : memref<1x512xf32, #tpu.memory_space<vmem>>, vector<1x512xf32>
    %208 = vector.broadcast %207 : vector<1x512xf32> to vector<8x512xf32>
    %209 = arith.addf %206, %208 : vector<8x512xf32>
    %210 = vector.extract_strided_slice %209 {offsets = [0, 0], sizes = [8, 384], strides = [1, 1]} : vector<8x512xf32> to vector<8x384xf32>
    %211 = arith.negf %210 : vector<8x384xf32>
    %212 = math.exp %211 : vector<8x384xf32>
    %cst_79 = arith.constant 1.000000e+00 : f32
    %213 = vector.broadcast %cst_79 : f32 to vector<8x384xf32>
    %214 = arith.addf %213, %212 : vector<8x384xf32>
    %215 = arith.divf %213, %214 : vector<8x384xf32>
    %216 = vector.extract_strided_slice %209 {offsets = [0, 384], sizes = [8, 128], strides = [1, 1]} : vector<8x512xf32> to vector<8x128xf32>
    %217 = math.tanh %216 : vector<8x128xf32>
    %218 = vector.extract_strided_slice %215 {offsets = [0, 0], sizes = [8, 128], strides = [1, 1]} : vector<8x384xf32> to vector<8x128xf32>
    %219 = vector.extract_strided_slice %215 {offsets = [0, 128], sizes = [8, 128], strides = [1, 1]} : vector<8x384xf32> to vector<8x128xf32>
    %220 = vector.extract_strided_slice %215 {offsets = [0, 256], sizes = [8, 128], strides = [1, 1]} : vector<8x384xf32> to vector<8x128xf32>
    %221 = arith.mulf %219, %177 : vector<8x128xf32>
    %222 = arith.mulf %218, %217 : vector<8x128xf32>
    %223 = arith.addf %221, %222 : vector<8x128xf32>
    %224 = math.tanh %223 : vector<8x128xf32>
    %225 = arith.mulf %220, %224 : vector<8x128xf32>
    %c5_i32 = arith.constant 5 : i32
    %c0_80 = arith.constant 0 : index
    %c0_81 = arith.constant 0 : index
    %226 = vector.load %arg6[%c0_80, %c0_81] : memref<128x512xf32, #tpu.memory_space<vmem>>, vector<128x512xf32>
    %cst_82 = arith.constant dense<0.000000e+00> : vector<8x512xf32>
    %227 = tpu.matmul %225, %226, %cst_82 {dimension_numbers = #tpu.dot_dimension_numbers<[1], [0], [0], [1], [0, 0, 1, 1], [], []>} : vector<8x128xf32>, vector<128x512xf32>, vector<8x512xf32> -> vector<8x512xf32>
    %228 = arith.index_cast %c5_i32 : i32 to index
    %c0_83 = arith.constant 0 : index
    %c0_84 = arith.constant 0 : index
    %229 = vector.load %arg11[%228, %c0_83, %c0_84] : memref<8x8x512xf32, #tpu.memory_space<vmem>>, vector<1x8x512xf32>
    %230 = vector.shape_cast %229 : vector<1x8x512xf32> to vector<8x512xf32>
    %c0_85 = arith.constant 0 : index
    %c0_86 = arith.constant 0 : index
    %231 = vector.load %arg4[%c0_85, %c0_86] : memref<128x512xf32, #tpu.memory_space<vmem>>, vector<128x512xf32>
    %cst_87 = arith.constant dense<0.000000e+00> : vector<8x512xf32>
    %232 = tpu.matmul %203, %231, %cst_87 {dimension_numbers = #tpu.dot_dimension_numbers<[1], [0], [0], [1], [0, 0, 1, 1], [], []>} : vector<8x128xf32>, vector<128x512xf32>, vector<8x512xf32> -> vector<8x512xf32>
    %233 = arith.addf %230, %232 : vector<8x512xf32>
    %234 = vector.extract_strided_slice %233 {offsets = [0, 0], sizes = [8, 384], strides = [1, 1]} : vector<8x512xf32> to vector<8x384xf32>
    %235 = arith.negf %234 : vector<8x384xf32>
    %236 = math.exp %235 : vector<8x384xf32>
    %cst_88 = arith.constant 1.000000e+00 : f32
    %237 = vector.broadcast %cst_88 : f32 to vector<8x384xf32>
    %238 = arith.addf %237, %236 : vector<8x384xf32>
    %239 = arith.divf %237, %238 : vector<8x384xf32>
    %240 = vector.extract_strided_slice %233 {offsets = [0, 384], sizes = [8, 128], strides = [1, 1]} : vector<8x512xf32> to vector<8x128xf32>
    %241 = math.tanh %240 : vector<8x128xf32>
    %242 = vector.extract_strided_slice %239 {offsets = [0, 0], sizes = [8, 128], strides = [1, 1]} : vector<8x384xf32> to vector<8x128xf32>
    %243 = vector.extract_strided_slice %239 {offsets = [0, 128], sizes = [8, 128], strides = [1, 1]} : vector<8x384xf32> to vector<8x128xf32>
    %244 = vector.extract_strided_slice %239 {offsets = [0, 256], sizes = [8, 128], strides = [1, 1]} : vector<8x384xf32> to vector<8x128xf32>
    %245 = arith.mulf %243, %201 : vector<8x128xf32>
    %246 = arith.mulf %242, %241 : vector<8x128xf32>
    %247 = arith.addf %245, %246 : vector<8x128xf32>
    %248 = math.tanh %247 : vector<8x128xf32>
    %249 = arith.mulf %244, %248 : vector<8x128xf32>
    %c0_89 = arith.constant 0 : index
    %c0_90 = arith.constant 0 : index
    %250 = vector.load %arg5[%c0_89, %c0_90] : memref<128x512xf32, #tpu.memory_space<vmem>>, vector<128x512xf32>
    %cst_91 = arith.constant dense<0.000000e+00> : vector<8x512xf32>
    %251 = tpu.matmul %249, %250, %cst_91 {dimension_numbers = #tpu.dot_dimension_numbers<[1], [0], [0], [1], [0, 0, 1, 1], [], []>} : vector<8x128xf32>, vector<128x512xf32>, vector<8x512xf32> -> vector<8x512xf32>
    %252 = arith.addf %251, %227 : vector<8x512xf32>
    %c0_92 = arith.constant 0 : index
    %c0_93 = arith.constant 0 : index
    %253 = vector.load %arg7[%c0_92, %c0_93] : memref<1x512xf32, #tpu.memory_space<vmem>>, vector<1x512xf32>
    %254 = vector.broadcast %253 : vector<1x512xf32> to vector<8x512xf32>
    %255 = arith.addf %252, %254 : vector<8x512xf32>
    %256 = vector.extract_strided_slice %255 {offsets = [0, 0], sizes = [8, 384], strides = [1, 1]} : vector<8x512xf32> to vector<8x384xf32>
    %257 = arith.negf %256 : vector<8x384xf32>
    %258 = math.exp %257 : vector<8x384xf32>
    %cst_94 = arith.constant 1.000000e+00 : f32
    %259 = vector.broadcast %cst_94 : f32 to vector<8x384xf32>
    %260 = arith.addf %259, %258 : vector<8x384xf32>
    %261 = arith.divf %259, %260 : vector<8x384xf32>
    %262 = vector.extract_strided_slice %255 {offsets = [0, 384], sizes = [8, 128], strides = [1, 1]} : vector<8x512xf32> to vector<8x128xf32>
    %263 = math.tanh %262 : vector<8x128xf32>
    %264 = vector.extract_strided_slice %261 {offsets = [0, 0], sizes = [8, 128], strides = [1, 1]} : vector<8x384xf32> to vector<8x128xf32>
    %265 = vector.extract_strided_slice %261 {offsets = [0, 128], sizes = [8, 128], strides = [1, 1]} : vector<8x384xf32> to vector<8x128xf32>
    %266 = vector.extract_strided_slice %261 {offsets = [0, 256], sizes = [8, 128], strides = [1, 1]} : vector<8x384xf32> to vector<8x128xf32>
    %267 = arith.mulf %265, %223 : vector<8x128xf32>
    %268 = arith.mulf %264, %263 : vector<8x128xf32>
    %269 = arith.addf %267, %268 : vector<8x128xf32>
    %270 = math.tanh %269 : vector<8x128xf32>
    %271 = arith.mulf %266, %270 : vector<8x128xf32>
    %c6_i32 = arith.constant 6 : i32
    %c0_95 = arith.constant 0 : index
    %c0_96 = arith.constant 0 : index
    %272 = vector.load %arg6[%c0_95, %c0_96] : memref<128x512xf32, #tpu.memory_space<vmem>>, vector<128x512xf32>
    %cst_97 = arith.constant dense<0.000000e+00> : vector<8x512xf32>
    %273 = tpu.matmul %271, %272, %cst_97 {dimension_numbers = #tpu.dot_dimension_numbers<[1], [0], [0], [1], [0, 0, 1, 1], [], []>} : vector<8x128xf32>, vector<128x512xf32>, vector<8x512xf32> -> vector<8x512xf32>
    %274 = arith.index_cast %c6_i32 : i32 to index
    %c0_98 = arith.constant 0 : index
    %c0_99 = arith.constant 0 : index
    %275 = vector.load %arg11[%274, %c0_98, %c0_99] : memref<8x8x512xf32, #tpu.memory_space<vmem>>, vector<1x8x512xf32>
    %276 = vector.shape_cast %275 : vector<1x8x512xf32> to vector<8x512xf32>
    %c0_100 = arith.constant 0 : index
    %c0_101 = arith.constant 0 : index
    %277 = vector.load %arg4[%c0_100, %c0_101] : memref<128x512xf32, #tpu.memory_space<vmem>>, vector<128x512xf32>
    %cst_102 = arith.constant dense<0.000000e+00> : vector<8x512xf32>
    %278 = tpu.matmul %249, %277, %cst_102 {dimension_numbers = #tpu.dot_dimension_numbers<[1], [0], [0], [1], [0, 0, 1, 1], [], []>} : vector<8x128xf32>, vector<128x512xf32>, vector<8x512xf32> -> vector<8x512xf32>
    %279 = arith.addf %276, %278 : vector<8x512xf32>
    %280 = vector.extract_strided_slice %279 {offsets = [0, 0], sizes = [8, 384], strides = [1, 1]} : vector<8x512xf32> to vector<8x384xf32>
    %281 = arith.negf %280 : vector<8x384xf32>
    %282 = math.exp %281 : vector<8x384xf32>
    %cst_103 = arith.constant 1.000000e+00 : f32
    %283 = vector.broadcast %cst_103 : f32 to vector<8x384xf32>
    %284 = arith.addf %283, %282 : vector<8x384xf32>
    %285 = arith.divf %283, %284 : vector<8x384xf32>
    %286 = vector.extract_strided_slice %279 {offsets = [0, 384], sizes = [8, 128], strides = [1, 1]} : vector<8x512xf32> to vector<8x128xf32>
    %287 = math.tanh %286 : vector<8x128xf32>
    %288 = vector.extract_strided_slice %285 {offsets = [0, 0], sizes = [8, 128], strides = [1, 1]} : vector<8x384xf32> to vector<8x128xf32>
    %289 = vector.extract_strided_slice %285 {offsets = [0, 128], sizes = [8, 128], strides = [1, 1]} : vector<8x384xf32> to vector<8x128xf32>
    %290 = vector.extract_strided_slice %285 {offsets = [0, 256], sizes = [8, 128], strides = [1, 1]} : vector<8x384xf32> to vector<8x128xf32>
    %291 = arith.mulf %289, %247 : vector<8x128xf32>
    %292 = arith.mulf %288, %287 : vector<8x128xf32>
    %293 = arith.addf %291, %292 : vector<8x128xf32>
    %294 = math.tanh %293 : vector<8x128xf32>
    %295 = arith.mulf %290, %294 : vector<8x128xf32>
    %c0_104 = arith.constant 0 : index
    %c0_105 = arith.constant 0 : index
    %296 = vector.load %arg5[%c0_104, %c0_105] : memref<128x512xf32, #tpu.memory_space<vmem>>, vector<128x512xf32>
    %cst_106 = arith.constant dense<0.000000e+00> : vector<8x512xf32>
    %297 = tpu.matmul %295, %296, %cst_106 {dimension_numbers = #tpu.dot_dimension_numbers<[1], [0], [0], [1], [0, 0, 1, 1], [], []>} : vector<8x128xf32>, vector<128x512xf32>, vector<8x512xf32> -> vector<8x512xf32>
    %298 = arith.addf %297, %273 : vector<8x512xf32>
    %c0_107 = arith.constant 0 : index
    %c0_108 = arith.constant 0 : index
    %299 = vector.load %arg7[%c0_107, %c0_108] : memref<1x512xf32, #tpu.memory_space<vmem>>, vector<1x512xf32>
    %300 = vector.broadcast %299 : vector<1x512xf32> to vector<8x512xf32>
    %301 = arith.addf %298, %300 : vector<8x512xf32>
    %302 = vector.extract_strided_slice %301 {offsets = [0, 0], sizes = [8, 384], strides = [1, 1]} : vector<8x512xf32> to vector<8x384xf32>
    %303 = arith.negf %302 : vector<8x384xf32>
    %304 = math.exp %303 : vector<8x384xf32>
    %cst_109 = arith.constant 1.000000e+00 : f32
    %305 = vector.broadcast %cst_109 : f32 to vector<8x384xf32>
    %306 = arith.addf %305, %304 : vector<8x384xf32>
    %307 = arith.divf %305, %306 : vector<8x384xf32>
    %308 = vector.extract_strided_slice %301 {offsets = [0, 384], sizes = [8, 128], strides = [1, 1]} : vector<8x512xf32> to vector<8x128xf32>
    %309 = math.tanh %308 : vector<8x128xf32>
    %310 = vector.extract_strided_slice %307 {offsets = [0, 0], sizes = [8, 128], strides = [1, 1]} : vector<8x384xf32> to vector<8x128xf32>
    %311 = vector.extract_strided_slice %307 {offsets = [0, 128], sizes = [8, 128], strides = [1, 1]} : vector<8x384xf32> to vector<8x128xf32>
    %312 = vector.extract_strided_slice %307 {offsets = [0, 256], sizes = [8, 128], strides = [1, 1]} : vector<8x384xf32> to vector<8x128xf32>
    %313 = arith.mulf %311, %269 : vector<8x128xf32>
    %314 = arith.mulf %310, %309 : vector<8x128xf32>
    %315 = arith.addf %313, %314 : vector<8x128xf32>
    %316 = math.tanh %315 : vector<8x128xf32>
    %317 = arith.mulf %312, %316 : vector<8x128xf32>
    %c7_i32 = arith.constant 7 : i32
    %c0_110 = arith.constant 0 : index
    %c0_111 = arith.constant 0 : index
    %318 = vector.load %arg6[%c0_110, %c0_111] : memref<128x512xf32, #tpu.memory_space<vmem>>, vector<128x512xf32>
    %cst_112 = arith.constant dense<0.000000e+00> : vector<8x512xf32>
    %319 = tpu.matmul %317, %318, %cst_112 {dimension_numbers = #tpu.dot_dimension_numbers<[1], [0], [0], [1], [0, 0, 1, 1], [], []>} : vector<8x128xf32>, vector<128x512xf32>, vector<8x512xf32> -> vector<8x512xf32>
    %320 = arith.index_cast %c7_i32 : i32 to index
    %c0_113 = arith.constant 0 : index
    %c0_114 = arith.constant 0 : index
    %321 = vector.load %arg11[%320, %c0_113, %c0_114] : memref<8x8x512xf32, #tpu.memory_space<vmem>>, vector<1x8x512xf32>
    %322 = vector.shape_cast %321 : vector<1x8x512xf32> to vector<8x512xf32>
    %c0_115 = arith.constant 0 : index
    %c0_116 = arith.constant 0 : index
    %323 = vector.load %arg4[%c0_115, %c0_116] : memref<128x512xf32, #tpu.memory_space<vmem>>, vector<128x512xf32>
    %cst_117 = arith.constant dense<0.000000e+00> : vector<8x512xf32>
    %324 = tpu.matmul %295, %323, %cst_117 {dimension_numbers = #tpu.dot_dimension_numbers<[1], [0], [0], [1], [0, 0, 1, 1], [], []>} : vector<8x128xf32>, vector<128x512xf32>, vector<8x512xf32> -> vector<8x512xf32>
    %325 = arith.addf %322, %324 : vector<8x512xf32>
    %326 = vector.extract_strided_slice %325 {offsets = [0, 0], sizes = [8, 384], strides = [1, 1]} : vector<8x512xf32> to vector<8x384xf32>
    %327 = arith.negf %326 : vector<8x384xf32>
    %328 = math.exp %327 : vector<8x384xf32>
    %cst_118 = arith.constant 1.000000e+00 : f32
    %329 = vector.broadcast %cst_118 : f32 to vector<8x384xf32>
    %330 = arith.addf %329, %328 : vector<8x384xf32>
    %331 = arith.divf %329, %330 : vector<8x384xf32>
    %332 = vector.extract_strided_slice %325 {offsets = [0, 384], sizes = [8, 128], strides = [1, 1]} : vector<8x512xf32> to vector<8x128xf32>
    %333 = math.tanh %332 : vector<8x128xf32>
    %334 = vector.extract_strided_slice %331 {offsets = [0, 0], sizes = [8, 128], strides = [1, 1]} : vector<8x384xf32> to vector<8x128xf32>
    %335 = vector.extract_strided_slice %331 {offsets = [0, 128], sizes = [8, 128], strides = [1, 1]} : vector<8x384xf32> to vector<8x128xf32>
    %336 = vector.extract_strided_slice %331 {offsets = [0, 256], sizes = [8, 128], strides = [1, 1]} : vector<8x384xf32> to vector<8x128xf32>
    %337 = arith.mulf %335, %293 : vector<8x128xf32>
    %338 = arith.mulf %334, %333 : vector<8x128xf32>
    %339 = arith.addf %337, %338 : vector<8x128xf32>
    %340 = math.tanh %339 : vector<8x128xf32>
    %341 = arith.mulf %336, %340 : vector<8x128xf32>
    %c0_119 = arith.constant 0 : index
    %c0_120 = arith.constant 0 : index
    %342 = vector.load %arg5[%c0_119, %c0_120] : memref<128x512xf32, #tpu.memory_space<vmem>>, vector<128x512xf32>
    %cst_121 = arith.constant dense<0.000000e+00> : vector<8x512xf32>
    %343 = tpu.matmul %341, %342, %cst_121 {dimension_numbers = #tpu.dot_dimension_numbers<[1], [0], [0], [1], [0, 0, 1, 1], [], []>} : vector<8x128xf32>, vector<128x512xf32>, vector<8x512xf32> -> vector<8x512xf32>
    %344 = arith.addf %343, %319 : vector<8x512xf32>
    %c0_122 = arith.constant 0 : index
    %c0_123 = arith.constant 0 : index
    %345 = vector.load %arg7[%c0_122, %c0_123] : memref<1x512xf32, #tpu.memory_space<vmem>>, vector<1x512xf32>
    %346 = vector.broadcast %345 : vector<1x512xf32> to vector<8x512xf32>
    %347 = arith.addf %344, %346 : vector<8x512xf32>
    %348 = vector.extract_strided_slice %347 {offsets = [0, 0], sizes = [8, 384], strides = [1, 1]} : vector<8x512xf32> to vector<8x384xf32>
    %349 = arith.negf %348 : vector<8x384xf32>
    %350 = math.exp %349 : vector<8x384xf32>
    %cst_124 = arith.constant 1.000000e+00 : f32
    %351 = vector.broadcast %cst_124 : f32 to vector<8x384xf32>
    %352 = arith.addf %351, %350 : vector<8x384xf32>
    %353 = arith.divf %351, %352 : vector<8x384xf32>
    %354 = vector.extract_strided_slice %347 {offsets = [0, 384], sizes = [8, 128], strides = [1, 1]} : vector<8x512xf32> to vector<8x128xf32>
    %355 = math.tanh %354 : vector<8x128xf32>
    %356 = vector.extract_strided_slice %353 {offsets = [0, 0], sizes = [8, 128], strides = [1, 1]} : vector<8x384xf32> to vector<8x128xf32>
    %357 = vector.extract_strided_slice %353 {offsets = [0, 128], sizes = [8, 128], strides = [1, 1]} : vector<8x384xf32> to vector<8x128xf32>
    %358 = vector.extract_strided_slice %353 {offsets = [0, 256], sizes = [8, 128], strides = [1, 1]} : vector<8x384xf32> to vector<8x128xf32>
    %359 = arith.mulf %357, %315 : vector<8x128xf32>
    %360 = arith.mulf %356, %355 : vector<8x128xf32>
    %361 = arith.addf %359, %360 : vector<8x128xf32>
    %362 = math.tanh %361 : vector<8x128xf32>
    %363 = arith.mulf %358, %362 : vector<8x128xf32>
    %c7_i32_125 = arith.constant 7 : i32
    %c0_126 = arith.constant 0 : index
    %c0_127 = arith.constant 0 : index
    %364 = vector.load %arg8[%c0_126, %c0_127] : memref<128x128xf32, #tpu.memory_space<vmem>>, vector<128x128xf32>
    %cst_128 = arith.constant dense<0.000000e+00> : vector<8x128xf32>
    %365 = tpu.matmul %363, %364, %cst_128 {dimension_numbers = #tpu.dot_dimension_numbers<[1], [0], [0], [1], [0, 0, 1, 1], [], []>} : vector<8x128xf32>, vector<128x128xf32>, vector<8x128xf32> -> vector<8x128xf32>
    %c0_129 = arith.constant 0 : index
    %c0_130 = arith.constant 0 : index
    %366 = vector.load %arg9[%c0_129, %c0_130] : memref<1x128xf32, #tpu.memory_space<vmem>>, vector<1x128xf32>
    %367 = vector.broadcast %366 : vector<1x128xf32> to vector<8x128xf32>
    %368 = arith.addf %365, %367 : vector<8x128xf32>
    %c0_131 = arith.constant 0 : index
    %c0_132 = arith.constant 0 : index
    %369 = vector.load %arg10[%c0_131, %c0_132] : memref<8x128xf32, #tpu.memory_space<vmem>>, vector<8x128xf32>
    tpu.vector_store %arg10[%c0_131, %c0_132], %368 {strides = array<i32>} : memref<8x128xf32, #tpu.memory_space<vmem>>, vector<8x128xf32>,
    return
  }
  func.func @transform_0(%arg0: i32) -> (i32, i32, i32) {
    %c0_i32 = arith.constant 0 : i32
    %c0_i32_0 = arith.constant 0 : i32
    %c0_i32_1 = arith.constant 0 : i32
    %c0_i32_2 = arith.constant 0 : i32
    return %c0_i32, %c0_i32_0, %c0_i32_1 : i32, i32, i32
  }
  func.func @transform_1(%arg0: i32) -> (i32, i32, i32) {
    %c0_i32 = arith.constant 0 : i32
    %c0_i32_0 = arith.constant 0 : i32
    %c0_i32_1 = arith.constant 0 : i32
    %c0_i32_2 = arith.constant 0 : i32
    return %c0_i32, %c0_i32_0, %c0_i32_1 : i32, i32, i32
  }
  func.func @transform_2(%arg0: i32) -> (i32, i32, i32) {
    %c0_i32 = arith.constant 0 : i32
    %c0_i32_0 = arith.constant 0 : i32
    %c0_i32_1 = arith.constant 0 : i32
    %c0_i32_2 = arith.constant 0 : i32
    return %c0_i32, %c0_i32_0, %c0_i32_1 : i32, i32, i32
  }
  func.func @transform_3(%arg0: i32) -> (i32, i32) {
    %c0_i32 = arith.constant 0 : i32
    %c0_i32_0 = arith.constant 0 : i32
    %c0_i32_1 = arith.constant 0 : i32
    return %c0_i32, %c0_i32_0 : i32, i32
  }
  func.func @transform_4(%arg0: i32) -> (i32, i32) {
    %c0_i32 = arith.constant 0 : i32
    %c0_i32_0 = arith.constant 0 : i32
    %c0_i32_1 = arith.constant 0 : i32
    return %c0_i32, %c0_i32_0 : i32, i32
  }
  func.func @transform_5(%arg0: i32) -> (i32, i32) {
    %c0_i32 = arith.constant 0 : i32
    %c0_i32_0 = arith.constant 0 : i32
    %c0_i32_1 = arith.constant 0 : i32
    return %c0_i32, %c0_i32_0 : i32, i32
  }
  func.func @transform_6(%arg0: i32) -> (i32, i32) {
    %c0_i32 = arith.constant 0 : i32
    %c0_i32_0 = arith.constant 0 : i32
    %c0_i32_1 = arith.constant 0 : i32
    return %c0_i32, %c0_i32_0 : i32, i32
  }
  func.func @transform_7(%arg0: i32) -> (i32, i32) {
    %c0_i32 = arith.constant 0 : i32
    %c0_i32_0 = arith.constant 0 : i32
    %c0_i32_1 = arith.constant 0 : i32
    return %c0_i32, %c0_i32_0 : i32, i32
  }
  func.func @transform_8(%arg0: i32) -> (i32, i32) {
    %c0_i32 = arith.constant 0 : i32
    %c0_i32_0 = arith.constant 0 : i32
    %c0_i32_1 = arith.constant 0 : i32
    return %c0_i32, %c0_i32_0 : i32, i32
  }
  func.func @transform_9(%arg0: i32) -> (i32, i32) {
    %c0_i32 = arith.constant 0 : i32
    %c0_i32_0 = arith.constant 0 : i32
    %c0_i32_1 = arith.constant 0 : i32
    return %c0_i32, %c0_i32_0 : i32, i32
  }
}

</mosaic_0001>

<llo_original>
// kernel: tpu_custom_call.1
$region0: #{tpu_custom_call.1}
  #allocation0 [shape = 'u32[]', space=smem, size = 0x4, offset = 0x4, fixed_abs, tag = 'smem constant byte address 0x4 - core index']
  #allocation1 [shape = 'u32[72,128]{1,0:T(1,128)}', space=vmem, size = 0x9000, scoped, tag = 'internal scratch']
  #allocation2 [shape = 'f32[8,8,512]{2,1,0:T(8,128)}', space=vmem, size = 0x20000, scoped, tag = 'scratch operand']
  %s0 = inlined_call_operand.vmem [shape: f32[8,8,1], index: 0, kind: input, shape index: {}]
  %s1 = inlined_call_operand.vmem [shape: f32[1,1,512], index: 1, kind: input, shape index: {}]
  %s2 = inlined_call_operand.vmem [shape: f32[1,1,512], index: 2, kind: input, shape index: {}]
  %s3 = inlined_call_operand.hbm [shape: f32[128,512], index: 3, kind: input, shape index: {}]
  %s4 = inlined_call_operand.hbm [shape: f32[128,512], index: 4, kind: input, shape index: {}]
  %s5 = inlined_call_operand.hbm [shape: f32[128,512], index: 5, kind: input, shape index: {}]
  %s6 = inlined_call_operand.vmem [shape: f32[1,512], index: 6, kind: input, shape index: {}]
  %s7 = inlined_call_operand.hbm [shape: f32[128,128], index: 7, kind: input, shape index: {}]
  %s8 = inlined_call_operand.vmem [shape: f32[1,128], index: 8, kind: input, shape index: {}]
  %s9 = inlined_call_operand.hbm [shape: f32[8,128], index: 9, kind: output, shape index: {}]
  %s10 = sld [smem:[#allocation0]]
  $region62: #{tpu_custom_call.1} parent=0
    _
  %s12 = ssub.s32 1, %s10
  %s13 = scalar_select 0, %s12, %s10
  $region1: #{tpu_custom_call.1} parent=0
    #allocation3 [shape = 'u8[262144]{0}', space=vmem, size = 0x40000, scoped, tag = 'input window, operand 3, single buffered']
    #allocation4 [shape = 's32[1]{0}', space=sflag, size = 0x4, scoped, tag = 'scoped memory for tpu_custom_call.1']
    #allocation5 [shape = 's32[1]{0}', space=sflag, size = 0x4, scoped, tag = 'scoped memory for tpu_custom_call.1']
    #allocation6 [shape = 'u8[262144]{0}', space=vmem, size = 0x40000, scoped, tag = 'input window, operand 4, single buffered']
    #allocation7 [shape = 's32[1]{0}', space=sflag, size = 0x4, scoped, tag = 'scoped memory for tpu_custom_call.1']
    #allocation8 [shape = 'u8[262144]{0}', space=vmem, size = 0x40000, scoped, tag = 'input window, operand 5, single buffered']
    #allocation9 [shape = 'u8[65536]{0}', space=vmem, size = 0x10000, scoped, tag = 'input window, operand 7, single buffered']
    #allocation10 [shape = 's32[1]{0}', space=sflag, size = 0x4, scoped, tag = 'scoped memory for tpu_custom_call.1']
    #allocation11 [shape = 'u8[4096]{0}', space=vmem, size = 0x1000, scoped, tag = 'output window, operand 0, single buffered']
    %14 = vsyncpa [#allocation4], 0
    %15 = vsyncpa [#allocation7], 0
    %16 = vsyncpa [#allocation10], 0
    %17 = vsyncpa [#allocation5], 0
    // Predicated region
    $region2: #{tpu_custom_call.1} parent=1 // pred_check
      _
    $region3: #{tpu_custom_call.1} parent=1 // pred_check_branch
      %19 = sbr.rel (0) target = $region5
    $region4: #{tpu_custom_call.1} parent=1 // pred_region
      _
    $region5: #{tpu_custom_call.1} parent=1 // pred_fallthru
      _
    // Predicated region
    $region6: #{tpu_custom_call.1} parent=1 // pred_check
      _
    $region7: #{tpu_custom_call.1} parent=1 // pred_check_branch
      %21 = sbr.rel (0) target = $region9
    $region8: #{tpu_custom_call.1} parent=1 // pred_region
      _
    $region9: #{tpu_custom_call.1} parent=1 // pred_fallthru
      _
    // Predicated region
    $region10: #{tpu_custom_call.1} parent=1 // pred_check
      _
    $region11: #{tpu_custom_call.1} parent=1 // pred_check_branch
      %23 = sbr.rel (0) target = $region13
    $region12: #{tpu_custom_call.1} parent=1 // pred_region
      _
    $region13: #{tpu_custom_call.1} parent=1 // pred_fallthru
      _
    // Predicated region
    $region14: #{tpu_custom_call.1} parent=1 // pred_check
      _
    $region15: #{tpu_custom_call.1} parent=1 // pred_check_branch
      %25 = sbr.rel (0) target = $region17
    $region16: #{tpu_custom_call.1} parent=1 // pred_region
      %27 = vsyncadd [#allocation4], 0
      %s28 = sshll.u32 %s3, 4
      %s29 = int_to_ptr.hbm [resolvable:$true] %s28
      %s30 = sshll.u32 [#allocation3], 4
      %s31 = int_to_ptr.vmem [resolvable:$true] %s30
      %36 = dma.hbm_to_vmem [thread:$0]  %s29, 8192, %s31, [#allocation4], 512, 512, 32
    $region17: #{tpu_custom_call.1} parent=1 // pred_fallthru
      _
    // Predicated region
    $region18: #{tpu_custom_call.1} parent=1 // pred_check
      _
    $region19: #{tpu_custom_call.1} parent=1 // pred_check_branch
      %38 = sbr.rel (0) target = $region21
    $region20: #{tpu_custom_call.1} parent=1 // pred_region
      %40 = vsyncadd [#allocation7], 0
      %s41 = sshll.u32 %s4, 4
      %s42 = int_to_ptr.hbm [resolvable:$true] %s41
      %s43 = sshll.u32 [#allocation6], 4
      %s44 = int_to_ptr.vmem [resolvable:$true] %s43
      %49 = dma.hbm_to_vmem [thread:$0]  %s42, 8192, %s44, [#allocation7], 512, 512, 32
    $region21: #{tpu_custom_call.1} parent=1 // pred_fallthru
      _
    // Predicated region
    $region22: #{tpu_custom_call.1} parent=1 // pred_check
      _
    $region23: #{tpu_custom_call.1} parent=1 // pred_check_branch
      %51 = sbr.rel (0) target = $region25
    $region24: #{tpu_custom_call.1} parent=1 // pred_region
      %53 = vsyncadd [#allocation7], 0
      %s54 = sshll.u32 %s5, 4
      %s55 = int_to_ptr.hbm [resolvable:$true] %s54
      %s56 = sshll.u32 [#allocation8], 4
      %s57 = int_to_ptr.vmem [resolvable:$true] %s56
      %62 = dma.hbm_to_vmem [thread:$0]  %s55, 8192, %s57, [#allocation7], 512, 512, 32
    $region25: #{tpu_custom_call.1} parent=1 // pred_fallthru
      _
    // Predicated region
    $region26: #{tpu_custom_call.1} parent=1 // pred_check
      _
    $region27: #{tpu_custom_call.1} parent=1 // pred_check_branch
      %64 = sbr.rel (0) target = $region29
    $region28: #{tpu_custom_call.1} parent=1 // pred_region
      _
    $region29: #{tpu_custom_call.1} parent=1 // pred_fallthru
      _
    // Predicated region
    $region30: #{tpu_custom_call.1} parent=1 // pred_check
      _
    $region31: #{tpu_custom_call.1} parent=1 // pred_check_branch
      %66 = sbr.rel (0) target = $region33
    $region32: #{tpu_custom_call.1} parent=1 // pred_region
      %68 = vsyncadd [#allocation10], 0
      %s69 = sshll.u32 %s7, 4
      %s70 = int_to_ptr.hbm [resolvable:$true] %s69
      %s71 = sshll.u32 [#allocation9], 4
      %s72 = int_to_ptr.vmem [resolvable:$true] %s71
      %77 = dma.hbm_to_vmem [thread:$0]  %s70, 2048, %s72, [#allocation10], 128, 128, 8
    $region33: #{tpu_custom_call.1} parent=1 // pred_fallthru
      _
    // Predicated region
    $region34: #{tpu_custom_call.1} parent=1 // pred_check
      _
    $region35: #{tpu_custom_call.1} parent=1 // pred_check_branch
      %79 = sbr.rel (0) target = $region37
    $region36: #{tpu_custom_call.1} parent=1 // pred_region
      _
    $region37: #{tpu_custom_call.1} parent=1 // pred_fallthru
      _
    // Predicated region
    $region38: #{tpu_custom_call.1} parent=1 // pred_check
      _
    $region39: #{tpu_custom_call.1} parent=1 // pred_check_branch
      %81 = sbr.rel (0) target = $region41
    $region40: #{tpu_custom_call.1} parent=1 // pred_region
      %83 = dma.done [#allocation4], 8192
    $region41: #{tpu_custom_call.1} parent=1 // pred_fallthru
      _
    // Predicated region
    $region42: #{tpu_custom_call.1} parent=1 // pred_check
      _
    $region43: #{tpu_custom_call.1} parent=1 // pred_check_branch
      %85 = sbr.rel (0) target = $region45
    $region44: #{tpu_custom_call.1} parent=1 // pred_region
      %87 = dma.done [#allocation7], 8192
    $region45: #{tpu_custom_call.1} parent=1 // pred_fallthru
      _
    // Predicated region
    $region46: #{tpu_custom_call.1} parent=1 // pred_check
      _
    $region47: #{tpu_custom_call.1} parent=1 // pred_check_branch
      %89 = sbr.rel (0) target = $region49
    $region48: #{tpu_custom_call.1} parent=1 // pred_region
      %91 = dma.done [#allocation7], 8192
    $region49: #{tpu_custom_call.1} parent=1 // pred_fallthru
      _
    // Predicated region
    $region50: #{tpu_custom_call.1} parent=1 // pred_check
      _
    $region51: #{tpu_custom_call.1} parent=1 // pred_check_branch
      %93 = sbr.rel (0) target = $region53
    $region52: #{tpu_custom_call.1} parent=1 // pred_region
      %95 = dma.done [#allocation10], 2048
    $region53: #{tpu_custom_call.1} parent=1 // pred_fallthru
      _
    %v96 = vld [vmem:[%s0] sm:$0xff]
    %v97 = vld [vmem:[%s0 + $0x8] sm:$0xff]
    %v98 = vld [vmem:[%s0 + $0x10] sm:$0xff]
    %v99 = vld [vmem:[%s0 + $0x18] sm:$0xff]
    %v100 = vld [vmem:[%s0 + $0x20] sm:$0xff]
    %v101 = vld [vmem:[%s0 + $0x28] sm:$0xff]
    %v102 = vld [vmem:[%s0 + $0x30] sm:$0xff]
    %v103 = vld [vmem:[%s0 + $0x38] sm:$0xff]
    %v104 = vld [vmem:[%s1] sm:$0xf]
    %106 = vset.pattern.permute.xlu0 0
    %107 = vperm.xlu0 %106, %v96
    %v108 = vpop.permute.xlu0 %107
    %111 = vset.pattern.permute.xlu0 0
    %112 = vperm.xlu0 %111, %v97
    %v113 = vpop.permute.xlu0 %112
    %116 = vset.pattern.permute.xlu0 0
    %117 = vperm.xlu0 %116, %v98
    %v118 = vpop.permute.xlu0 %117
    %121 = vset.pattern.permute.xlu0 0
    %122 = vperm.xlu0 %121, %v99
    %v123 = vpop.permute.xlu0 %122
    %126 = vset.pattern.permute.xlu0 0
    %127 = vperm.xlu0 %126, %v100
    %v128 = vpop.permute.xlu0 %127
    %131 = vset.pattern.permute.xlu0 0
    %132 = vperm.xlu0 %131, %v101
    %v133 = vpop.permute.xlu0 %132
    %136 = vset.pattern.permute.xlu0 0
    %137 = vperm.xlu0 %136, %v102
    %v138 = vpop.permute.xlu0 %137
    %141 = vset.pattern.permute.xlu0 0
    %142 = vperm.xlu0 %141, %v103
    %v143 = vpop.permute.xlu0 %142
    %v146 = vperm.slane %v104, 0
    %v147 = vperm.slane %v104, 1
    %v148 = vperm.slane %v104, 2
    %v149 = vperm.slane %v104, 3
    %v154 = vmul.f32 %v108, %v146
    %v155 = vmul.f32 %v108, %v147
    %v156 = vmul.f32 %v108, %v148
    %v157 = vmul.f32 %v108, %v149
    %v158 = vmul.f32 %v113, %v146
    %v159 = vmul.f32 %v113, %v147
    %v160 = vmul.f32 %v113, %v148
    %v161 = vmul.f32 %v113, %v149
    %v162 = vmul.f32 %v118, %v146
    %v163 = vmul.f32 %v118, %v147
    %v164 = vmul.f32 %v118, %v148
    %v165 = vmul.f32 %v118, %v149
    %v166 = vmul.f32 %v123, %v146
    %v167 = vmul.f32 %v123, %v147
    %v168 = vmul.f32 %v123, %v148
    %v169 = vmul.f32 %v123, %v149
    %v170 = vmul.f32 %v128, %v146
    %v171 = vmul.f32 %v128, %v147
    %v172 = vmul.f32 %v128, %v148
    %v173 = vmul.f32 %v128, %v149
    %v174 = vmul.f32 %v133, %v146
    %v175 = vmul.f32 %v133, %v147
    %v176 = vmul.f32 %v133, %v148
    %v177 = vmul.f32 %v133, %v149
    %v178 = vmul.f32 %v138, %v146
    %v179 = vmul.f32 %v138, %v147
    %v180 = vmul.f32 %v138, %v148
    %v181 = vmul.f32 %v138, %v149
    %v182 = vmul.f32 %v143, %v146
    %v183 = vmul.f32 %v143, %v147
    %v184 = vmul.f32 %v143, %v148
    %v185 = vmul.f32 %v143, %v149
    %v186 = vld [vmem:[%s2] sm:$0xf]
    %v188 = vperm.slane %v186, 0
    %v189 = vperm.slane %v186, 1
    %v190 = vperm.slane %v186, 2
    %v191 = vperm.slane %v186, 3
    %v196 = vadd.f32 %v154, %v188
    %v197 = vadd.f32 %v155, %v189
    %v198 = vadd.f32 %v156, %v190
    %v199 = vadd.f32 %v157, %v191
    %v200 = vadd.f32 %v158, %v188
    %v201 = vadd.f32 %v159, %v189
    %v202 = vadd.f32 %v160, %v190
    %v203 = vadd.f32 %v161, %v191
    %v204 = vadd.f32 %v162, %v188
    %v205 = vadd.f32 %v163, %v189
    %v206 = vadd.f32 %v164, %v190
    %v207 = vadd.f32 %v165, %v191
    %v208 = vadd.f32 %v166, %v188
    %v209 = vadd.f32 %v167, %v189
    %v210 = vadd.f32 %v168, %v190
    %v211 = vadd.f32 %v169, %v191
    %v212 = vadd.f32 %v170, %v188
    %v213 = vadd.f32 %v171, %v189
    %v214 = vadd.f32 %v172, %v190
    %v215 = vadd.f32 %v173, %v191
    %v216 = vadd.f32 %v174, %v188
    %v217 = vadd.f32 %v175, %v189
    %v218 = vadd.f32 %v176, %v190
    %v219 = vadd.f32 %v177, %v191
    %v220 = vadd.f32 %v178, %v188
    %v221 = vadd.f32 %v179, %v189
    %v222 = vadd.f32 %v180, %v190
    %v223 = vadd.f32 %v181, %v191
    %v224 = vadd.f32 %v182, %v188
    %v225 = vadd.f32 %v183, %v189
    %v226 = vadd.f32 %v184, %v190
    %v227 = vadd.f32 %v185, %v191
    %228 = vst [vmem:[#allocation2] sm:$0xff] %v196
    %229 = vst [vmem:[#allocation2 + $0x8] sm:$0xff] %v197
    %230 = vst [vmem:[#allocation2 + $0x10] sm:$0xff] %v198
    %231 = vst [vmem:[#allocation2 + $0x18] sm:$0xff] %v199
    %232 = vst [vmem:[#allocation2 + $0x20] sm:$0xff] %v200
    %233 = vst [vmem:[#allocation2 + $0x28] sm:$0xff] %v201
    %234 = vst [vmem:[#allocation2 + $0x30] sm:$0xff] %v202
    %235 = vst [vmem:[#allocation2 + $0x38] sm:$0xff] %v203
    %236 = vst [vmem:[#allocation2 + $0x40] sm:$0xff] %v204
    %237 = vst [vmem:[#allocation2 + $0x48] sm:$0xff] %v205
    %238 = vst [vmem:[#allocation2 + $0x50] sm:$0xff] %v206
    %239 = vst [vmem:[#allocation2 + $0x58] sm:$0xff] %v207
    %240 = vst [vmem:[#allocation2 + $0x60] sm:$0xff] %v208
    %241 = vst [vmem:[#allocation2 + $0x68] sm:$0xff] %v209
    %242 = vst [vmem:[#allocation2 + $0x70] sm:$0xff] %v210
    %243 = vst [vmem:[#allocation2 + $0x78] sm:$0xff] %v211
    %244 = vst [vmem:[#allocation2 + $0x80] sm:$0xff] %v212
    %245 = vst [vmem:[#allocation2 + $0x88] sm:$0xff] %v213
    %246 = vst [vmem:[#allocation2 + $0x90] sm:$0xff] %v214
    %247 = vst [vmem:[#allocation2 + $0x98] sm:$0xff] %v215
    %248 = vst [vmem:[#allocation2 + $0xa0] sm:$0xff] %v216
    %249 = vst [vmem:[#allocation2 + $0xa8] sm:$0xff] %v217
    %250 = vst [vmem:[#allocation2 + $0xb0] sm:$0xff] %v218
    %251 = vst [vmem:[#allocation2 + $0xb8] sm:$0xff] %v219
    %252 = vst [vmem:[#allocation2 + $0xc0] sm:$0xff] %v220
    %253 = vst [vmem:[#allocation2 + $0xc8] sm:$0xff] %v221
    %254 = vst [vmem:[#allocation2 + $0xd0] sm:$0xff] %v222
    %255 = vst [vmem:[#allocation2 + $0xd8] sm:$0xff] %v223
    %256 = vst [vmem:[#allocation2 + $0xe0] sm:$0xff] %v224
    %257 = vst [vmem:[#allocation2 + $0xe8] sm:$0xff] %v225
    %258 = vst [vmem:[#allocation2 + $0xf0] sm:$0xff] %v226
    %259 = vst [vmem:[#allocation2 + $0xf8] sm:$0xff] %v227
    %v260 = vld [vmem:[#allocation2] sm:$0xff]
    %v261 = vld [vmem:[#allocation2 + $0x10] sm:$0xff]
    %v262 = vld [vmem:[#allocation2 + $0x18] sm:$0xff]
    %v263 = vxor.u32 %v260, 2147483648
    %v264 = vxor.u32 %v261, 2147483648
    %v265 = vmul.f32 %v263, 1.442695
    %v266 = vpow.pop %v265
    %v267 = vmul.f32 %v264, 1.442695
    %v268 = vpow.pop %v267
    %v269 = vadd.f32 %v266, 1.0
    %v270 = vadd.f32 %v268, 1.0
    %v271 = vrcp.pop %v269
    %v272 = vmul.f32 %v269, %v271
    %v273 = vsub.f32 1.0, %v272
    %v274 = vmul.f32 %v271, %v273
    %v275 = vadd.f32 %v271, %v274
    %vm276 = vweird.f32 %v269
    %vm277 = vweird.f32 %v271
    %vm278 = vmor %vm276, %vm277
    %v279 = vsel %vm278, %v271, %v275
    %v280 = vand.u32 2147483647, %v269
    %vm281 = vcmp.eq.f32.partialorder %v280, 8.507059e+37
    %v282 = vand.u32 %v269, 2147483648
    %v283 = vor.u32 1.1754944e-38, %v282
    %v284 = vsel %vm281, %v283, %v279
    %v285 = vmul.f32 1.0, %v284
    %v286 = vrcp.pop %v270
    %v287 = vmul.f32 %v270, %v286
    %v288 = vsub.f32 1.0, %v287
    %v289 = vmul.f32 %v286, %v288
    %v290 = vadd.f32 %v286, %v289
    %vm291 = vweird.f32 %v270
    %vm292 = vweird.f32 %v286
    %vm293 = vmor %vm291, %vm292
    %v294 = vsel %vm293, %v286, %v290
    %v295 = vand.u32 2147483647, %v270
    %vm296 = vcmp.eq.f32.partialorder %v295, 8.507059e+37
    %v297 = vand.u32 %v270, 2147483648
    %v298 = vor.u32 1.1754944e-38, %v297
    %v299 = vsel %vm296, %v298, %v294
    %v300 = vmul.f32 1.0, %v299
    %v301 = vtanh.pop %v262
    %v302 = vmul.f32 %v285, %v301
    %v303 = vtanh.pop %v302
    %v304 = vmul.f32 %v300, %v303
    %v305 = vld [vmem:[#allocation6] sm:$0xff]
    %v306 = vld [vmem:[#allocation6 + $0x8] sm:$0xff]
    %v307 = vld [vmem:[#allocation6 + $0x10] sm:$0xff]
    %v308 = vld [vmem:[#allocation6 + $0x18] sm:$0xff]
    %v309 = vld [vmem:[#allocation6 + $0x20] sm:$0xff]
    %v310 = vld [vmem:[#allocation6 + $0x28] sm:$0xff]
    %v311 = vld [vmem:[#allocation6 + $0x30] sm:$0xff]
    %v312 = vld [vmem:[#allocation6 + $0x38] sm:$0xff]
    %v313 = vld [vmem:[#allocation6 + $0x40] sm:$0xff]
    %v314 = vld [vmem:[#allocation6 + $0x48] sm:$0xff]
    %v315 = vld [vmem:[#allocation6 + $0x50] sm:$0xff]
    %v316 = vld [vmem:[#allocation6 + $0x58] sm:$0xff]
    %v317 = vld [vmem:[#allocation6 + $0x60] sm:$0xff]
    %v318 = vld [vmem:[#allocation6 + $0x68] sm:$0xff]
    %v319 = vld [vmem:[#allocation6 + $0x70] sm:$0xff]
    %v320 = vld [vmem:[#allocation6 + $0x78] sm:$0xff]
    %v321 = vld [vmem:[#allocation6 + $0x80] sm:$0xff]
    %v322 = vld [vmem:[#allocation6 + $0x88] sm:$0xff]
    %v323 = vld [vmem:[#allocation6 + $0x90] sm:$0xff]
    %v324 = vld [vmem:[#allocation6 + $0x98] sm:$0xff]
    %v325 = vld [vmem:[#allocation6 + $0xa0] sm:$0xff]
    %v326 = vld [vmem:[#allocation6 + $0xa8] sm:$0xff]
    %v327 = vld [vmem:[#allocation6 + $0xb0] sm:$0xff]
    %v328 = vld [vmem:[#allocation6 + $0xb8] sm:$0xff]
    %v329 = vld [vmem:[#allocation6 + $0xc0] sm:$0xff]
    %v330 = vld [vmem:[#allocation6 + $0xc8] sm:$0xff]
    %v331 = vld [vmem:[#allocation6 + $0xd0] sm:$0xff]
    %v332 = vld [vmem:[#allocation6 + $0xd8] sm:$0xff]
    %v333 = vld [vmem:[#allocation6 + $0xe0] sm:$0xff]
    %v334 = vld [vmem:[#allocation6 + $0xe8] sm:$0xff]
    %v335 = vld [vmem:[#allocation6 + $0xf0] sm:$0xff]
    %v336 = vld [vmem:[#allocation6 + $0xf8] sm:$0xff]
    %v337 = vld [vmem:[#allocation6 + $0x100] sm:$0xff]
    %v338 = vld [vmem:[#allocation6 + $0x108] sm:$0xff]
    %v339 = vld [vmem:[#allocation6 + $0x110] sm:$0xff]
    %v340 = vld [vmem:[#allocation6 + $0x118] sm:$0xff]
    %v341 = vld [vmem:[#allocation6 + $0x120] sm:$0xff]
    %v342 = vld [vmem:[#allocation6 + $0x128] sm:$0xff]
    %v343 = vld [vmem:[#allocation6 + $0x130] sm:$0xff]
    %v344 = vld [vmem:[#allocation6 + $0x138] sm:$0xff]
    %v345 = vld [vmem:[#allocation6 + $0x140] sm:$0xff]
    %v346 = vld [vmem:[#allocation6 + $0x148] sm:$0xff]
    %v347 = vld [vmem:[#allocation6 + $0x150] sm:$0xff]
    %v348 = vld [vmem:[#allocation6 + $0x158] sm:$0xff]
    %v349 = vld [vmem:[#allocation6 + $0x160] sm:$0xff]
    %v350 = vld [vmem:[#allocation6 + $0x168] sm:$0xff]
    %v351 = vld [vmem:[#allocation6 + $0x170] sm:$0xff]
    %v352 = vld [vmem:[#allocation6 + $0x178] sm:$0xff]
    %v353 = vld [vmem:[#allocation6 + $0x180] sm:$0xff]
    %v354 = vld [vmem:[#allocation6 + $0x188] sm:$0xff]
    %v355 = vld [vmem:[#allocation6 + $0x190] sm:$0xff]
    %v356 = vld [vmem:[#allocation6 + $0x198] sm:$0xff]
    %v357 = vld [vmem:[#allocation6 + $0x1a0] sm:$0xff]
    %v358 = vld [vmem:[#allocation6 + $0x1a8] sm:$0xff]
    %v359 = vld [vmem:[#allocation6 + $0x1b0] sm:$0xff]
    %v360 = vld [vmem:[#allocation6 + $0x1b8] sm:$0xff]
    %v361 = vld [vmem:[#allocation6 + $0x1c0] sm:$0xff]
    %v362 = vld [vmem:[#allocation6 + $0x1c8] sm:$0xff]
    %v363 = vld [vmem:[#allocation6 + $0x1d0] sm:$0xff]
    %v364 = vld [vmem:[#allocation6 + $0x1d8] sm:$0xff]
    %v365 = vld [vmem:[#allocation6 + $0x1e0] sm:$0xff]
    %v366 = vld [vmem:[#allocation6 + $0x1e8] sm:$0xff]
    %v367 = vld [vmem:[#allocation6 + $0x1f0] sm:$0xff]
    %v368 = vld [vmem:[#allocation6 + $0x1f8] sm:$0xff]
    %v369 = vld [vmem:[%s6] sm:$0xf]
    %v371 = vperm.slane %v369, 0
    %v372 = vperm.slane %v369, 1
    %v373 = vperm.slane %v369, 2
    %v374 = vperm.slane %v369, 3
    %379 = vmatpush.msra.mxu0 %v365
    %380 = vmatpush.msra.mxu0 %v361
    %381 = vmatpush.msra.mxu0 %v357
    %382 = vmatpush.msra.mxu0 %v353
    %383 = vmatpush.msra.mxu0 %v349
    %384 = vmatpush.msra.mxu0 %v345
    %385 = vmatpush.msra.mxu0 %v341
    %386 = vmatpush.msra.mxu0 %v337
    %387 = vmatpush.msra.mxu0 %v333
    %388 = vmatpush.msra.mxu0 %v329
    %389 = vmatpush.msra.mxu0 %v325
    %390 = vmatpush.msra.mxu0 %v321
    %391 = vmatpush.msra.mxu0 %v317
    %392 = vmatpush.msra.mxu0 %v313
    %393 = vmatpush.msra.mxu0 %v309
    %394 = vmatpush.msra.mxu0 %v305
    %395 = vmatmul.f32.gmra.mxu0 %v304
    %v396 = vpop.f32.mrf.mxu0
    %v397 = vadd.f32 %v371, %v396
    %398 = vdwg.mxu0
    %399 = vmatpush.msra.mxu0 %v367
    %400 = vmatpush.msra.mxu0 %v363
    %401 = vmatpush.msra.mxu0 %v359
    %402 = vmatpush.msra.mxu0 %v355
    %403 = vmatpush.msra.mxu0 %v351
    %404 = vmatpush.msra.mxu0 %v347
    %405 = vmatpush.msra.mxu0 %v343
    %406 = vmatpush.msra.mxu0 %v339
    %407 = vmatpush.msra.mxu0 %v335
    %408 = vmatpush.msra.mxu0 %v331
    %409 = vmatpush.msra.mxu0 %v327
    %410 = vmatpush.msra.mxu0 %v323
    %411 = vmatpush.msra.mxu0 %v319
    %412 = vmatpush.msra.mxu0 %v315
    %413 = vmatpush.msra.mxu0 %v311
    %414 = vmatpush.msra.mxu0 %v307
    %415 = vmatmul.f32.gmra.mxu0 %v304
    %v416 = vpop.f32.mrf.mxu0
    %v417 = vadd.f32 %v373, %v416
    %418 = vdwg.mxu0
    %419 = vmatpush.msra.mxu0 %v368
    %420 = vmatpush.msra.mxu0 %v364
    %421 = vmatpush.msra.mxu0 %v360
    %422 = vmatpush.msra.mxu0 %v356
    %423 = vmatpush.msra.mxu0 %v352
    %424 = vmatpush.msra.mxu0 %v348
    %425 = vmatpush.msra.mxu0 %v344
    %426 = vmatpush.msra.mxu0 %v340
    %427 = vmatpush.msra.mxu0 %v336
    %428 = vmatpush.msra.mxu0 %v332
    %429 = vmatpush.msra.mxu0 %v328
    %430 = vmatpush.msra.mxu0 %v324
    %431 = vmatpush.msra.mxu0 %v320
    %432 = vmatpush.msra.mxu0 %v316
    %433 = vmatpush.msra.mxu0 %v312
    %434 = vmatpush.msra.mxu0 %v308
    %435 = vmatmul.f32.gmra.mxu0 %v304
    %v436 = vpop.f32.mrf.mxu0
    %v437 = vadd.f32 %v374, %v436
    %438 = vdwg.mxu0
    %v439 = vxor.u32 %v397, 2147483648
    %v440 = vxor.u32 %v417, 2147483648
    %v441 = vmul.f32 %v439, 1.442695
    %v442 = vpow.pop %v441
    %v443 = vmul.f32 %v440, 1.442695
    %v444 = vpow.pop %v443
    %v445 = vadd.f32 %v442, 1.0
    %v446 = vadd.f32 %v444, 1.0
    %v447 = vrcp.pop %v445
    %v448 = vmul.f32 %v445, %v447
    %v449 = vsub.f32 1.0, %v448
    %v450 = vmul.f32 %v447, %v449
    %v451 = vadd.f32 %v447, %v450
    %vm452 = vweird.f32 %v445
    %vm453 = vweird.f32 %v447
    %vm454 = vmor %vm452, %vm453
    %v455 = vsel %vm454, %v447, %v451
    %v456 = vand.u32 2147483647, %v445
    %vm457 = vcmp.eq.f32.partialorder %v456, 8.507059e+37
    %v458 = vand.u32 %v445, 2147483648
    %v459 = vor.u32 1.1754944e-38, %v458
    %v460 = vsel %vm457, %v459, %v455
    %v461 = vmul.f32 1.0, %v460
    %v462 = vrcp.pop %v446
    %v463 = vmul.f32 %v446, %v462
    %v464 = vsub.f32 1.0, %v463
    %v465 = vmul.f32 %v462, %v464
    %v466 = vadd.f32 %v462, %v465
    %vm467 = vweird.f32 %v446
    %vm468 = vweird.f32 %v462
    %vm469 = vmor %vm467, %vm468
    %v470 = vsel %vm469, %v462, %v466
    %v471 = vand.u32 2147483647, %v446
    %vm472 = vcmp.eq.f32.partialorder %v471, 8.507059e+37
    %v473 = vand.u32 %v446, 2147483648
    %v474 = vor.u32 1.1754944e-38, %v473
    %v475 = vsel %vm472, %v474, %v470
    %v476 = vmul.f32 1.0, %v475
    %v477 = vtanh.pop %v437
    %v478 = vmul.f32 %v461, %v477
    %v479 = vtanh.pop %v478
    %v480 = vmul.f32 %v476, %v479
    %v481 = vld [vmem:[#allocation8] sm:$0xff]
    %v482 = vld [vmem:[#allocation8 + $0x8] sm:$0xff]
    %v483 = vld [vmem:[#allocation8 + $0x10] sm:$0xff]
    %v484 = vld [vmem:[#allocation8 + $0x18] sm:$0xff]
    %v485 = vld [vmem:[#allocation8 + $0x20] sm:$0xff]
    %v486 = vld [vmem:[#allocation8 + $0x28] sm:$0xff]
    %v487 = vld [vmem:[#allocation8 + $0x30] sm:$0xff]
    %v488 = vld [vmem:[#allocation8 + $0x38] sm:$0xff]
    %v489 = vld [vmem:[#allocation8 + $0x40] sm:$0xff]
    %v490 = vld [vmem:[#allocation8 + $0x48] sm:$0xff]
    %v491 = vld [vmem:[#allocation8 + $0x50] sm:$0xff]
    %v492 = vld [vmem:[#allocation8 + $0x58] sm:$0xff]
    %v493 = vld [vmem:[#allocation8 + $0x60] sm:$0xff]
    %v494 = vld [vmem:[#allocation8 + $0x68] sm:$0xff]
    %v495 = vld [vmem:[#allocation8 + $0x70] sm:$0xff]
    %v496 = vld [vmem:[#allocation8 + $0x78] sm:$0xff]
    %v497 = vld [vmem:[#allocation8 + $0x80] sm:$0xff]
    %v498 = vld [vmem:[#allocation8 + $0x88] sm:$0xff]
    %v499 = vld [vmem:[#allocation8 + $0x90] sm:$0xff]
    %v500 = vld [vmem:[#allocation8 + $0x98] sm:$0xff]
    %v501 = vld [vmem:[#allocation8 + $0xa0] sm:$0xff]
    %v502 = vld [vmem:[#allocation8 + $0xa8] sm:$0xff]
    %v503 = vld [vmem:[#allocation8 + $0xb0] sm:$0xff]
    %v504 = vld [vmem:[#allocation8 + $0xb8] sm:$0xff]
    %v505 = vld [vmem:[#allocation8 + $0xc0] sm:$0xff]
    %v506 = vld [vmem:[#allocation8 + $0xc8] sm:$0xff]
    %v507 = vld [vmem:[#allocation8 + $0xd0] sm:$0xff]
    %v508 = vld [vmem:[#allocation8 + $0xd8] sm:$0xff]
    %v509 = vld [vmem:[#allocation8 + $0xe0] sm:$0xff]
    %v510 = vld [vmem:[#allocation8 + $0xe8] sm:$0xff]
    %v511 = vld [vmem:[#allocation8 + $0xf0] sm:$0xff]
    %v512 = vld [vmem:[#allocation8 + $0xf8] sm:$0xff]
    %v513 = vld [vmem:[#allocation8 + $0x100] sm:$0xff]
    %v514 = vld [vmem:[#allocation8 + $0x108] sm:$0xff]
    %v515 = vld [vmem:[#allocation8 + $0x110] sm:$0xff]
    %v516 = vld [vmem:[#allocation8 + $0x118] sm:$0xff]
    %v517 = vld [vmem:[#allocation8 + $0x120] sm:$0xff]
    %v518 = vld [vmem:[#allocation8 + $0x128] sm:$0xff]
    %v519 = vld [vmem:[#allocation8 + $0x130] sm:$0xff]
    %v520 = vld [vmem:[#allocation8 + $0x138] sm:$0xff]
    %v521 = vld [vmem:[#allocation8 + $0x140] sm:$0xff]
    %v522 = vld [vmem:[#allocation8 + $0x148] sm:$0xff]
    %v523 = vld [vmem:[#allocation8 + $0x150] sm:$0xff]
    %v524 = vld [vmem:[#allocation8 + $0x158] sm:$0xff]
    %v525 = vld [vmem:[#allocation8 + $0x160] sm:$0xff]
    %v526 = vld [vmem:[#allocation8 + $0x168] sm:$0xff]
    %v527 = vld [vmem:[#allocation8 + $0x170] sm:$0xff]
    %v528 = vld [vmem:[#allocation8 + $0x178] sm:$0xff]
    %v529 = vld [vmem:[#allocation8 + $0x180] sm:$0xff]
    %v530 = vld [vmem:[#allocation8 + $0x188] sm:$0xff]
    %v531 = vld [vmem:[#allocation8 + $0x190] sm:$0xff]
    %v532 = vld [vmem:[#allocation8 + $0x198] sm:$0xff]
    %v533 = vld [vmem:[#allocation8 + $0x1a0] sm:$0xff]
    %v534 = vld [vmem:[#allocation8 + $0x1a8] sm:$0xff]
    %v535 = vld [vmem:[#allocation8 + $0x1b0] sm:$0xff]
    %v536 = vld [vmem:[#allocation8 + $0x1b8] sm:$0xff]
    %v537 = vld [vmem:[#allocation8 + $0x1c0] sm:$0xff]
    %v538 = vld [vmem:[#allocation8 + $0x1c8] sm:$0xff]
    %v539 = vld [vmem:[#allocation8 + $0x1d0] sm:$0xff]
    %v540 = vld [vmem:[#allocation8 + $0x1d8] sm:$0xff]
    %v541 = vld [vmem:[#allocation8 + $0x1e0] sm:$0xff]
    %v542 = vld [vmem:[#allocation8 + $0x1e8] sm:$0xff]
    %v543 = vld [vmem:[#allocation8 + $0x1f0] sm:$0xff]
    %v544 = vld [vmem:[#allocation8 + $0x1f8] sm:$0xff]
    %545 = vmatpush.msra.mxu0 %v541
    %546 = vmatpush.msra.mxu0 %v537
    %547 = vmatpush.msra.mxu0 %v533
    %548 = vmatpush.msra.mxu0 %v529
    %549 = vmatpush.msra.mxu0 %v525
    %550 = vmatpush.msra.mxu0 %v521
    %551 = vmatpush.msra.mxu0 %v517
    %552 = vmatpush.msra.mxu0 %v513
    %553 = vmatpush.msra.mxu0 %v509
    %554 = vmatpush.msra.mxu0 %v505
    %555 = vmatpush.msra.mxu0 %v501
    %556 = vmatpush.msra.mxu0 %v497
    %557 = vmatpush.msra.mxu0 %v493
    %558 = vmatpush.msra.mxu0 %v489
    %559 = vmatpush.msra.mxu0 %v485
    %560 = vmatpush.msra.mxu0 %v481
    %561 = vmatmul.f32.gmra.mxu0 %v480
    %v562 = vpop.f32.mrf.mxu0
    %v563 = vadd.f32 0.0, %v562
    %564 = vdwg.mxu0
    %565 = vmatpush.msra.mxu0 %v542
    %566 = vmatpush.msra.mxu0 %v538
    %567 = vmatpush.msra.mxu0 %v534
    %568 = vmatpush.msra.mxu0 %v530
    %569 = vmatpush.msra.mxu0 %v526
    %570 = vmatpush.msra.mxu0 %v522
    %571 = vmatpush.msra.mxu0 %v518
    %572 = vmatpush.msra.mxu0 %v514
    %573 = vmatpush.msra.mxu0 %v510
    %574 = vmatpush.msra.mxu0 %v506
    %575 = vmatpush.msra.mxu0 %v502
    %576 = vmatpush.msra.mxu0 %v498
    %577 = vmatpush.msra.mxu0 %v494
    %578 = vmatpush.msra.mxu0 %v490
    %579 = vmatpush.msra.mxu0 %v486
    %580 = vmatpush.msra.mxu0 %v482
    %581 = vmatmul.f32.gmra.mxu0 %v480
    %v582 = vpop.f32.mrf.mxu0
    %v583 = vadd.f32 0.0, %v582
    %584 = vdwg.mxu0
    %585 = vmatpush.msra.mxu0 %v543
    %586 = vmatpush.msra.mxu0 %v539
    %587 = vmatpush.msra.mxu0 %v535
    %588 = vmatpush.msra.mxu0 %v531
    %589 = vmatpush.msra.mxu0 %v527
    %590 = vmatpush.msra.mxu0 %v523
    %591 = vmatpush.msra.mxu0 %v519
    %592 = vmatpush.msra.mxu0 %v515
    %593 = vmatpush.msra.mxu0 %v511
    %594 = vmatpush.msra.mxu0 %v507
    %595 = vmatpush.msra.mxu0 %v503
    %596 = vmatpush.msra.mxu0 %v499
    %597 = vmatpush.msra.mxu0 %v495
    %598 = vmatpush.msra.mxu0 %v491
    %599 = vmatpush.msra.mxu0 %v487
    %600 = vmatpush.msra.mxu0 %v483
    %601 = vmatmul.f32.gmra.mxu0 %v480
    %v602 = vpop.f32.mrf.mxu0
    %v603 = vadd.f32 0.0, %v602
    %604 = vdwg.mxu0
    %605 = vmatpush.msra.mxu0 %v544
    %606 = vmatpush.msra.mxu0 %v540
    %607 = vmatpush.msra.mxu0 %v536
    %608 = vmatpush.msra.mxu0 %v532
    %609 = vmatpush.msra.mxu0 %v528
    %610 = vmatpush.msra.mxu0 %v524
    %611 = vmatpush.msra.mxu0 %v520
    %612 = vmatpush.msra.mxu0 %v516
    %613 = vmatpush.msra.mxu0 %v512
    %614 = vmatpush.msra.mxu0 %v508
    %615 = vmatpush.msra.mxu0 %v504
    %616 = vmatpush.msra.mxu0 %v500
    %617 = vmatpush.msra.mxu0 %v496
    %618 = vmatpush.msra.mxu0 %v492
    %619 = vmatpush.msra.mxu0 %v488
    %620 = vmatpush.msra.mxu0 %v484
    %621 = vmatmul.f32.gmra.mxu0 %v480
    %v622 = vpop.f32.mrf.mxu0
    %v623 = vadd.f32 0.0, %v622
    %624 = vdwg.mxu0
    %s625 = scalar_lea.vmem [#allocation2], 32
    %v626 = vld [vmem:[%s625] sm:$0xff]
    %v627 = vld [vmem:[%s625 + $0x8] sm:$0xff]
    %v628 = vld [vmem:[%s625 + $0x10] sm:$0xff]
    %v629 = vld [vmem:[%s625 + $0x18] sm:$0xff]
    %v630 = vld [vmem:[#allocation3] sm:$0xff]
    %v631 = vld [vmem:[#allocation3 + $0x8] sm:$0xff]
    %v632 = vld [vmem:[#allocation3 + $0x10] sm:$0xff]
    %v633 = vld [vmem:[#allocation3 + $0x18] sm:$0xff]
    %v634 = vld [vmem:[#allocation3 + $0x20] sm:$0xff]
    %v635 = vld [vmem:[#allocation3 + $0x28] sm:$0xff]
    %v636 = vld [vmem:[#allocation3 + $0x30] sm:$0xff]
    %v637 = vld [vmem:[#allocation3 + $0x38] sm:$0xff]
    %v638 = vld [vmem:[#allocation3 + $0x40] sm:$0xff]
    %v639 = vld [vmem:[#allocation3 + $0x48] sm:$0xff]
    %v640 = vld [vmem:[#allocation3 + $0x50] sm:$0xff]
    %v641 = vld [vmem:[#allocation3 + $0x58] sm:$0xff]
    %v642 = vld [vmem:[#allocation3 + $0x60] sm:$0xff]
    %v643 = vld [vmem:[#allocation3 + $0x68] sm:$0xff]
    %v644 = vld [vmem:[#allocation3 + $0x70] sm:$0xff]
    %v645 = vld [vmem:[#allocation3 + $0x78] sm:$0xff]
    %v646 = vld [vmem:[#allocation3 + $0x80] sm:$0xff]
    %v647 = vld [vmem:[#allocation3 + $0x88] sm:$0xff]
    %v648 = vld [vmem:[#allocation3 + $0x90] sm:$0xff]
    %v649 = vld [vmem:[#allocation3 + $0x98] sm:$0xff]
    %v650 = vld [vmem:[#allocation3 + $0xa0] sm:$0xff]
    %v651 = vld [vmem:[#allocation3 + $0xa8] sm:$0xff]
    %v652 = vld [vmem:[#allocation3 + $0xb0] sm:$0xff]
    %v653 = vld [vmem:[#allocation3 + $0xb8] sm:$0xff]
    %v654 = vld [vmem:[#allocation3 + $0xc0] sm:$0xff]
    %v655 = vld [vmem:[#allocation3 + $0xc8] sm:$0xff]
    %v656 = vld [vmem:[#allocation3 + $0xd0] sm:$0xff]
    %v657 = vld [vmem:[#allocation3 + $0xd8] sm:$0xff]
    %v658 = vld [vmem:[#allocation3 + $0xe0] sm:$0xff]
    %v659 = vld [vmem:[#allocation3 + $0xe8] sm:$0xff]
    %v660 = vld [vmem:[#allocation3 + $0xf0] sm:$0xff]
    %v661 = vld [vmem:[#allocation3 + $0xf8] sm:$0xff]
    %v662 = vld [vmem:[#allocation3 + $0x100] sm:$0xff]
    %v663 = vld [vmem:[#allocation3 + $0x108] sm:$0xff]
    %v664 = vld [vmem:[#allocation3 + $0x110] sm:$0xff]
    %v665 = vld [vmem:[#allocation3 + $0x118] sm:$0xff]
    %v666 = vld [vmem:[#allocation3 + $0x120] sm:$0xff]
    %v667 = vld [vmem:[#allocation3 + $0x128] sm:$0xff]
    %v668 = vld [vmem:[#allocation3 + $0x130] sm:$0xff]
    %v669 = vld [vmem:[#allocation3 + $0x138] sm:$0xff]
    %v670 = vld [vmem:[#allocation3 + $0x140] sm:$0xff]
    %v671 = vld [vmem:[#allocation3 + $0x148] sm:$0xff]
    %v672 = vld [vmem:[#allocation3 + $0x150] sm:$0xff]
    %v673 = vld [vmem:[#allocation3 + $0x158] sm:$0xff]
    %v674 = vld [vmem:[#allocation3 + $0x160] sm:$0xff]
    %v675 = vld [vmem:[#allocation3 + $0x168] sm:$0xff]
    %v676 = vld [vmem:[#allocation3 + $0x170] sm:$0xff]
    %v677 = vld [vmem:[#allocation3 + $0x178] sm:$0xff]
    %v678 = vld [vmem:[#allocation3 + $0x180] sm:$0xff]
    %v679 = vld [vmem:[#allocation3 + $0x188] sm:$0xff]
    %v680 = vld [vmem:[#allocation3 + $0x190] sm:$0xff]
    %v681 = vld [vmem:[#allocation3 + $0x198] sm:$0xff]
    %v682 = vld [vmem:[#allocation3 + $0x1a0] sm:$0xff]
    %v683 = vld [vmem:[#allocation3 + $0x1a8] sm:$0xff]
    %v684 = vld [vmem:[#allocation3 + $0x1b0] sm:$0xff]
    %v685 = vld [vmem:[#allocation3 + $0x1b8] sm:$0xff]
    %v686 = vld [vmem:[#allocation3 + $0x1c0] sm:$0xff]
    %v687 = vld [vmem:[#allocation3 + $0x1c8] sm:$0xff]
    %v688 = vld [vmem:[#allocation3 + $0x1d0] sm:$0xff]
    %v689 = vld [vmem:[#allocation3 + $0x1d8] sm:$0xff]
    %v690 = vld [vmem:[#allocation3 + $0x1e0] sm:$0xff]
    %v691 = vld [vmem:[#allocation3 + $0x1e8] sm:$0xff]
    %v692 = vld [vmem:[#allocation3 + $0x1f0] sm:$0xff]
    %v693 = vld [vmem:[#allocation3 + $0x1f8] sm:$0xff]
    %694 = vmatpush.msra.mxu0 %v690
    %695 = vmatpush.msra.mxu0 %v686
    %696 = vmatpush.msra.mxu0 %v682
    %697 = vmatpush.msra.mxu0 %v678
    %698 = vmatpush.msra.mxu0 %v674
    %699 = vmatpush.msra.mxu0 %v670
    %700 = vmatpush.msra.mxu0 %v666
    %701 = vmatpush.msra.mxu0 %v662
    %702 = vmatpush.msra.mxu0 %v658
    %703 = vmatpush.msra.mxu0 %v654
    %704 = vmatpush.msra.mxu0 %v650
    %705 = vmatpush.msra.mxu0 %v646
    %706 = vmatpush.msra.mxu0 %v642
    %707 = vmatpush.msra.mxu0 %v638
    %708 = vmatpush.msra.mxu0 %v634
    %709 = vmatpush.msra.mxu0 %v630
    %710 = vmatmul.f32.gmra.mxu0 %v304
    %v711 = vpop.f32.mrf.mxu0
    %v712 = vadd.f32 0.0, %v711
    %713 = vdwg.mxu0
    %714 = vmatpush.msra.mxu0 %v691
    %715 = vmatpush.msra.mxu0 %v687
    %716 = vmatpush.msra.mxu0 %v683
    %717 = vmatpush.msra.mxu0 %v679
    %718 = vmatpush.msra.mxu0 %v675
    %719 = vmatpush.msra.mxu0 %v671
    %720 = vmatpush.msra.mxu0 %v667
    %721 = vmatpush.msra.mxu0 %v663
    %722 = vmatpush.msra.mxu0 %v659
    %723 = vmatpush.msra.mxu0 %v655
    %724 = vmatpush.msra.mxu0 %v651
    %725 = vmatpush.msra.mxu0 %v647
    %726 = vmatpush.msra.mxu0 %v643
    %727 = vmatpush.msra.mxu0 %v639
    %728 = vmatpush.msra.mxu0 %v635
    %729 = vmatpush.msra.mxu0 %v631
    %730 = vmatmul.f32.gmra.mxu0 %v304
    %v731 = vpop.f32.mrf.mxu0
    %v732 = vadd.f32 0.0, %v731
    %733 = vdwg.mxu0
    %734 = vmatpush.msra.mxu0 %v692
    %735 = vmatpush.msra.mxu0 %v688
    %736 = vmatpush.msra.mxu0 %v684
    %737 = vmatpush.msra.mxu0 %v680
    %738 = vmatpush.msra.mxu0 %v676
    %739 = vmatpush.msra.mxu0 %v672
    %740 = vmatpush.msra.mxu0 %v668
    %741 = vmatpush.msra.mxu0 %v664
    %742 = vmatpush.msra.mxu0 %v660
    %743 = vmatpush.msra.mxu0 %v656
    %744 = vmatpush.msra.mxu0 %v652
    %745 = vmatpush.msra.mxu0 %v648
    %746 = vmatpush.msra.mxu0 %v644
    %747 = vmatpush.msra.mxu0 %v640
    %748 = vmatpush.msra.mxu0 %v636
    %749 = vmatpush.msra.mxu0 %v632
    %750 = vmatmul.f32.gmra.mxu0 %v304
    %v751 = vpop.f32.mrf.mxu0
    %v752 = vadd.f32 0.0, %v751
    %753 = vdwg.mxu0
    %754 = vmatpush.msra.mxu0 %v693
    %755 = vmatpush.msra.mxu0 %v689
    %756 = vmatpush.msra.mxu0 %v685
    %757 = vmatpush.msra.mxu0 %v681
    %758 = vmatpush.msra.mxu0 %v677
    %759 = vmatpush.msra.mxu0 %v673
    %760 = vmatpush.msra.mxu0 %v669
    %761 = vmatpush.msra.mxu0 %v665
    %762 = vmatpush.msra.mxu0 %v661
    %763 = vmatpush.msra.mxu0 %v657
    %764 = vmatpush.msra.mxu0 %v653
    %765 = vmatpush.msra.mxu0 %v649
    %766 = vmatpush.msra.mxu0 %v645
    %767 = vmatpush.msra.mxu0 %v641
    %768 = vmatpush.msra.mxu0 %v637
    %769 = vmatpush.msra.mxu0 %v633
    %770 = vmatmul.f32.gmra.mxu0 %v304
    %v771 = vpop.f32.mrf.mxu0
    %v772 = vadd.f32 0.0, %v771
    %773 = vdwg.mxu0
    %v774 = vadd.f32 %v626, %v712
    %v775 = vadd.f32 %v627, %v732
    %v776 = vadd.f32 %v628, %v752
    %v777 = vadd.f32 %v629, %v772
    %v778 = vxor.u32 %v774, 2147483648
    %v779 = vxor.u32 %v775, 2147483648
    %v780 = vxor.u32 %v776, 2147483648
    %v781 = vmul.f32 %v778, 1.442695
    %v782 = vpow.pop %v781
    %v783 = vmul.f32 %v779, 1.442695
    %v784 = vpow.pop %v783
    %v785 = vmul.f32 %v780, 1.442695
    %v786 = vpow.pop %v785
    %v787 = vadd.f32 %v782, 1.0
    %v788 = vadd.f32 %v784, 1.0
    %v789 = vadd.f32 %v786, 1.0
    %v790 = vrcp.pop %v787
    %v791 = vmul.f32 %v787, %v790
    %v792 = vsub.f32 1.0, %v791
    %v793 = vmul.f32 %v790, %v792
    %v794 = vadd.f32 %v790, %v793
    %vm795 = vweird.f32 %v787
    %vm796 = vweird.f32 %v790
    %vm797 = vmor %vm795, %vm796
    %v798 = vsel %vm797, %v790, %v794
    %v799 = vand.u32 2147483647, %v787
    %vm800 = vcmp.eq.f32.partialorder %v799, 8.507059e+37
    %v801 = vand.u32 %v787, 2147483648
    %v802 = vor.u32 1.1754944e-38, %v801
    %v803 = vsel %vm800, %v802, %v798
    %v804 = vmul.f32 1.0, %v803
    %v805 = vrcp.pop %v788
    %v806 = vmul.f32 %v788, %v805
    %v807 = vsub.f32 1.0, %v806
    %v808 = vmul.f32 %v805, %v807
    %v809 = vadd.f32 %v805, %v808
    %vm810 = vweird.f32 %v788
    %vm811 = vweird.f32 %v805
    %vm812 = vmor %vm810, %vm811
    %v813 = vsel %vm812, %v805, %v809
    %v814 = vand.u32 2147483647, %v788
    %vm815 = vcmp.eq.f32.partialorder %v814, 8.507059e+37
    %v816 = vand.u32 %v788, 2147483648
    %v817 = vor.u32 1.1754944e-38, %v816
    %v818 = vsel %vm815, %v817, %v813
    %v819 = vmul.f32 1.0, %v818
    %v820 = vrcp.pop %v789
    %v821 = vmul.f32 %v789, %v820
    %v822 = vsub.f32 1.0, %v821
    %v823 = vmul.f32 %v820, %v822
    %v824 = vadd.f32 %v820, %v823
    %vm825 = vweird.f32 %v789
    %vm826 = vweird.f32 %v820
    %vm827 = vmor %vm825, %vm826
    %v828 = vsel %vm827, %v820, %v824
    %v829 = vand.u32 2147483647, %v789
    %vm830 = vcmp.eq.f32.partialorder %v829, 8.507059e+37
    %v831 = vand.u32 %v789, 2147483648
    %v832 = vor.u32 1.1754944e-38, %v831
    %v833 = vsel %vm830, %v832, %v828
    %v834 = vmul.f32 1.0, %v833
    %v835 = vtanh.pop %v777
    %v836 = vmul.f32 %v819, %v302
    %v837 = vmul.f32 %v804, %v835
    %v838 = vadd.f32 %v836, %v837
    %v839 = vtanh.pop %v838
    %v840 = vmul.f32 %v834, %v839
    %841 = vmatpush.msra.mxu0 %v365
    %842 = vmatpush.msra.mxu0 %v361
    %843 = vmatpush.msra.mxu0 %v357
    %844 = vmatpush.msra.mxu0 %v353
    %845 = vmatpush.msra.mxu0 %v349
    %846 = vmatpush.msra.mxu0 %v345
    %847 = vmatpush.msra.mxu0 %v341
    %848 = vmatpush.msra.mxu0 %v337
    %849 = vmatpush.msra.mxu0 %v333
    %850 = vmatpush.msra.mxu0 %v329
    %851 = vmatpush.msra.mxu0 %v325
    %852 = vmatpush.msra.mxu0 %v321
    %853 = vmatpush.msra.mxu0 %v317
    %854 = vmatpush.msra.mxu0 %v313
    %855 = vmatpush.msra.mxu0 %v309
    %856 = vmatpush.msra.mxu0 %v305
    %857 = vmatmul.f32.gmra.mxu0 %v840
    %v858 = vpop.f32.mrf.mxu0
    %v859 = vadd.f32 %v563, %v858
    %860 = vdwg.mxu0
    %861 = vmatpush.msra.mxu0 %v366
    %862 = vmatpush.msra.mxu0 %v362
    %863 = vmatpush.msra.mxu0 %v358
    %864 = vmatpush.msra.mxu0 %v354
    %865 = vmatpush.msra.mxu0 %v350
    %866 = vmatpush.msra.mxu0 %v346
    %867 = vmatpush.msra.mxu0 %v342
    %868 = vmatpush.msra.mxu0 %v338
    %869 = vmatpush.msra.mxu0 %v334
    %870 = vmatpush.msra.mxu0 %v330
    %871 = vmatpush.msra.mxu0 %v326
    %872 = vmatpush.msra.mxu0 %v322
    %873 = vmatpush.msra.mxu0 %v318
    %874 = vmatpush.msra.mxu0 %v314
    %875 = vmatpush.msra.mxu0 %v310
    %876 = vmatpush.msra.mxu0 %v306
    %877 = vmatmul.f32.gmra.mxu0 %v840
    %v878 = vpop.f32.mrf.mxu0
    %v879 = vadd.f32 %v583, %v878
    %880 = vdwg.mxu0
    %881 = vmatpush.msra.mxu0 %v367
    %882 = vmatpush.msra.mxu0 %v363
    %883 = vmatpush.msra.mxu0 %v359
    %884 = vmatpush.msra.mxu0 %v355
    %885 = vmatpush.msra.mxu0 %v351
    %886 = vmatpush.msra.mxu0 %v347
    %887 = vmatpush.msra.mxu0 %v343
    %888 = vmatpush.msra.mxu0 %v339
    %889 = vmatpush.msra.mxu0 %v335
    %890 = vmatpush.msra.mxu0 %v331
    %891 = vmatpush.msra.mxu0 %v327
    %892 = vmatpush.msra.mxu0 %v323
    %893 = vmatpush.msra.mxu0 %v319
    %894 = vmatpush.msra.mxu0 %v315
    %895 = vmatpush.msra.mxu0 %v311
    %896 = vmatpush.msra.mxu0 %v307
    %897 = vmatmul.f32.gmra.mxu0 %v840
    %v898 = vpop.f32.mrf.mxu0
    %v899 = vadd.f32 %v603, %v898
    %900 = vdwg.mxu0
    %901 = vmatpush.msra.mxu0 %v368
    %902 = vmatpush.msra.mxu0 %v364
    %903 = vmatpush.msra.mxu0 %v360
    %904 = vmatpush.msra.mxu0 %v356
    %905 = vmatpush.msra.mxu0 %v352
    %906 = vmatpush.msra.mxu0 %v348
    %907 = vmatpush.msra.mxu0 %v344
    %908 = vmatpush.msra.mxu0 %v340
    %909 = vmatpush.msra.mxu0 %v336
    %910 = vmatpush.msra.mxu0 %v332
    %911 = vmatpush.msra.mxu0 %v328
    %912 = vmatpush.msra.mxu0 %v324
    %913 = vmatpush.msra.mxu0 %v320
    %914 = vmatpush.msra.mxu0 %v316
    %915 = vmatpush.msra.mxu0 %v312
    %916 = vmatpush.msra.mxu0 %v308
    %917 = vmatmul.f32.gmra.mxu0 %v840
    %v918 = vpop.f32.mrf.mxu0
    %v919 = vadd.f32 %v623, %v918
    %920 = vdwg.mxu0
    %v921 = vadd.f32 %v859, %v371
    %v922 = vadd.f32 %v879, %v372
    %v923 = vadd.f32 %v899, %v373
    %v924 = vadd.f32 %v919, %v374
    %v925 = vxor.u32 %v921, 2147483648
    %v926 = vxor.u32 %v922, 2147483648
    %v927 = vxor.u32 %v923, 2147483648
    %v928 = vmul.f32 %v925, 1.442695
    %v929 = vpow.pop %v928
    %v930 = vmul.f32 %v926, 1.442695
    %v931 = vpow.pop %v930
    %v932 = vmul.f32 %v927, 1.442695
    %v933 = vpow.pop %v932
    %v934 = vadd.f32 %v929, 1.0
    %v935 = vadd.f32 %v931, 1.0
    %v936 = vadd.f32 %v933, 1.0
    %v937 = vrcp.pop %v934
    %v938 = vmul.f32 %v934, %v937
    %v939 = vsub.f32 1.0, %v938
    %v940 = vmul.f32 %v937, %v939
    %v941 = vadd.f32 %v937, %v940
    %vm942 = vweird.f32 %v934
    %vm943 = vweird.f32 %v937
    %vm944 = vmor %vm942, %vm943
    %v945 = vsel %vm944, %v937, %v941
    %v946 = vand.u32 2147483647, %v934
    %vm947 = vcmp.eq.f32.partialorder %v946, 8.507059e+37
    %v948 = vand.u32 %v934, 2147483648
    %v949 = vor.u32 1.1754944e-38, %v948
    %v950 = vsel %vm947, %v949, %v945
    %v951 = vmul.f32 1.0, %v950
    %v952 = vrcp.pop %v935
    %v953 = vmul.f32 %v935, %v952
    %v954 = vsub.f32 1.0, %v953
    %v955 = vmul.f32 %v952, %v954
    %v956 = vadd.f32 %v952, %v955
    %vm957 = vweird.f32 %v935
    %vm958 = vweird.f32 %v952
    %vm959 = vmor %vm957, %vm958
    %v960 = vsel %vm959, %v952, %v956
    %v961 = vand.u32 2147483647, %v935
    %vm962 = vcmp.eq.f32.partialorder %v961, 8.507059e+37
    %v963 = vand.u32 %v935, 2147483648
    %v964 = vor.u32 1.1754944e-38, %v963
    %v965 = vsel %vm962, %v964, %v960
    %v966 = vmul.f32 1.0, %v965
    %v967 = vrcp.pop %v936
    %v968 = vmul.f32 %v936, %v967
    %v969 = vsub.f32 1.0, %v968
    %v970 = vmul.f32 %v967, %v969
    %v971 = vadd.f32 %v967, %v970
    %vm972 = vweird.f32 %v936
    %vm973 = vweird.f32 %v967
    %vm974 = vmor %vm972, %vm973
    %v975 = vsel %vm974, %v967, %v971
    %v976 = vand.u32 2147483647, %v936
    %vm977 = vcmp.eq.f32.partialorder %v976, 8.507059e+37
    %v978 = vand.u32 %v936, 2147483648
    %v979 = vor.u32 1.1754944e-38, %v978
    %v980 = vsel %vm977, %v979, %v975
    %v981 = vmul.f32 1.0, %v980
    %v982 = vtanh.pop %v924
    %v983 = vmul.f32 %v966, %v478
    %v984 = vmul.f32 %v951, %v982
    %v985 = vadd.f32 %v983, %v984
    %v986 = vtanh.pop %v985
    %v987 = vmul.f32 %v981, %v986
    %988 = vmatpush.msra.mxu0 %v541
    %989 = vmatpush.msra.mxu0 %v537
    %990 = vmatpush.msra.mxu0 %v533
    %991 = vmatpush.msra.mxu0 %v529
    %992 = vmatpush.msra.mxu0 %v525
    %993 = vmatpush.msra.mxu0 %v521
    %994 = vmatpush.msra.mxu0 %v517
    %995 = vmatpush.msra.mxu0 %v513
    %996 = vmatpush.msra.mxu0 %v509
    %997 = vmatpush.msra.mxu0 %v505
    %998 = vmatpush.msra.mxu0 %v501
    %999 = vmatpush.msra.mxu0 %v497
    %1000 = vmatpush.msra.mxu0 %v493
    %1001 = vmatpush.msra.mxu0 %v489
    %1002 = vmatpush.msra.mxu0 %v485
    %1003 = vmatpush.msra.mxu0 %v481
    %1004 = vmatmul.f32.gmra.mxu0 %v987
    %v1005 = vpop.f32.mrf.mxu0
    %v1006 = vadd.f32 0.0, %v1005
    %1007 = vdwg.mxu0
    %1008 = vmatpush.msra.mxu0 %v542
    %1009 = vmatpush.msra.mxu0 %v538
    %1010 = vmatpush.msra.mxu0 %v534
    %1011 = vmatpush.msra.mxu0 %v530
    %1012 = vmatpush.msra.mxu0 %v526
    %1013 = vmatpush.msra.mxu0 %v522
    %1014 = vmatpush.msra.mxu0 %v518
    %1015 = vmatpush.msra.mxu0 %v514
    %1016 = vmatpush.msra.mxu0 %v510
    %1017 = vmatpush.msra.mxu0 %v506
    %1018 = vmatpush.msra.mxu0 %v502
    %1019 = vmatpush.msra.mxu0 %v498
    %1020 = vmatpush.msra.mxu0 %v494
    %1021 = vmatpush.msra.mxu0 %v490
    %1022 = vmatpush.msra.mxu0 %v486
    %1023 = vmatpush.msra.mxu0 %v482
    %1024 = vmatmul.f32.gmra.mxu0 %v987
    %v1025 = vpop.f32.mrf.mxu0
    %v1026 = vadd.f32 0.0, %v1025
    %1027 = vdwg.mxu0
    %1028 = vmatpush.msra.mxu0 %v543
    %1029 = vmatpush.msra.mxu0 %v539
    %1030 = vmatpush.msra.mxu0 %v535
    %1031 = vmatpush.msra.mxu0 %v531
    %1032 = vmatpush.msra.mxu0 %v527
    %1033 = vmatpush.msra.mxu0 %v523
    %1034 = vmatpush.msra.mxu0 %v519
    %1035 = vmatpush.msra.mxu0 %v515
    %1036 = vmatpush.msra.mxu0 %v511
    %1037 = vmatpush.msra.mxu0 %v507
    %1038 = vmatpush.msra.mxu0 %v503
    %1039 = vmatpush.msra.mxu0 %v499
    %1040 = vmatpush.msra.mxu0 %v495
    %1041 = vmatpush.msra.mxu0 %v491
    %1042 = vmatpush.msra.mxu0 %v487
    %1043 = vmatpush.msra.mxu0 %v483
    %1044 = vmatmul.f32.gmra.mxu0 %v987
    %v1045 = vpop.f32.mrf.mxu0
    %v1046 = vadd.f32 0.0, %v1045
    %1047 = vdwg.mxu0
    %1048 = vmatpush.msra.mxu0 %v544
    %1049 = vmatpush.msra.mxu0 %v540
    %1050 = vmatpush.msra.mxu0 %v536
    %1051 = vmatpush.msra.mxu0 %v532
    %1052 = vmatpush.msra.mxu0 %v528
    %1053 = vmatpush.msra.mxu0 %v524
    %1054 = vmatpush.msra.mxu0 %v520
    %1055 = vmatpush.msra.mxu0 %v516
    %1056 = vmatpush.msra.mxu0 %v512
    %1057 = vmatpush.msra.mxu0 %v508
    %1058 = vmatpush.msra.mxu0 %v504
    %1059 = vmatpush.msra.mxu0 %v500
    %1060 = vmatpush.msra.mxu0 %v496
    %1061 = vmatpush.msra.mxu0 %v492
    %1062 = vmatpush.msra.mxu0 %v488
    %1063 = vmatpush.msra.mxu0 %v484
    %1064 = vmatmul.f32.gmra.mxu0 %v987
    %v1065 = vpop.f32.mrf.mxu0
    %v1066 = vadd.f32 0.0, %v1065
    %1067 = vdwg.mxu0
    %s1068 = scalar_lea.vmem [#allocation2], 64
    %v1069 = vld [vmem:[%s1068] sm:$0xff]
    %v1070 = vld [vmem:[%s1068 + $0x8] sm:$0xff]
    %v1071 = vld [vmem:[%s1068 + $0x10] sm:$0xff]
    %v1072 = vld [vmem:[%s1068 + $0x18] sm:$0xff]
    %1073 = vmatpush.msra.mxu0 %v690
    %1074 = vmatpush.msra.mxu0 %v686
    %1075 = vmatpush.msra.mxu0 %v682
    %1076 = vmatpush.msra.mxu0 %v678
    %1077 = vmatpush.msra.mxu0 %v674
    %1078 = vmatpush.msra.mxu0 %v670
    %1079 = vmatpush.msra.mxu0 %v666
    %1080 = vmatpush.msra.mxu0 %v662
    %1081 = vmatpush.msra.mxu0 %v658
    %1082 = vmatpush.msra.mxu0 %v654
    %1083 = vmatpush.msra.mxu0 %v650
    %1084 = vmatpush.msra.mxu0 %v646
    %1085 = vmatpush.msra.mxu0 %v642
    %1086 = vmatpush.msra.mxu0 %v638
    %1087 = vmatpush.msra.mxu0 %v634
    %1088 = vmatpush.msra.mxu0 %v630
    %1089 = vmatmul.f32.gmra.mxu0 %v840
    %v1090 = vpop.f32.mrf.mxu0
    %v1091 = vadd.f32 0.0, %v1090
    %1092 = vdwg.mxu0
    %1093 = vmatpush.msra.mxu0 %v691
    %1094 = vmatpush.msra.mxu0 %v687
    %1095 = vmatpush.msra.mxu0 %v683
    %1096 = vmatpush.msra.mxu0 %v679
    %1097 = vmatpush.msra.mxu0 %v675
    %1098 = vmatpush.msra.mxu0 %v671
    %1099 = vmatpush.msra.mxu0 %v667
    %1100 = vmatpush.msra.mxu0 %v663
    %1101 = vmatpush.msra.mxu0 %v659
    %1102 = vmatpush.msra.mxu0 %v655
    %1103 = vmatpush.msra.mxu0 %v651
    %1104 = vmatpush.msra.mxu0 %v647
    %1105 = vmatpush.msra.mxu0 %v643
    %1106 = vmatpush.msra.mxu0 %v639
    %1107 = vmatpush.msra.mxu0 %v635
    %1108 = vmatpush.msra.mxu0 %v631
    %1109 = vmatmul.f32.gmra.mxu0 %v840
    %v1110 = vpop.f32.mrf.mxu0
    %v1111 = vadd.f32 0.0, %v1110
    %1112 = vdwg.mxu0
    %1113 = vmatpush.msra.mxu0 %v692
    %1114 = vmatpush.msra.mxu0 %v688
    %1115 = vmatpush.msra.mxu0 %v684
    %1116 = vmatpush.msra.mxu0 %v680
    %1117 = vmatpush.msra.mxu0 %v676
    %1118 = vmatpush.msra.mxu0 %v672
    %1119 = vmatpush.msra.mxu0 %v668
    %1120 = vmatpush.msra.mxu0 %v664
    %1121 = vmatpush.msra.mxu0 %v660
    %1122 = vmatpush.msra.mxu0 %v656
    %1123 = vmatpush.msra.mxu0 %v652
    %1124 = vmatpush.msra.mxu0 %v648
    %1125 = vmatpush.msra.mxu0 %v644
    %1126 = vmatpush.msra.mxu0 %v640
    %1127 = vmatpush.msra.mxu0 %v636
    %1128 = vmatpush.msra.mxu0 %v632
    %1129 = vmatmul.f32.gmra.mxu0 %v840
    %v1130 = vpop.f32.mrf.mxu0
    %v1131 = vadd.f32 0.0, %v1130
    %1132 = vdwg.mxu0
    %1133 = vmatpush.msra.mxu0 %v693
    %1134 = vmatpush.msra.mxu0 %v689
    %1135 = vmatpush.msra.mxu0 %v685
    %1136 = vmatpush.msra.mxu0 %v681
    %1137 = vmatpush.msra.mxu0 %v677
    %1138 = vmatpush.msra.mxu0 %v673
    %1139 = vmatpush.msra.mxu0 %v669
    %1140 = vmatpush.msra.mxu0 %v665
    %1141 = vmatpush.msra.mxu0 %v661
    %1142 = vmatpush.msra.mxu0 %v657
    %1143 = vmatpush.msra.mxu0 %v653
    %1144 = vmatpush.msra.mxu0 %v649
    %1145 = vmatpush.msra.mxu0 %v645
    %1146 = vmatpush.msra.mxu0 %v641
    %1147 = vmatpush.msra.mxu0 %v637
    %1148 = vmatpush.msra.mxu0 %v633
    %1149 = vmatmul.f32.gmra.mxu0 %v840
    %v1150 = vpop.f32.mrf.mxu0
    %v1151 = vadd.f32 0.0, %v1150
    %1152 = vdwg.mxu0
    %v1153 = vadd.f32 %v1069, %v1091
    %v1154 = vadd.f32 %v1070, %v1111
    %v1155 = vadd.f32 %v1071, %v1131
    %v1156 = vadd.f32 %v1072, %v1151
    %v1157 = vxor.u32 %v1153, 2147483648
    %v1158 = vxor.u32 %v1154, 2147483648
    %v1159 = vxor.u32 %v1155, 2147483648
    %v1160 = vmul.f32 %v1157, 1.442695
    %v1161 = vpow.pop %v1160
    %v1162 = vmul.f32 %v1158, 1.442695
    %v1163 = vpow.pop %v1162
    %v1164 = vmul.f32 %v1159, 1.442695
    %v1165 = vpow.pop %v1164
    %v1166 = vadd.f32 %v1161, 1.0
    %v1167 = vadd.f32 %v1163, 1.0
    %v1168 = vadd.f32 %v1165, 1.0
    %v1169 = vrcp.pop %v1166
    %v1170 = vmul.f32 %v1166, %v1169
    %v1171 = vsub.f32 1.0, %v1170
    %v1172 = vmul.f32 %v1169, %v1171
    %v1173 = vadd.f32 %v1169, %v1172
    %vm1174 = vweird.f32 %v1166
    %vm1175 = vweird.f32 %v1169
    %vm1176 = vmor %vm1174, %vm1175
    %v1177 = vsel %vm1176, %v1169, %v1173
    %v1178 = vand.u32 2147483647, %v1166
    %vm1179 = vcmp.eq.f32.partialorder %v1178, 8.507059e+37
    %v1180 = vand.u32 %v1166, 2147483648
    %v1181 = vor.u32 1.1754944e-38, %v1180
    %v1182 = vsel %vm1179, %v1181, %v1177
    %v1183 = vmul.f32 1.0, %v1182
    %v1184 = vrcp.pop %v1167
    %v1185 = vmul.f32 %v1167, %v1184
    %v1186 = vsub.f32 1.0, %v1185
    %v1187 = vmul.f32 %v1184, %v1186
    %v1188 = vadd.f32 %v1184, %v1187
    %vm1189 = vweird.f32 %v1167
    %vm1190 = vweird.f32 %v1184
    %vm1191 = vmor %vm1189, %vm1190
    %v1192 = vsel %vm1191, %v1184, %v1188
    %v1193 = vand.u32 2147483647, %v1167
    %vm1194 = vcmp.eq.f32.partialorder %v1193, 8.507059e+37
    %v1195 = vand.u32 %v1167, 2147483648
    %v1196 = vor.u32 1.1754944e-38, %v1195
    %v1197 = vsel %vm1194, %v1196, %v1192
    %v1198 = vmul.f32 1.0, %v1197
    %v1199 = vrcp.pop %v1168
    %v1200 = vmul.f32 %v1168, %v1199
    %v1201 = vsub.f32 1.0, %v1200
    %v1202 = vmul.f32 %v1199, %v1201
    %v1203 = vadd.f32 %v1199, %v1202
    %vm1204 = vweird.f32 %v1168
    %vm1205 = vweird.f32 %v1199
    %vm1206 = vmor %vm1204, %vm1205
    %v1207 = vsel %vm1206, %v1199, %v1203
    %v1208 = vand.u32 2147483647, %v1168
    %vm1209 = vcmp.eq.f32.partialorder %v1208, 8.507059e+37
    %v1210 = vand.u32 %v1168, 2147483648
    %v1211 = vor.u32 1.1754944e-38, %v1210
    %v1212 = vsel %vm1209, %v1211, %v1207
    %v1213 = vmul.f32 1.0, %v1212
    %v1214 = vtanh.pop %v1156
    %v1215 = vmul.f32 %v1198, %v838
    %v1216 = vmul.f32 %v1183, %v1214
    %v1217 = vadd.f32 %v1215, %v1216
    %v1218 = vtanh.pop %v1217
    %v1219 = vmul.f32 %v1213, %v1218
    %1220 = vmatpush.msra.mxu0 %v365
    %1221 = vmatpush.msra.mxu0 %v361
    %1222 = vmatpush.msra.mxu0 %v357
    %1223 = vmatpush.msra.mxu0 %v353
    %1224 = vmatpush.msra.mxu0 %v349
    %1225 = vmatpush.msra.mxu0 %v345
    %1226 = vmatpush.msra.mxu0 %v341
    %1227 = vmatpush.msra.mxu0 %v337
    %1228 = vmatpush.msra.mxu0 %v333
    %1229 = vmatpush.msra.mxu0 %v329
    %1230 = vmatpush.msra.mxu0 %v325
    %1231 = vmatpush.msra.mxu0 %v321
    %1232 = vmatpush.msra.mxu0 %v317
    %1233 = vmatpush.msra.mxu0 %v313
    %1234 = vmatpush.msra.mxu0 %v309
    %1235 = vmatpush.msra.mxu0 %v305
    %1236 = vmatmul.f32.gmra.mxu0 %v1219
    %v1237 = vpop.f32.mrf.mxu0
    %v1238 = vadd.f32 %v1006, %v1237
    %1239 = vdwg.mxu0
    %1240 = vmatpush.msra.mxu0 %v366
    %1241 = vmatpush.msra.mxu0 %v362
    %1242 = vmatpush.msra.mxu0 %v358
    %1243 = vmatpush.msra.mxu0 %v354
    %1244 = vmatpush.msra.mxu0 %v350
    %1245 = vmatpush.msra.mxu0 %v346
    %1246 = vmatpush.msra.mxu0 %v342
    %1247 = vmatpush.msra.mxu0 %v338
    %1248 = vmatpush.msra.mxu0 %v334
    %1249 = vmatpush.msra.mxu0 %v330
    %1250 = vmatpush.msra.mxu0 %v326
    %1251 = vmatpush.msra.mxu0 %v322
    %1252 = vmatpush.msra.mxu0 %v318
    %1253 = vmatpush.msra.mxu0 %v314
    %1254 = vmatpush.msra.mxu0 %v310
    %1255 = vmatpush.msra.mxu0 %v306
    %1256 = vmatmul.f32.gmra.mxu0 %v1219
    %v1257 = vpop.f32.mrf.mxu0
    %v1258 = vadd.f32 %v1026, %v1257
    %1259 = vdwg.mxu0
    %1260 = vmatpush.msra.mxu0 %v367
    %1261 = vmatpush.msra.mxu0 %v363
    %1262 = vmatpush.msra.mxu0 %v359
    %1263 = vmatpush.msra.mxu0 %v355
    %1264 = vmatpush.msra.mxu0 %v351
    %1265 = vmatpush.msra.mxu0 %v347
    %1266 = vmatpush.msra.mxu0 %v343
    %1267 = vmatpush.msra.mxu0 %v339
    %1268 = vmatpush.msra.mxu0 %v335
    %1269 = vmatpush.msra.mxu0 %v331
    %1270 = vmatpush.msra.mxu0 %v327
    %1271 = vmatpush.msra.mxu0 %v323
    %1272 = vmatpush.msra.mxu0 %v319
    %1273 = vmatpush.msra.mxu0 %v315
    %1274 = vmatpush.msra.mxu0 %v311
    %1275 = vmatpush.msra.mxu0 %v307
    %1276 = vmatmul.f32.gmra.mxu0 %v1219
    %v1277 = vpop.f32.mrf.mxu0
    %v1278 = vadd.f32 %v1046, %v1277
    %1279 = vdwg.mxu0
    %1280 = vmatpush.msra.mxu0 %v368
    %1281 = vmatpush.msra.mxu0 %v364
    %1282 = vmatpush.msra.mxu0 %v360
    %1283 = vmatpush.msra.mxu0 %v356
    %1284 = vmatpush.msra.mxu0 %v352
    %1285 = vmatpush.msra.mxu0 %v348
    %1286 = vmatpush.msra.mxu0 %v344
    %1287 = vmatpush.msra.mxu0 %v340
    %1288 = vmatpush.msra.mxu0 %v336
    %1289 = vmatpush.msra.mxu0 %v332
    %1290 = vmatpush.msra.mxu0 %v328
    %1291 = vmatpush.msra.mxu0 %v324
    %1292 = vmatpush.msra.mxu0 %v320
    %1293 = vmatpush.msra.mxu0 %v316
    %1294 = vmatpush.msra.mxu0 %v312
    %1295 = vmatpush.msra.mxu0 %v308
    %1296 = vmatmul.f32.gmra.mxu0 %v1219
    %v1297 = vpop.f32.mrf.mxu0
    %v1298 = vadd.f32 %v1066, %v1297
    %1299 = vdwg.mxu0
    %v1300 = vadd.f32 %v1238, %v371
    %v1301 = vadd.f32 %v1258, %v372
    %v1302 = vadd.f32 %v1278, %v373
    %v1303 = vadd.f32 %v1298, %v374
    %v1304 = vxor.u32 %v1300, 2147483648
    %v1305 = vxor.u32 %v1301, 2147483648
    %v1306 = vxor.u32 %v1302, 2147483648
    %v1307 = vmul.f32 %v1304, 1.442695
    %v1308 = vpow.pop %v1307
    %v1309 = vmul.f32 %v1305, 1.442695
    %v1310 = vpow.pop %v1309
    %v1311 = vmul.f32 %v1306, 1.442695
    %v1312 = vpow.pop %v1311
    %v1313 = vadd.f32 %v1308, 1.0
    %v1314 = vadd.f32 %v1310, 1.0
    %v1315 = vadd.f32 %v1312, 1.0
    %v1316 = vrcp.pop %v1313
    %v1317 = vmul.f32 %v1313, %v1316
    %v1318 = vsub.f32 1.0, %v1317
    %v1319 = vmul.f32 %v1316, %v1318
    %v1320 = vadd.f32 %v1316, %v1319
    %vm1321 = vweird.f32 %v1313
    %vm1322 = vweird.f32 %v1316
    %vm1323 = vmor %vm1321, %vm1322
    %v1324 = vsel %vm1323, %v1316, %v1320
    %v1325 = vand.u32 2147483647, %v1313
    %vm1326 = vcmp.eq.f32.partialorder %v1325, 8.507059e+37
    %v1327 = vand.u32 %v1313, 2147483648
    %v1328 = vor.u32 1.1754944e-38, %v1327
    %v1329 = vsel %vm1326, %v1328, %v1324
    %v1330 = vmul.f32 1.0, %v1329
    %v1331 = vrcp.pop %v1314
    %v1332 = vmul.f32 %v1314, %v1331
    %v1333 = vsub.f32 1.0, %v1332
    %v1334 = vmul.f32 %v1331, %v1333
    %v1335 = vadd.f32 %v1331, %v1334
    %vm1336 = vweird.f32 %v1314
    %vm1337 = vweird.f32 %v1331
    %vm1338 = vmor %vm1336, %vm1337
    %v1339 = vsel %vm1338, %v1331, %v1335
    %v1340 = vand.u32 2147483647, %v1314
    %vm1341 = vcmp.eq.f32.partialorder %v1340, 8.507059e+37
    %v1342 = vand.u32 %v1314, 2147483648
    %v1343 = vor.u32 1.1754944e-38, %v1342
    %v1344 = vsel %vm1341, %v1343, %v1339
    %v1345 = vmul.f32 1.0, %v1344
    %v1346 = vrcp.pop %v1315
    %v1347 = vmul.f32 %v1315, %v1346
    %v1348 = vsub.f32 1.0, %v1347
    %v1349 = vmul.f32 %v1346, %v1348
    %v1350 = vadd.f32 %v1346, %v1349
    %vm1351 = vweird.f32 %v1315
    %vm1352 = vweird.f32 %v1346
    %vm1353 = vmor %vm1351, %vm1352
    %v1354 = vsel %vm1353, %v1346, %v1350
    %v1355 = vand.u32 2147483647, %v1315
    %vm1356 = vcmp.eq.f32.partialorder %v1355, 8.507059e+37
    %v1357 = vand.u32 %v1315, 2147483648
    %v1358 = vor.u32 1.1754944e-38, %v1357
    %v1359 = vsel %vm1356, %v1358, %v1354
    %v1360 = vmul.f32 1.0, %v1359
    %v1361 = vtanh.pop %v1303
    %v1362 = vmul.f32 %v1345, %v985
    %v1363 = vmul.f32 %v1330, %v1361
    %v1364 = vadd.f32 %v1362, %v1363
    %v1365 = vtanh.pop %v1364
    %v1366 = vmul.f32 %v1360, %v1365
    %1367 = vmatpush.msra.mxu0 %v541
    %1368 = vmatpush.msra.mxu0 %v537
    %1369 = vmatpush.msra.mxu0 %v533
    %1370 = vmatpush.msra.mxu0 %v529
    %1371 = vmatpush.msra.mxu0 %v525
    %1372 = vmatpush.msra.mxu0 %v521
    %1373 = vmatpush.msra.mxu0 %v517
    %1374 = vmatpush.msra.mxu0 %v513
    %1375 = vmatpush.msra.mxu0 %v509
    %1376 = vmatpush.msra.mxu0 %v505
    %1377 = vmatpush.msra.mxu0 %v501
    %1378 = vmatpush.msra.mxu0 %v497
    %1379 = vmatpush.msra.mxu0 %v493
    %1380 = vmatpush.msra.mxu0 %v489
    %1381 = vmatpush.msra.mxu0 %v485
    %1382 = vmatpush.msra.mxu0 %v481
    %1383 = vmatmul.f32.gmra.mxu0 %v1366
    %v1384 = vpop.f32.mrf.mxu0
    %v1385 = vadd.f32 0.0, %v1384
    %1386 = vdwg.mxu0
    %1387 = vmatpush.msra.mxu0 %v542
    %1388 = vmatpush.msra.mxu0 %v538
    %1389 = vmatpush.msra.mxu0 %v534
    %1390 = vmatpush.msra.mxu0 %v530
    %1391 = vmatpush.msra.mxu0 %v526
    %1392 = vmatpush.msra.mxu0 %v522
    %1393 = vmatpush.msra.mxu0 %v518
    %1394 = vmatpush.msra.mxu0 %v514
    %1395 = vmatpush.msra.mxu0 %v510
    %1396 = vmatpush.msra.mxu0 %v506
    %1397 = vmatpush.msra.mxu0 %v502
    %1398 = vmatpush.msra.mxu0 %v498
    %1399 = vmatpush.msra.mxu0 %v494
    %1400 = vmatpush.msra.mxu0 %v490
    %1401 = vmatpush.msra.mxu0 %v486
    %1402 = vmatpush.msra.mxu0 %v482
    %1403 = vmatmul.f32.gmra.mxu0 %v1366
    %v1404 = vpop.f32.mrf.mxu0
    %v1405 = vadd.f32 0.0, %v1404
    %1406 = vdwg.mxu0
    %1407 = vmatpush.msra.mxu0 %v543
    %1408 = vmatpush.msra.mxu0 %v539
    %1409 = vmatpush.msra.mxu0 %v535
    %1410 = vmatpush.msra.mxu0 %v531
    %1411 = vmatpush.msra.mxu0 %v527
    %1412 = vmatpush.msra.mxu0 %v523
    %1413 = vmatpush.msra.mxu0 %v519
    %1414 = vmatpush.msra.mxu0 %v515
    %1415 = vmatpush.msra.mxu0 %v511
    %1416 = vmatpush.msra.mxu0 %v507
    %1417 = vmatpush.msra.mxu0 %v503
    %1418 = vmatpush.msra.mxu0 %v499
    %1419 = vmatpush.msra.mxu0 %v495
    %1420 = vmatpush.msra.mxu0 %v491
    %1421 = vmatpush.msra.mxu0 %v487
    %1422 = vmatpush.msra.mxu0 %v483
    %1423 = vmatmul.f32.gmra.mxu0 %v1366
    %v1424 = vpop.f32.mrf.mxu0
    %v1425 = vadd.f32 0.0, %v1424
    %1426 = vdwg.mxu0
    %1427 = vmatpush.msra.mxu0 %v544
    %1428 = vmatpush.msra.mxu0 %v540
    %1429 = vmatpush.msra.mxu0 %v536
    %1430 = vmatpush.msra.mxu0 %v532
    %1431 = vmatpush.msra.mxu0 %v528
    %1432 = vmatpush.msra.mxu0 %v524
    %1433 = vmatpush.msra.mxu0 %v520
    %1434 = vmatpush.msra.mxu0 %v516
    %1435 = vmatpush.msra.mxu0 %v512
    %1436 = vmatpush.msra.mxu0 %v508
    %1437 = vmatpush.msra.mxu0 %v504
    %1438 = vmatpush.msra.mxu0 %v500
    %1439 = vmatpush.msra.mxu0 %v496
    %1440 = vmatpush.msra.mxu0 %v492
    %1441 = vmatpush.msra.mxu0 %v488
    %1442 = vmatpush.msra.mxu0 %v484
    %1443 = vmatmul.f32.gmra.mxu0 %v1366
    %v1444 = vpop.f32.mrf.mxu0
    %v1445 = vadd.f32 0.0, %v1444
    %1446 = vdwg.mxu0
    %s1447 = scalar_lea.vmem [#allocation2], 96
    %v1448 = vld [vmem:[%s1447] sm:$0xff]
    %v1449 = vld [vmem:[%s1447 + $0x8] sm:$0xff]
    %v1450 = vld [vmem:[%s1447 + $0x10] sm:$0xff]
    %v1451 = vld [vmem:[%s1447 + $0x18] sm:$0xff]
    %1452 = vmatpush.msra.mxu0 %v690
    %1453 = vmatpush.msra.mxu0 %v686
    %1454 = vmatpush.msra.mxu0 %v682
    %1455 = vmatpush.msra.mxu0 %v678
    %1456 = vmatpush.msra.mxu0 %v674
    %1457 = vmatpush.msra.mxu0 %v670
    %1458 = vmatpush.msra.mxu0 %v666
    %1459 = vmatpush.msra.mxu0 %v662
    %1460 = vmatpush.msra.mxu0 %v658
    %1461 = vmatpush.msra.mxu0 %v654
    %1462 = vmatpush.msra.mxu0 %v650
    %1463 = vmatpush.msra.mxu0 %v646
    %1464 = vmatpush.msra.mxu0 %v642
    %1465 = vmatpush.msra.mxu0 %v638
    %1466 = vmatpush.msra.mxu0 %v634
    %1467 = vmatpush.msra.mxu0 %v630
    %1468 = vmatmul.f32.gmra.mxu0 %v1219
    %v1469 = vpop.f32.mrf.mxu0
    %v1470 = vadd.f32 0.0, %v1469
    %1471 = vdwg.mxu0
    %1472 = vmatpush.msra.mxu0 %v691
    %1473 = vmatpush.msra.mxu0 %v687
    %1474 = vmatpush.msra.mxu0 %v683
    %1475 = vmatpush.msra.mxu0 %v679
    %1476 = vmatpush.msra.mxu0 %v675
    %1477 = vmatpush.msra.mxu0 %v671
    %1478 = vmatpush.msra.mxu0 %v667
    %1479 = vmatpush.msra.mxu0 %v663
    %1480 = vmatpush.msra.mxu0 %v659
    %1481 = vmatpush.msra.mxu0 %v655
    %1482 = vmatpush.msra.mxu0 %v651
    %1483 = vmatpush.msra.mxu0 %v647
    %1484 = vmatpush.msra.mxu0 %v643
    %1485 = vmatpush.msra.mxu0 %v639
    %1486 = vmatpush.msra.mxu0 %v635
    %1487 = vmatpush.msra.mxu0 %v631
    %1488 = vmatmul.f32.gmra.mxu0 %v1219
    %v1489 = vpop.f32.mrf.mxu0
    %v1490 = vadd.f32 0.0, %v1489
    %1491 = vdwg.mxu0
    %1492 = vmatpush.msra.mxu0 %v692
    %1493 = vmatpush.msra.mxu0 %v688
    %1494 = vmatpush.msra.mxu0 %v684
    %1495 = vmatpush.msra.mxu0 %v680
    %1496 = vmatpush.msra.mxu0 %v676
    %1497 = vmatpush.msra.mxu0 %v672
    %1498 = vmatpush.msra.mxu0 %v668
    %1499 = vmatpush.msra.mxu0 %v664
    %1500 = vmatpush.msra.mxu0 %v660
    %1501 = vmatpush.msra.mxu0 %v656
    %1502 = vmatpush.msra.mxu0 %v652
    %1503 = vmatpush.msra.mxu0 %v648
    %1504 = vmatpush.msra.mxu0 %v644
    %1505 = vmatpush.msra.mxu0 %v640
    %1506 = vmatpush.msra.mxu0 %v636
    %1507 = vmatpush.msra.mxu0 %v632
    %1508 = vmatmul.f32.gmra.mxu0 %v1219
    %v1509 = vpop.f32.mrf.mxu0
    %v1510 = vadd.f32 0.0, %v1509
    %1511 = vdwg.mxu0
    %1512 = vmatpush.msra.mxu0 %v693
    %1513 = vmatpush.msra.mxu0 %v689
    %1514 = vmatpush.msra.mxu0 %v685
    %1515 = vmatpush.msra.mxu0 %v681
    %1516 = vmatpush.msra.mxu0 %v677
    %1517 = vmatpush.msra.mxu0 %v673
    %1518 = vmatpush.msra.mxu0 %v669
    %1519 = vmatpush.msra.mxu0 %v665
    %1520 = vmatpush.msra.mxu0 %v661
    %1521 = vmatpush.msra.mxu0 %v657
    %1522 = vmatpush.msra.mxu0 %v653
    %1523 = vmatpush.msra.mxu0 %v649
    %1524 = vmatpush.msra.mxu0 %v645
    %1525 = vmatpush.msra.mxu0 %v641
    %1526 = vmatpush.msra.mxu0 %v637
    %1527 = vmatpush.msra.mxu0 %v633
    %1528 = vmatmul.f32.gmra.mxu0 %v1219
    %v1529 = vpop.f32.mrf.mxu0
    %v1530 = vadd.f32 0.0, %v1529
    %1531 = vdwg.mxu0
    %v1532 = vadd.f32 %v1448, %v1470
    %v1533 = vadd.f32 %v1449, %v1490
    %v1534 = vadd.f32 %v1450, %v1510
    %v1535 = vadd.f32 %v1451, %v1530
    %v1536 = vxor.u32 %v1532, 2147483648
    %v1537 = vxor.u32 %v1533, 2147483648
    %v1538 = vxor.u32 %v1534, 2147483648
    %v1539 = vmul.f32 %v1536, 1.442695
    %v1540 = vpow.pop %v1539
    %v1541 = vmul.f32 %v1537, 1.442695
    %v1542 = vpow.pop %v1541
    %v1543 = vmul.f32 %v1538, 1.442695
    %v1544 = vpow.pop %v1543
    %v1545 = vadd.f32 %v1540, 1.0
    %v1546 = vadd.f32 %v1542, 1.0
    %v1547 = vadd.f32 %v1544, 1.0
    %v1548 = vrcp.pop %v1545
    %v1549 = vmul.f32 %v1545, %v1548
    %v1550 = vsub.f32 1.0, %v1549
    %v1551 = vmul.f32 %v1548, %v1550
    %v1552 = vadd.f32 %v1548, %v1551
    %vm1553 = vweird.f32 %v1545
    %vm1554 = vweird.f32 %v1548
    %vm1555 = vmor %vm1553, %vm1554
    %v1556 = vsel %vm1555, %v1548, %v1552
    %v1557 = vand.u32 2147483647, %v1545
    %vm1558 = vcmp.eq.f32.partialorder %v1557, 8.507059e+37
    %v1559 = vand.u32 %v1545, 2147483648
    %v1560 = vor.u32 1.1754944e-38, %v1559
    %v1561 = vsel %vm1558, %v1560, %v1556
    %v1562 = vmul.f32 1.0, %v1561
    %v1563 = vrcp.pop %v1546
    %v1564 = vmul.f32 %v1546, %v1563
    %v1565 = vsub.f32 1.0, %v1564
    %v1566 = vmul.f32 %v1563, %v1565
    %v1567 = vadd.f32 %v1563, %v1566
    %vm1568 = vweird.f32 %v1546
    %vm1569 = vweird.f32 %v1563
    %vm1570 = vmor %vm1568, %vm1569
    %v1571 = vsel %vm1570, %v1563, %v1567
    %v1572 = vand.u32 2147483647, %v1546
    %vm1573 = vcmp.eq.f32.partialorder %v1572, 8.507059e+37
    %v1574 = vand.u32 %v1546, 2147483648
    %v1575 = vor.u32 1.1754944e-38, %v1574
    %v1576 = vsel %vm1573, %v1575, %v1571
    %v1577 = vmul.f32 1.0, %v1576
    %v1578 = vrcp.pop %v1547
    %v1579 = vmul.f32 %v1547, %v1578
    %v1580 = vsub.f32 1.0, %v1579
    %v1581 = vmul.f32 %v1578, %v1580
    %v1582 = vadd.f32 %v1578, %v1581
    %vm1583 = vweird.f32 %v1547
    %vm1584 = vweird.f32 %v1578
    %vm1585 = vmor %vm1583, %vm1584
    %v1586 = vsel %vm1585, %v1578, %v1582
    %v1587 = vand.u32 2147483647, %v1547
    %vm1588 = vcmp.eq.f32.partialorder %v1587, 8.507059e+37
    %v1589 = vand.u32 %v1547, 2147483648
    %v1590 = vor.u32 1.1754944e-38, %v1589
    %v1591 = vsel %vm1588, %v1590, %v1586
    %v1592 = vmul.f32 1.0, %v1591
    %v1593 = vtanh.pop %v1535
    %v1594 = vmul.f32 %v1577, %v1217
    %v1595 = vmul.f32 %v1562, %v1593
    %v1596 = vadd.f32 %v1594, %v1595
    %v1597 = vtanh.pop %v1596
    %v1598 = vmul.f32 %v1592, %v1597
    %1599 = vmatpush.msra.mxu0 %v365
    %1600 = vmatpush.msra.mxu0 %v361
    %1601 = vmatpush.msra.mxu0 %v357
    %1602 = vmatpush.msra.mxu0 %v353
    %1603 = vmatpush.msra.mxu0 %v349
    %1604 = vmatpush.msra.mxu0 %v345
    %1605 = vmatpush.msra.mxu0 %v341
    %1606 = vmatpush.msra.mxu0 %v337
    %1607 = vmatpush.msra.mxu0 %v333
    %1608 = vmatpush.msra.mxu0 %v329
    %1609 = vmatpush.msra.mxu0 %v325
    %1610 = vmatpush.msra.mxu0 %v321
    %1611 = vmatpush.msra.mxu0 %v317
    %1612 = vmatpush.msra.mxu0 %v313
    %1613 = vmatpush.msra.mxu0 %v309
    %1614 = vmatpush.msra.mxu0 %v305
    %1615 = vmatmul.f32.gmra.mxu0 %v1598
    %v1616 = vpop.f32.mrf.mxu0
    %v1617 = vadd.f32 %v1385, %v1616
    %1618 = vdwg.mxu0
    %1619 = vmatpush.msra.mxu0 %v366
    %1620 = vmatpush.msra.mxu0 %v362
    %1621 = vmatpush.msra.mxu0 %v358
    %1622 = vmatpush.msra.mxu0 %v354
    %1623 = vmatpush.msra.mxu0 %v350
    %1624 = vmatpush.msra.mxu0 %v346
    %1625 = vmatpush.msra.mxu0 %v342
    %1626 = vmatpush.msra.mxu0 %v338
    %1627 = vmatpush.msra.mxu0 %v334
    %1628 = vmatpush.msra.mxu0 %v330
    %1629 = vmatpush.msra.mxu0 %v326
    %1630 = vmatpush.msra.mxu0 %v322
    %1631 = vmatpush.msra.mxu0 %v318
    %1632 = vmatpush.msra.mxu0 %v314
    %1633 = vmatpush.msra.mxu0 %v310
    %1634 = vmatpush.msra.mxu0 %v306
    %1635 = vmatmul.f32.gmra.mxu0 %v1598
    %v1636 = vpop.f32.mrf.mxu0
    %v1637 = vadd.f32 %v1405, %v1636
    %1638 = vdwg.mxu0
    %1639 = vmatpush.msra.mxu0 %v367
    %1640 = vmatpush.msra.mxu0 %v363
    %1641 = vmatpush.msra.mxu0 %v359
    %1642 = vmatpush.msra.mxu0 %v355
    %1643 = vmatpush.msra.mxu0 %v351
    %1644 = vmatpush.msra.mxu0 %v347
    %1645 = vmatpush.msra.mxu0 %v343
    %1646 = vmatpush.msra.mxu0 %v339
    %1647 = vmatpush.msra.mxu0 %v335
    %1648 = vmatpush.msra.mxu0 %v331
    %1649 = vmatpush.msra.mxu0 %v327
    %1650 = vmatpush.msra.mxu0 %v323
    %1651 = vmatpush.msra.mxu0 %v319
    %1652 = vmatpush.msra.mxu0 %v315
    %1653 = vmatpush.msra.mxu0 %v311
    %1654 = vmatpush.msra.mxu0 %v307
    %1655 = vmatmul.f32.gmra.mxu0 %v1598
    %v1656 = vpop.f32.mrf.mxu0
    %v1657 = vadd.f32 %v1425, %v1656
    %1658 = vdwg.mxu0
    %1659 = vmatpush.msra.mxu0 %v368
    %1660 = vmatpush.msra.mxu0 %v364
    %1661 = vmatpush.msra.mxu0 %v360
    %1662 = vmatpush.msra.mxu0 %v356
    %1663 = vmatpush.msra.mxu0 %v352
    %1664 = vmatpush.msra.mxu0 %v348
    %1665 = vmatpush.msra.mxu0 %v344
    %1666 = vmatpush.msra.mxu0 %v340
    %1667 = vmatpush.msra.mxu0 %v336
    %1668 = vmatpush.msra.mxu0 %v332
    %1669 = vmatpush.msra.mxu0 %v328
    %1670 = vmatpush.msra.mxu0 %v324
    %1671 = vmatpush.msra.mxu0 %v320
    %1672 = vmatpush.msra.mxu0 %v316
    %1673 = vmatpush.msra.mxu0 %v312
    %1674 = vmatpush.msra.mxu0 %v308
    %1675 = vmatmul.f32.gmra.mxu0 %v1598
    %v1676 = vpop.f32.mrf.mxu0
    %v1677 = vadd.f32 %v1445, %v1676
    %1678 = vdwg.mxu0
    %v1679 = vadd.f32 %v1617, %v371
    %v1680 = vadd.f32 %v1637, %v372
    %v1681 = vadd.f32 %v1657, %v373
    %v1682 = vadd.f32 %v1677, %v374
    %v1683 = vxor.u32 %v1679, 2147483648
    %v1684 = vxor.u32 %v1680, 2147483648
    %v1685 = vxor.u32 %v1681, 2147483648
    %v1686 = vmul.f32 %v1683, 1.442695
    %v1687 = vpow.pop %v1686
    %v1688 = vmul.f32 %v1684, 1.442695
    %v1689 = vpow.pop %v1688
    %v1690 = vmul.f32 %v1685, 1.442695
    %v1691 = vpow.pop %v1690
    %v1692 = vadd.f32 %v1687, 1.0
    %v1693 = vadd.f32 %v1689, 1.0
    %v1694 = vadd.f32 %v1691, 1.0
    %v1695 = vrcp.pop %v1692
    %v1696 = vmul.f32 %v1692, %v1695
    %v1697 = vsub.f32 1.0, %v1696
    %v1698 = vmul.f32 %v1695, %v1697
    %v1699 = vadd.f32 %v1695, %v1698
    %vm1700 = vweird.f32 %v1692
    %vm1701 = vweird.f32 %v1695
    %vm1702 = vmor %vm1700, %vm1701
    %v1703 = vsel %vm1702, %v1695, %v1699
    %v1704 = vand.u32 2147483647, %v1692
    %vm1705 = vcmp.eq.f32.partialorder %v1704, 8.507059e+37
    %v1706 = vand.u32 %v1692, 2147483648
    %v1707 = vor.u32 1.1754944e-38, %v1706
    %v1708 = vsel %vm1705, %v1707, %v1703
    %v1709 = vmul.f32 1.0, %v1708
    %v1710 = vrcp.pop %v1693
    %v1711 = vmul.f32 %v1693, %v1710
    %v1712 = vsub.f32 1.0, %v1711
    %v1713 = vmul.f32 %v1710, %v1712
    %v1714 = vadd.f32 %v1710, %v1713
    %vm1715 = vweird.f32 %v1693
    %vm1716 = vweird.f32 %v1710
    %vm1717 = vmor %vm1715, %vm1716
    %v1718 = vsel %vm1717, %v1710, %v1714
    %v1719 = vand.u32 2147483647, %v1693
    %vm1720 = vcmp.eq.f32.partialorder %v1719, 8.507059e+37
    %v1721 = vand.u32 %v1693, 2147483648
    %v1722 = vor.u32 1.1754944e-38, %v1721
    %v1723 = vsel %vm1720, %v1722, %v1718
    %v1724 = vmul.f32 1.0, %v1723
    %v1725 = vrcp.pop %v1694
    %v1726 = vmul.f32 %v1694, %v1725
    %v1727 = vsub.f32 1.0, %v1726
    %v1728 = vmul.f32 %v1725, %v1727
    %v1729 = vadd.f32 %v1725, %v1728
    %vm1730 = vweird.f32 %v1694
    %vm1731 = vweird.f32 %v1725
    %vm1732 = vmor %vm1730, %vm1731
    %v1733 = vsel %vm1732, %v1725, %v1729
    %v1734 = vand.u32 2147483647, %v1694
    %vm1735 = vcmp.eq.f32.partialorder %v1734, 8.507059e+37
    %v1736 = vand.u32 %v1694, 2147483648
    %v1737 = vor.u32 1.1754944e-38, %v1736
    %v1738 = vsel %vm1735, %v1737, %v1733
    %v1739 = vmul.f32 1.0, %v1738
    %v1740 = vtanh.pop %v1682
    %v1741 = vmul.f32 %v1724, %v1364
    %v1742 = vmul.f32 %v1709, %v1740
    %v1743 = vadd.f32 %v1741, %v1742
    %v1744 = vtanh.pop %v1743
    %v1745 = vmul.f32 %v1739, %v1744
    %1746 = vmatpush.msra.mxu0 %v541
    %1747 = vmatpush.msra.mxu0 %v537
    %1748 = vmatpush.msra.mxu0 %v533
    %1749 = vmatpush.msra.mxu0 %v529
    %1750 = vmatpush.msra.mxu0 %v525
    %1751 = vmatpush.msra.mxu0 %v521
    %1752 = vmatpush.msra.mxu0 %v517
    %1753 = vmatpush.msra.mxu0 %v513
    %1754 = vmatpush.msra.mxu0 %v509
    %1755 = vmatpush.msra.mxu0 %v505
    %1756 = vmatpush.msra.mxu0 %v501
    %1757 = vmatpush.msra.mxu0 %v497
    %1758 = vmatpush.msra.mxu0 %v493
    %1759 = vmatpush.msra.mxu0 %v489
    %1760 = vmatpush.msra.mxu0 %v485
    %1761 = vmatpush.msra.mxu0 %v481
    %1762 = vmatmul.f32.gmra.mxu0 %v1745
    %v1763 = vpop.f32.mrf.mxu0
    %v1764 = vadd.f32 0.0, %v1763
    %1765 = vdwg.mxu0
    %1766 = vmatpush.msra.mxu0 %v542
    %1767 = vmatpush.msra.mxu0 %v538
    %1768 = vmatpush.msra.mxu0 %v534
    %1769 = vmatpush.msra.mxu0 %v530
    %1770 = vmatpush.msra.mxu0 %v526
    %1771 = vmatpush.msra.mxu0 %v522
    %1772 = vmatpush.msra.mxu0 %v518
    %1773 = vmatpush.msra.mxu0 %v514
    %1774 = vmatpush.msra.mxu0 %v510
    %1775 = vmatpush.msra.mxu0 %v506
    %1776 = vmatpush.msra.mxu0 %v502
    %1777 = vmatpush.msra.mxu0 %v498
    %1778 = vmatpush.msra.mxu0 %v494
    %1779 = vmatpush.msra.mxu0 %v490
    %1780 = vmatpush.msra.mxu0 %v486
    %1781 = vmatpush.msra.mxu0 %v482
    %1782 = vmatmul.f32.gmra.mxu0 %v1745
    %v1783 = vpop.f32.mrf.mxu0
    %v1784 = vadd.f32 0.0, %v1783
    %1785 = vdwg.mxu0
    %1786 = vmatpush.msra.mxu0 %v543
    %1787 = vmatpush.msra.mxu0 %v539
    %1788 = vmatpush.msra.mxu0 %v535
    %1789 = vmatpush.msra.mxu0 %v531
    %1790 = vmatpush.msra.mxu0 %v527
    %1791 = vmatpush.msra.mxu0 %v523
    %1792 = vmatpush.msra.mxu0 %v519
    %1793 = vmatpush.msra.mxu0 %v515
    %1794 = vmatpush.msra.mxu0 %v511
    %1795 = vmatpush.msra.mxu0 %v507
    %1796 = vmatpush.msra.mxu0 %v503
    %1797 = vmatpush.msra.mxu0 %v499
    %1798 = vmatpush.msra.mxu0 %v495
    %1799 = vmatpush.msra.mxu0 %v491
    %1800 = vmatpush.msra.mxu0 %v487
    %1801 = vmatpush.msra.mxu0 %v483
    %1802 = vmatmul.f32.gmra.mxu0 %v1745
    %v1803 = vpop.f32.mrf.mxu0
    %v1804 = vadd.f32 0.0, %v1803
    %1805 = vdwg.mxu0
    %1806 = vmatpush.msra.mxu0 %v544
    %1807 = vmatpush.msra.mxu0 %v540
    %1808 = vmatpush.msra.mxu0 %v536
    %1809 = vmatpush.msra.mxu0 %v532
    %1810 = vmatpush.msra.mxu0 %v528
    %1811 = vmatpush.msra.mxu0 %v524
    %1812 = vmatpush.msra.mxu0 %v520
    %1813 = vmatpush.msra.mxu0 %v516
    %1814 = vmatpush.msra.mxu0 %v512
    %1815 = vmatpush.msra.mxu0 %v508
    %1816 = vmatpush.msra.mxu0 %v504
    %1817 = vmatpush.msra.mxu0 %v500
    %1818 = vmatpush.msra.mxu0 %v496
    %1819 = vmatpush.msra.mxu0 %v492
    %1820 = vmatpush.msra.mxu0 %v488
    %1821 = vmatpush.msra.mxu0 %v484
    %1822 = vmatmul.f32.gmra.mxu0 %v1745
    %v1823 = vpop.f32.mrf.mxu0
    %v1824 = vadd.f32 0.0, %v1823
    %1825 = vdwg.mxu0
    %s1826 = scalar_lea.vmem [#allocation2], 128
    %v1827 = vld [vmem:[%s1826] sm:$0xff]
    %v1828 = vld [vmem:[%s1826 + $0x8] sm:$0xff]
    %v1829 = vld [vmem:[%s1826 + $0x10] sm:$0xff]
    %v1830 = vld [vmem:[%s1826 + $0x18] sm:$0xff]
    %1831 = vmatpush.msra.mxu0 %v690
    %1832 = vmatpush.msra.mxu0 %v686
    %1833 = vmatpush.msra.mxu0 %v682
    %1834 = vmatpush.msra.mxu0 %v678
    %1835 = vmatpush.msra.mxu0 %v674
    %1836 = vmatpush.msra.mxu0 %v670
    %1837 = vmatpush.msra.mxu0 %v666
    %1838 = vmatpush.msra.mxu0 %v662
    %1839 = vmatpush.msra.mxu0 %v658
    %1840 = vmatpush.msra.mxu0 %v654
    %1841 = vmatpush.msra.mxu0 %v650
    %1842 = vmatpush.msra.mxu0 %v646
    %1843 = vmatpush.msra.mxu0 %v642
    %1844 = vmatpush.msra.mxu0 %v638
    %1845 = vmatpush.msra.mxu0 %v634
    %1846 = vmatpush.msra.mxu0 %v630
    %1847 = vmatmul.f32.gmra.mxu0 %v1598
    %v1848 = vpop.f32.mrf.mxu0
    %v1849 = vadd.f32 0.0, %v1848
    %1850 = vdwg.mxu0
    %1851 = vmatpush.msra.mxu0 %v691
    %1852 = vmatpush.msra.mxu0 %v687
    %1853 = vmatpush.msra.mxu0 %v683
    %1854 = vmatpush.msra.mxu0 %v679
    %1855 = vmatpush.msra.mxu0 %v675
    %1856 = vmatpush.msra.mxu0 %v671
    %1857 = vmatpush.msra.mxu0 %v667
    %1858 = vmatpush.msra.mxu0 %v663
    %1859 = vmatpush.msra.mxu0 %v659
    %1860 = vmatpush.msra.mxu0 %v655
    %1861 = vmatpush.msra.mxu0 %v651
    %1862 = vmatpush.msra.mxu0 %v647
    %1863 = vmatpush.msra.mxu0 %v643
    %1864 = vmatpush.msra.mxu0 %v639
    %1865 = vmatpush.msra.mxu0 %v635
    %1866 = vmatpush.msra.mxu0 %v631
    %1867 = vmatmul.f32.gmra.mxu0 %v1598
    %v1868 = vpop.f32.mrf.mxu0
    %v1869 = vadd.f32 0.0, %v1868
    %1870 = vdwg.mxu0
    %1871 = vmatpush.msra.mxu0 %v692
    %1872 = vmatpush.msra.mxu0 %v688
    %1873 = vmatpush.msra.mxu0 %v684
    %1874 = vmatpush.msra.mxu0 %v680
    %1875 = vmatpush.msra.mxu0 %v676
    %1876 = vmatpush.msra.mxu0 %v672
    %1877 = vmatpush.msra.mxu0 %v668
    %1878 = vmatpush.msra.mxu0 %v664
    %1879 = vmatpush.msra.mxu0 %v660
    %1880 = vmatpush.msra.mxu0 %v656
    %1881 = vmatpush.msra.mxu0 %v652
    %1882 = vmatpush.msra.mxu0 %v648
    %1883 = vmatpush.msra.mxu0 %v644
    %1884 = vmatpush.msra.mxu0 %v640
    %1885 = vmatpush.msra.mxu0 %v636
    %1886 = vmatpush.msra.mxu0 %v632
    %1887 = vmatmul.f32.gmra.mxu0 %v1598
    %v1888 = vpop.f32.mrf.mxu0
    %v1889 = vadd.f32 0.0, %v1888
    %1890 = vdwg.mxu0
    %1891 = vmatpush.msra.mxu0 %v693
    %1892 = vmatpush.msra.mxu0 %v689
    %1893 = vmatpush.msra.mxu0 %v685
    %1894 = vmatpush.msra.mxu0 %v681
    %1895 = vmatpush.msra.mxu0 %v677
    %1896 = vmatpush.msra.mxu0 %v673
    %1897 = vmatpush.msra.mxu0 %v669
    %1898 = vmatpush.msra.mxu0 %v665
    %1899 = vmatpush.msra.mxu0 %v661
    %1900 = vmatpush.msra.mxu0 %v657
    %1901 = vmatpush.msra.mxu0 %v653
    %1902 = vmatpush.msra.mxu0 %v649
    %1903 = vmatpush.msra.mxu0 %v645
    %1904 = vmatpush.msra.mxu0 %v641
    %1905 = vmatpush.msra.mxu0 %v637
    %1906 = vmatpush.msra.mxu0 %v633
    %1907 = vmatmul.f32.gmra.mxu0 %v1598
    %v1908 = vpop.f32.mrf.mxu0
    %v1909 = vadd.f32 0.0, %v1908
    %1910 = vdwg.mxu0
    %v1911 = vadd.f32 %v1827, %v1849
    %v1912 = vadd.f32 %v1828, %v1869
    %v1913 = vadd.f32 %v1829, %v1889
    %v1914 = vadd.f32 %v1830, %v1909
    %v1915 = vxor.u32 %v1911, 2147483648
    %v1916 = vxor.u32 %v1912, 2147483648
    %v1917 = vxor.u32 %v1913, 2147483648
    %v1918 = vmul.f32 %v1915, 1.442695
    %v1919 = vpow.pop %v1918
    %v1920 = vmul.f32 %v1916, 1.442695
    %v1921 = vpow.pop %v1920
    %v1922 = vmul.f32 %v1917, 1.442695
    %v1923 = vpow.pop %v1922
    %v1924 = vadd.f32 %v1919, 1.0
    %v1925 = vadd.f32 %v1921, 1.0
    %v1926 = vadd.f32 %v1923, 1.0
    %v1927 = vrcp.pop %v1924
    %v1928 = vmul.f32 %v1924, %v1927
    %v1929 = vsub.f32 1.0, %v1928
    %v1930 = vmul.f32 %v1927, %v1929
    %v1931 = vadd.f32 %v1927, %v1930
    %vm1932 = vweird.f32 %v1924
    %vm1933 = vweird.f32 %v1927
    %vm1934 = vmor %vm1932, %vm1933
    %v1935 = vsel %vm1934, %v1927, %v1931
    %v1936 = vand.u32 2147483647, %v1924
    %vm1937 = vcmp.eq.f32.partialorder %v1936, 8.507059e+37
    %v1938 = vand.u32 %v1924, 2147483648
    %v1939 = vor.u32 1.1754944e-38, %v1938
    %v1940 = vsel %vm1937, %v1939, %v1935
    %v1941 = vmul.f32 1.0, %v1940
    %v1942 = vrcp.pop %v1925
    %v1943 = vmul.f32 %v1925, %v1942
    %v1944 = vsub.f32 1.0, %v1943
    %v1945 = vmul.f32 %v1942, %v1944
    %v1946 = vadd.f32 %v1942, %v1945
    %vm1947 = vweird.f32 %v1925
    %vm1948 = vweird.f32 %v1942
    %vm1949 = vmor %vm1947, %vm1948
    %v1950 = vsel %vm1949, %v1942, %v1946
    %v1951 = vand.u32 2147483647, %v1925
    %vm1952 = vcmp.eq.f32.partialorder %v1951, 8.507059e+37
    %v1953 = vand.u32 %v1925, 2147483648
    %v1954 = vor.u32 1.1754944e-38, %v1953
    %v1955 = vsel %vm1952, %v1954, %v1950
    %v1956 = vmul.f32 1.0, %v1955
    %v1957 = vrcp.pop %v1926
    %v1958 = vmul.f32 %v1926, %v1957
    %v1959 = vsub.f32 1.0, %v1958
    %v1960 = vmul.f32 %v1957, %v1959
    %v1961 = vadd.f32 %v1957, %v1960
    %vm1962 = vweird.f32 %v1926
    %vm1963 = vweird.f32 %v1957
    %vm1964 = vmor %vm1962, %vm1963
    %v1965 = vsel %vm1964, %v1957, %v1961
    %v1966 = vand.u32 2147483647, %v1926
    %vm1967 = vcmp.eq.f32.partialorder %v1966, 8.507059e+37
    %v1968 = vand.u32 %v1926, 2147483648
    %v1969 = vor.u32 1.1754944e-38, %v1968
    %v1970 = vsel %vm1967, %v1969, %v1965
    %v1971 = vmul.f32 1.0, %v1970
    %v1972 = vtanh.pop %v1914
    %v1973 = vmul.f32 %v1956, %v1596
    %v1974 = vmul.f32 %v1941, %v1972
    %v1975 = vadd.f32 %v1973, %v1974
    %v1976 = vtanh.pop %v1975
    %v1977 = vmul.f32 %v1971, %v1976
    %1978 = vmatpush.msra.mxu0 %v365
    %1979 = vmatpush.msra.mxu0 %v361
    %1980 = vmatpush.msra.mxu0 %v357
    %1981 = vmatpush.msra.mxu0 %v353
    %1982 = vmatpush.msra.mxu0 %v349
    %1983 = vmatpush.msra.mxu0 %v345
    %1984 = vmatpush.msra.mxu0 %v341
    %1985 = vmatpush.msra.mxu0 %v337
    %1986 = vmatpush.msra.mxu0 %v333
    %1987 = vmatpush.msra.mxu0 %v329
    %1988 = vmatpush.msra.mxu0 %v325
    %1989 = vmatpush.msra.mxu0 %v321
    %1990 = vmatpush.msra.mxu0 %v317
    %1991 = vmatpush.msra.mxu0 %v313
    %1992 = vmatpush.msra.mxu0 %v309
    %1993 = vmatpush.msra.mxu0 %v305
    %1994 = vmatmul.f32.gmra.mxu0 %v1977
    %v1995 = vpop.f32.mrf.mxu0
    %v1996 = vadd.f32 %v1764, %v1995
    %1997 = vdwg.mxu0
    %1998 = vmatpush.msra.mxu0 %v366
    %1999 = vmatpush.msra.mxu0 %v362
    %2000 = vmatpush.msra.mxu0 %v358
    %2001 = vmatpush.msra.mxu0 %v354
    %2002 = vmatpush.msra.mxu0 %v350
    %2003 = vmatpush.msra.mxu0 %v346
    %2004 = vmatpush.msra.mxu0 %v342
    %2005 = vmatpush.msra.mxu0 %v338
    %2006 = vmatpush.msra.mxu0 %v334
    %2007 = vmatpush.msra.mxu0 %v330
    %2008 = vmatpush.msra.mxu0 %v326
    %2009 = vmatpush.msra.mxu0 %v322
    %2010 = vmatpush.msra.mxu0 %v318
    %2011 = vmatpush.msra.mxu0 %v314
    %2012 = vmatpush.msra.mxu0 %v310
    %2013 = vmatpush.msra.mxu0 %v306
    %2014 = vmatmul.f32.gmra.mxu0 %v1977
    %v2015 = vpop.f32.mrf.mxu0
    %v2016 = vadd.f32 %v1784, %v2015
    %2017 = vdwg.mxu0
    %2018 = vmatpush.msra.mxu0 %v367
    %2019 = vmatpush.msra.mxu0 %v363
    %2020 = vmatpush.msra.mxu0 %v359
    %2021 = vmatpush.msra.mxu0 %v355
    %2022 = vmatpush.msra.mxu0 %v351
    %2023 = vmatpush.msra.mxu0 %v347
    %2024 = vmatpush.msra.mxu0 %v343
    %2025 = vmatpush.msra.mxu0 %v339
    %2026 = vmatpush.msra.mxu0 %v335
    %2027 = vmatpush.msra.mxu0 %v331
    %2028 = vmatpush.msra.mxu0 %v327
    %2029 = vmatpush.msra.mxu0 %v323
    %2030 = vmatpush.msra.mxu0 %v319
    %2031 = vmatpush.msra.mxu0 %v315
    %2032 = vmatpush.msra.mxu0 %v311
    %2033 = vmatpush.msra.mxu0 %v307
    %2034 = vmatmul.f32.gmra.mxu0 %v1977
    %v2035 = vpop.f32.mrf.mxu0
    %v2036 = vadd.f32 %v1804, %v2035
    %2037 = vdwg.mxu0
    %2038 = vmatpush.msra.mxu0 %v368
    %2039 = vmatpush.msra.mxu0 %v364
    %2040 = vmatpush.msra.mxu0 %v360
    %2041 = vmatpush.msra.mxu0 %v356
    %2042 = vmatpush.msra.mxu0 %v352
    %2043 = vmatpush.msra.mxu0 %v348
    %2044 = vmatpush.msra.mxu0 %v344
    %2045 = vmatpush.msra.mxu0 %v340
    %2046 = vmatpush.msra.mxu0 %v336
    %2047 = vmatpush.msra.mxu0 %v332
    %2048 = vmatpush.msra.mxu0 %v328
    %2049 = vmatpush.msra.mxu0 %v324
    %2050 = vmatpush.msra.mxu0 %v320
    %2051 = vmatpush.msra.mxu0 %v316
    %2052 = vmatpush.msra.mxu0 %v312
    %2053 = vmatpush.msra.mxu0 %v308
    %2054 = vmatmul.f32.gmra.mxu0 %v1977
    %v2055 = vpop.f32.mrf.mxu0
    %v2056 = vadd.f32 %v1824, %v2055
    %2057 = vdwg.mxu0
    %v2058 = vadd.f32 %v1996, %v371
    %v2059 = vadd.f32 %v2016, %v372
    %v2060 = vadd.f32 %v2036, %v373
    %v2061 = vadd.f32 %v2056, %v374
    %v2062 = vxor.u32 %v2058, 2147483648
    %v2063 = vxor.u32 %v2059, 2147483648
    %v2064 = vxor.u32 %v2060, 2147483648
    %v2065 = vmul.f32 %v2062, 1.442695
    %v2066 = vpow.pop %v2065
    %v2067 = vmul.f32 %v2063, 1.442695
    %v2068 = vpow.pop %v2067
    %v2069 = vmul.f32 %v2064, 1.442695
    %v2070 = vpow.pop %v2069
    %v2071 = vadd.f32 %v2066, 1.0
    %v2072 = vadd.f32 %v2068, 1.0
    %v2073 = vadd.f32 %v2070, 1.0
    %v2074 = vrcp.pop %v2071
    %v2075 = vmul.f32 %v2071, %v2074
    %v2076 = vsub.f32 1.0, %v2075
    %v2077 = vmul.f32 %v2074, %v2076
    %v2078 = vadd.f32 %v2074, %v2077
    %vm2079 = vweird.f32 %v2071
    %vm2080 = vweird.f32 %v2074
    %vm2081 = vmor %vm2079, %vm2080
    %v2082 = vsel %vm2081, %v2074, %v2078
    %v2083 = vand.u32 2147483647, %v2071
    %vm2084 = vcmp.eq.f32.partialorder %v2083, 8.507059e+37
    %v2085 = vand.u32 %v2071, 2147483648
    %v2086 = vor.u32 1.1754944e-38, %v2085
    %v2087 = vsel %vm2084, %v2086, %v2082
    %v2088 = vmul.f32 1.0, %v2087
    %v2089 = vrcp.pop %v2072
    %v2090 = vmul.f32 %v2072, %v2089
    %v2091 = vsub.f32 1.0, %v2090
    %v2092 = vmul.f32 %v2089, %v2091
    %v2093 = vadd.f32 %v2089, %v2092
    %vm2094 = vweird.f32 %v2072
    %vm2095 = vweird.f32 %v2089
    %vm2096 = vmor %vm2094, %vm2095
    %v2097 = vsel %vm2096, %v2089, %v2093
    %v2098 = vand.u32 2147483647, %v2072
    %vm2099 = vcmp.eq.f32.partialorder %v2098, 8.507059e+37
    %v2100 = vand.u32 %v2072, 2147483648
    %v2101 = vor.u32 1.1754944e-38, %v2100
    %v2102 = vsel %vm2099, %v2101, %v2097
    %v2103 = vmul.f32 1.0, %v2102
    %v2104 = vrcp.pop %v2073
    %v2105 = vmul.f32 %v2073, %v2104
    %v2106 = vsub.f32 1.0, %v2105
    %v2107 = vmul.f32 %v2104, %v2106
    %v2108 = vadd.f32 %v2104, %v2107
    %vm2109 = vweird.f32 %v2073
    %vm2110 = vweird.f32 %v2104
    %vm2111 = vmor %vm2109, %vm2110
    %v2112 = vsel %vm2111, %v2104, %v2108
    %v2113 = vand.u32 2147483647, %v2073
    %vm2114 = vcmp.eq.f32.partialorder %v2113, 8.507059e+37
    %v2115 = vand.u32 %v2073, 2147483648
    %v2116 = vor.u32 1.1754944e-38, %v2115
    %v2117 = vsel %vm2114, %v2116, %v2112
    %v2118 = vmul.f32 1.0, %v2117
    %v2119 = vtanh.pop %v2061
    %v2120 = vmul.f32 %v2103, %v1743
    %v2121 = vmul.f32 %v2088, %v2119
    %v2122 = vadd.f32 %v2120, %v2121
    %v2123 = vtanh.pop %v2122
    %v2124 = vmul.f32 %v2118, %v2123
    %2125 = vmatpush.msra.mxu0 %v541
    %2126 = vmatpush.msra.mxu0 %v537
    %2127 = vmatpush.msra.mxu0 %v533
    %2128 = vmatpush.msra.mxu0 %v529
    %2129 = vmatpush.msra.mxu0 %v525
    %2130 = vmatpush.msra.mxu0 %v521
    %2131 = vmatpush.msra.mxu0 %v517
    %2132 = vmatpush.msra.mxu0 %v513
    %2133 = vmatpush.msra.mxu0 %v509
    %2134 = vmatpush.msra.mxu0 %v505
    %2135 = vmatpush.msra.mxu0 %v501
    %2136 = vmatpush.msra.mxu0 %v497
    %2137 = vmatpush.msra.mxu0 %v493
    %2138 = vmatpush.msra.mxu0 %v489
    %2139 = vmatpush.msra.mxu0 %v485
    %2140 = vmatpush.msra.mxu0 %v481
    %2141 = vmatmul.f32.gmra.mxu0 %v2124
    %v2142 = vpop.f32.mrf.mxu0
    %v2143 = vadd.f32 0.0, %v2142
    %2144 = vdwg.mxu0
    %2145 = vmatpush.msra.mxu0 %v542
    %2146 = vmatpush.msra.mxu0 %v538
    %2147 = vmatpush.msra.mxu0 %v534
    %2148 = vmatpush.msra.mxu0 %v530
    %2149 = vmatpush.msra.mxu0 %v526
    %2150 = vmatpush.msra.mxu0 %v522
    %2151 = vmatpush.msra.mxu0 %v518
    %2152 = vmatpush.msra.mxu0 %v514
    %2153 = vmatpush.msra.mxu0 %v510
    %2154 = vmatpush.msra.mxu0 %v506
    %2155 = vmatpush.msra.mxu0 %v502
    %2156 = vmatpush.msra.mxu0 %v498
    %2157 = vmatpush.msra.mxu0 %v494
    %2158 = vmatpush.msra.mxu0 %v490
    %2159 = vmatpush.msra.mxu0 %v486
    %2160 = vmatpush.msra.mxu0 %v482
    %2161 = vmatmul.f32.gmra.mxu0 %v2124
    %v2162 = vpop.f32.mrf.mxu0
    %v2163 = vadd.f32 0.0, %v2162
    %2164 = vdwg.mxu0
    %2165 = vmatpush.msra.mxu0 %v543
    %2166 = vmatpush.msra.mxu0 %v539
    %2167 = vmatpush.msra.mxu0 %v535
    %2168 = vmatpush.msra.mxu0 %v531
    %2169 = vmatpush.msra.mxu0 %v527
    %2170 = vmatpush.msra.mxu0 %v523
    %2171 = vmatpush.msra.mxu0 %v519
    %2172 = vmatpush.msra.mxu0 %v515
    %2173 = vmatpush.msra.mxu0 %v511
    %2174 = vmatpush.msra.mxu0 %v507
    %2175 = vmatpush.msra.mxu0 %v503
    %2176 = vmatpush.msra.mxu0 %v499
    %2177 = vmatpush.msra.mxu0 %v495
    %2178 = vmatpush.msra.mxu0 %v491
    %2179 = vmatpush.msra.mxu0 %v487
    %2180 = vmatpush.msra.mxu0 %v483
    %2181 = vmatmul.f32.gmra.mxu0 %v2124
    %v2182 = vpop.f32.mrf.mxu0
    %v2183 = vadd.f32 0.0, %v2182
    %2184 = vdwg.mxu0
    %2185 = vmatpush.msra.mxu0 %v544
    %2186 = vmatpush.msra.mxu0 %v540
    %2187 = vmatpush.msra.mxu0 %v536
    %2188 = vmatpush.msra.mxu0 %v532
    %2189 = vmatpush.msra.mxu0 %v528
    %2190 = vmatpush.msra.mxu0 %v524
    %2191 = vmatpush.msra.mxu0 %v520
    %2192 = vmatpush.msra.mxu0 %v516
    %2193 = vmatpush.msra.mxu0 %v512
    %2194 = vmatpush.msra.mxu0 %v508
    %2195 = vmatpush.msra.mxu0 %v504
    %2196 = vmatpush.msra.mxu0 %v500
    %2197 = vmatpush.msra.mxu0 %v496
    %2198 = vmatpush.msra.mxu0 %v492
    %2199 = vmatpush.msra.mxu0 %v488
    %2200 = vmatpush.msra.mxu0 %v484
    %2201 = vmatmul.f32.gmra.mxu0 %v2124
    %v2202 = vpop.f32.mrf.mxu0
    %v2203 = vadd.f32 0.0, %v2202
    %2204 = vdwg.mxu0
    %s2205 = scalar_lea.vmem [#allocation2], 160
    %v2206 = vld [vmem:[%s2205] sm:$0xff]
    %v2207 = vld [vmem:[%s2205 + $0x8] sm:$0xff]
    %v2208 = vld [vmem:[%s2205 + $0x10] sm:$0xff]
    %v2209 = vld [vmem:[%s2205 + $0x18] sm:$0xff]
    %2210 = vmatpush.msra.mxu0 %v690
    %2211 = vmatpush.msra.mxu0 %v686
    %2212 = vmatpush.msra.mxu0 %v682
    %2213 = vmatpush.msra.mxu0 %v678
    %2214 = vmatpush.msra.mxu0 %v674
    %2215 = vmatpush.msra.mxu0 %v670
    %2216 = vmatpush.msra.mxu0 %v666
    %2217 = vmatpush.msra.mxu0 %v662
    %2218 = vmatpush.msra.mxu0 %v658
    %2219 = vmatpush.msra.mxu0 %v654
    %2220 = vmatpush.msra.mxu0 %v650
    %2221 = vmatpush.msra.mxu0 %v646
    %2222 = vmatpush.msra.mxu0 %v642
    %2223 = vmatpush.msra.mxu0 %v638
    %2224 = vmatpush.msra.mxu0 %v634
    %2225 = vmatpush.msra.mxu0 %v630
    %2226 = vmatmul.f32.gmra.mxu0 %v1977
    %v2227 = vpop.f32.mrf.mxu0
    %v2228 = vadd.f32 0.0, %v2227
    %2229 = vdwg.mxu0
    %2230 = vmatpush.msra.mxu0 %v691
    %2231 = vmatpush.msra.mxu0 %v687
    %2232 = vmatpush.msra.mxu0 %v683
    %2233 = vmatpush.msra.mxu0 %v679
    %2234 = vmatpush.msra.mxu0 %v675
    %2235 = vmatpush.msra.mxu0 %v671
    %2236 = vmatpush.msra.mxu0 %v667
    %2237 = vmatpush.msra.mxu0 %v663
    %2238 = vmatpush.msra.mxu0 %v659
    %2239 = vmatpush.msra.mxu0 %v655
    %2240 = vmatpush.msra.mxu0 %v651
    %2241 = vmatpush.msra.mxu0 %v647
    %2242 = vmatpush.msra.mxu0 %v643
    %2243 = vmatpush.msra.mxu0 %v639
    %2244 = vmatpush.msra.mxu0 %v635
    %2245 = vmatpush.msra.mxu0 %v631
    %2246 = vmatmul.f32.gmra.mxu0 %v1977
    %v2247 = vpop.f32.mrf.mxu0
    %v2248 = vadd.f32 0.0, %v2247
    %2249 = vdwg.mxu0
    %2250 = vmatpush.msra.mxu0 %v692
    %2251 = vmatpush.msra.mxu0 %v688
    %2252 = vmatpush.msra.mxu0 %v684
    %2253 = vmatpush.msra.mxu0 %v680
    %2254 = vmatpush.msra.mxu0 %v676
    %2255 = vmatpush.msra.mxu0 %v672
    %2256 = vmatpush.msra.mxu0 %v668
    %2257 = vmatpush.msra.mxu0 %v664
    %2258 = vmatpush.msra.mxu0 %v660
    %2259 = vmatpush.msra.mxu0 %v656
    %2260 = vmatpush.msra.mxu0 %v652
    %2261 = vmatpush.msra.mxu0 %v648
    %2262 = vmatpush.msra.mxu0 %v644
    %2263 = vmatpush.msra.mxu0 %v640
    %2264 = vmatpush.msra.mxu0 %v636
    %2265 = vmatpush.msra.mxu0 %v632
    %2266 = vmatmul.f32.gmra.mxu0 %v1977
    %v2267 = vpop.f32.mrf.mxu0
    %v2268 = vadd.f32 0.0, %v2267
    %2269 = vdwg.mxu0
    %2270 = vmatpush.msra.mxu0 %v693
    %2271 = vmatpush.msra.mxu0 %v689
    %2272 = vmatpush.msra.mxu0 %v685
    %2273 = vmatpush.msra.mxu0 %v681
    %2274 = vmatpush.msra.mxu0 %v677
    %2275 = vmatpush.msra.mxu0 %v673
    %2276 = vmatpush.msra.mxu0 %v669
    %2277 = vmatpush.msra.mxu0 %v665
    %2278 = vmatpush.msra.mxu0 %v661
    %2279 = vmatpush.msra.mxu0 %v657
    %2280 = vmatpush.msra.mxu0 %v653
    %2281 = vmatpush.msra.mxu0 %v649
    %2282 = vmatpush.msra.mxu0 %v645
    %2283 = vmatpush.msra.mxu0 %v641
    %2284 = vmatpush.msra.mxu0 %v637
    %2285 = vmatpush.msra.mxu0 %v633
    %2286 = vmatmul.f32.gmra.mxu0 %v1977
    %v2287 = vpop.f32.mrf.mxu0
    %v2288 = vadd.f32 0.0, %v2287
    %2289 = vdwg.mxu0
    %v2290 = vadd.f32 %v2206, %v2228
    %v2291 = vadd.f32 %v2207, %v2248
    %v2292 = vadd.f32 %v2208, %v2268
    %v2293 = vadd.f32 %v2209, %v2288
    %v2294 = vxor.u32 %v2290, 2147483648
    %v2295 = vxor.u32 %v2291, 2147483648
    %v2296 = vxor.u32 %v2292, 2147483648
    %v2297 = vmul.f32 %v2294, 1.442695
    %v2298 = vpow.pop %v2297
    %v2299 = vmul.f32 %v2295, 1.442695
    %v2300 = vpow.pop %v2299
    %v2301 = vmul.f32 %v2296, 1.442695
    %v2302 = vpow.pop %v2301
    %v2303 = vadd.f32 %v2298, 1.0
    %v2304 = vadd.f32 %v2300, 1.0
    %v2305 = vadd.f32 %v2302, 1.0
    %v2306 = vrcp.pop %v2303
    %v2307 = vmul.f32 %v2303, %v2306
    %v2308 = vsub.f32 1.0, %v2307
    %v2309 = vmul.f32 %v2306, %v2308
    %v2310 = vadd.f32 %v2306, %v2309
    %vm2311 = vweird.f32 %v2303
    %vm2312 = vweird.f32 %v2306
    %vm2313 = vmor %vm2311, %vm2312
    %v2314 = vsel %vm2313, %v2306, %v2310
    %v2315 = vand.u32 2147483647, %v2303
    %vm2316 = vcmp.eq.f32.partialorder %v2315, 8.507059e+37
    %v2317 = vand.u32 %v2303, 2147483648
    %v2318 = vor.u32 1.1754944e-38, %v2317
    %v2319 = vsel %vm2316, %v2318, %v2314
    %v2320 = vmul.f32 1.0, %v2319
    %v2321 = vrcp.pop %v2304
    %v2322 = vmul.f32 %v2304, %v2321
    %v2323 = vsub.f32 1.0, %v2322
    %v2324 = vmul.f32 %v2321, %v2323
    %v2325 = vadd.f32 %v2321, %v2324
    %vm2326 = vweird.f32 %v2304
    %vm2327 = vweird.f32 %v2321
    %vm2328 = vmor %vm2326, %vm2327
    %v2329 = vsel %vm2328, %v2321, %v2325
    %v2330 = vand.u32 2147483647, %v2304
    %vm2331 = vcmp.eq.f32.partialorder %v2330, 8.507059e+37
    %v2332 = vand.u32 %v2304, 2147483648
    %v2333 = vor.u32 1.1754944e-38, %v2332
    %v2334 = vsel %vm2331, %v2333, %v2329
    %v2335 = vmul.f32 1.0, %v2334
    %v2336 = vrcp.pop %v2305
    %v2337 = vmul.f32 %v2305, %v2336
    %v2338 = vsub.f32 1.0, %v2337
    %v2339 = vmul.f32 %v2336, %v2338
    %v2340 = vadd.f32 %v2336, %v2339
    %vm2341 = vweird.f32 %v2305
    %vm2342 = vweird.f32 %v2336
    %vm2343 = vmor %vm2341, %vm2342
    %v2344 = vsel %vm2343, %v2336, %v2340
    %v2345 = vand.u32 2147483647, %v2305
    %vm2346 = vcmp.eq.f32.partialorder %v2345, 8.507059e+37
    %v2347 = vand.u32 %v2305, 2147483648
    %v2348 = vor.u32 1.1754944e-38, %v2347
    %v2349 = vsel %vm2346, %v2348, %v2344
    %v2350 = vmul.f32 1.0, %v2349
    %v2351 = vtanh.pop %v2293
    %v2352 = vmul.f32 %v2335, %v1975
    %v2353 = vmul.f32 %v2320, %v2351
    %v2354 = vadd.f32 %v2352, %v2353
    %v2355 = vtanh.pop %v2354
    %v2356 = vmul.f32 %v2350, %v2355
    %2357 = vmatpush.msra.mxu0 %v365
    %2358 = vmatpush.msra.mxu0 %v361
    %2359 = vmatpush.msra.mxu0 %v357
    %2360 = vmatpush.msra.mxu0 %v353
    %2361 = vmatpush.msra.mxu0 %v349
    %2362 = vmatpush.msra.mxu0 %v345
    %2363 = vmatpush.msra.mxu0 %v341
    %2364 = vmatpush.msra.mxu0 %v337
    %2365 = vmatpush.msra.mxu0 %v333
    %2366 = vmatpush.msra.mxu0 %v329
    %2367 = vmatpush.msra.mxu0 %v325
    %2368 = vmatpush.msra.mxu0 %v321
    %2369 = vmatpush.msra.mxu0 %v317
    %2370 = vmatpush.msra.mxu0 %v313
    %2371 = vmatpush.msra.mxu0 %v309
    %2372 = vmatpush.msra.mxu0 %v305
    %2373 = vmatmul.f32.gmra.mxu0 %v2356
    %v2374 = vpop.f32.mrf.mxu0
    %v2375 = vadd.f32 %v2143, %v2374
    %2376 = vdwg.mxu0
    %2377 = vmatpush.msra.mxu0 %v366
    %2378 = vmatpush.msra.mxu0 %v362
    %2379 = vmatpush.msra.mxu0 %v358
    %2380 = vmatpush.msra.mxu0 %v354
    %2381 = vmatpush.msra.mxu0 %v350
    %2382 = vmatpush.msra.mxu0 %v346
    %2383 = vmatpush.msra.mxu0 %v342
    %2384 = vmatpush.msra.mxu0 %v338
    %2385 = vmatpush.msra.mxu0 %v334
    %2386 = vmatpush.msra.mxu0 %v330
    %2387 = vmatpush.msra.mxu0 %v326
    %2388 = vmatpush.msra.mxu0 %v322
    %2389 = vmatpush.msra.mxu0 %v318
    %2390 = vmatpush.msra.mxu0 %v314
    %2391 = vmatpush.msra.mxu0 %v310
    %2392 = vmatpush.msra.mxu0 %v306
    %2393 = vmatmul.f32.gmra.mxu0 %v2356
    %v2394 = vpop.f32.mrf.mxu0
    %v2395 = vadd.f32 %v2163, %v2394
    %2396 = vdwg.mxu0
    %2397 = vmatpush.msra.mxu0 %v367
    %2398 = vmatpush.msra.mxu0 %v363
    %2399 = vmatpush.msra.mxu0 %v359
    %2400 = vmatpush.msra.mxu0 %v355
    %2401 = vmatpush.msra.mxu0 %v351
    %2402 = vmatpush.msra.mxu0 %v347
    %2403 = vmatpush.msra.mxu0 %v343
    %2404 = vmatpush.msra.mxu0 %v339
    %2405 = vmatpush.msra.mxu0 %v335
    %2406 = vmatpush.msra.mxu0 %v331
    %2407 = vmatpush.msra.mxu0 %v327
    %2408 = vmatpush.msra.mxu0 %v323
    %2409 = vmatpush.msra.mxu0 %v319
    %2410 = vmatpush.msra.mxu0 %v315
    %2411 = vmatpush.msra.mxu0 %v311
    %2412 = vmatpush.msra.mxu0 %v307
    %2413 = vmatmul.f32.gmra.mxu0 %v2356
    %v2414 = vpop.f32.mrf.mxu0
    %v2415 = vadd.f32 %v2183, %v2414
    %2416 = vdwg.mxu0
    %2417 = vmatpush.msra.mxu0 %v368
    %2418 = vmatpush.msra.mxu0 %v364
    %2419 = vmatpush.msra.mxu0 %v360
    %2420 = vmatpush.msra.mxu0 %v356
    %2421 = vmatpush.msra.mxu0 %v352
    %2422 = vmatpush.msra.mxu0 %v348
    %2423 = vmatpush.msra.mxu0 %v344
    %2424 = vmatpush.msra.mxu0 %v340
    %2425 = vmatpush.msra.mxu0 %v336
    %2426 = vmatpush.msra.mxu0 %v332
    %2427 = vmatpush.msra.mxu0 %v328
    %2428 = vmatpush.msra.mxu0 %v324
    %2429 = vmatpush.msra.mxu0 %v320
    %2430 = vmatpush.msra.mxu0 %v316
    %2431 = vmatpush.msra.mxu0 %v312
    %2432 = vmatpush.msra.mxu0 %v308
    %2433 = vmatmul.f32.gmra.mxu0 %v2356
    %v2434 = vpop.f32.mrf.mxu0
    %v2435 = vadd.f32 %v2203, %v2434
    %2436 = vdwg.mxu0
    %v2437 = vadd.f32 %v2375, %v371
    %v2438 = vadd.f32 %v2395, %v372
    %v2439 = vadd.f32 %v2415, %v373
    %v2440 = vadd.f32 %v2435, %v374
    %v2441 = vxor.u32 %v2437, 2147483648
    %v2442 = vxor.u32 %v2438, 2147483648
    %v2443 = vxor.u32 %v2439, 2147483648
    %v2444 = vmul.f32 %v2441, 1.442695
    %v2445 = vpow.pop %v2444
    %v2446 = vmul.f32 %v2442, 1.442695
    %v2447 = vpow.pop %v2446
    %v2448 = vmul.f32 %v2443, 1.442695
    %v2449 = vpow.pop %v2448
    %v2450 = vadd.f32 %v2445, 1.0
    %v2451 = vadd.f32 %v2447, 1.0
    %v2452 = vadd.f32 %v2449, 1.0
    %v2453 = vrcp.pop %v2450
    %v2454 = vmul.f32 %v2450, %v2453
    %v2455 = vsub.f32 1.0, %v2454
    %v2456 = vmul.f32 %v2453, %v2455
    %v2457 = vadd.f32 %v2453, %v2456
    %vm2458 = vweird.f32 %v2450
    %vm2459 = vweird.f32 %v2453
    %vm2460 = vmor %vm2458, %vm2459
    %v2461 = vsel %vm2460, %v2453, %v2457
    %v2462 = vand.u32 2147483647, %v2450
    %vm2463 = vcmp.eq.f32.partialorder %v2462, 8.507059e+37
    %v2464 = vand.u32 %v2450, 2147483648
    %v2465 = vor.u32 1.1754944e-38, %v2464
    %v2466 = vsel %vm2463, %v2465, %v2461
    %v2467 = vmul.f32 1.0, %v2466
    %v2468 = vrcp.pop %v2451
    %v2469 = vmul.f32 %v2451, %v2468
    %v2470 = vsub.f32 1.0, %v2469
    %v2471 = vmul.f32 %v2468, %v2470
    %v2472 = vadd.f32 %v2468, %v2471
    %vm2473 = vweird.f32 %v2451
    %vm2474 = vweird.f32 %v2468
    %vm2475 = vmor %vm2473, %vm2474
    %v2476 = vsel %vm2475, %v2468, %v2472
    %v2477 = vand.u32 2147483647, %v2451
    %vm2478 = vcmp.eq.f32.partialorder %v2477, 8.507059e+37
    %v2479 = vand.u32 %v2451, 2147483648
    %v2480 = vor.u32 1.1754944e-38, %v2479
    %v2481 = vsel %vm2478, %v2480, %v2476
    %v2482 = vmul.f32 1.0, %v2481
    %v2483 = vrcp.pop %v2452
    %v2484 = vmul.f32 %v2452, %v2483
    %v2485 = vsub.f32 1.0, %v2484
    %v2486 = vmul.f32 %v2483, %v2485
    %v2487 = vadd.f32 %v2483, %v2486
    %vm2488 = vweird.f32 %v2452
    %vm2489 = vweird.f32 %v2483
    %vm2490 = vmor %vm2488, %vm2489
    %v2491 = vsel %vm2490, %v2483, %v2487
    %v2492 = vand.u32 2147483647, %v2452
    %vm2493 = vcmp.eq.f32.partialorder %v2492, 8.507059e+37
    %v2494 = vand.u32 %v2452, 2147483648
    %v2495 = vor.u32 1.1754944e-38, %v2494
    %v2496 = vsel %vm2493, %v2495, %v2491
    %v2497 = vmul.f32 1.0, %v2496
    %v2498 = vtanh.pop %v2440
    %v2499 = vmul.f32 %v2482, %v2122
    %v2500 = vmul.f32 %v2467, %v2498
    %v2501 = vadd.f32 %v2499, %v2500
    %v2502 = vtanh.pop %v2501
    %v2503 = vmul.f32 %v2497, %v2502
    %2504 = vmatpush.msra.mxu0 %v541
    %2505 = vmatpush.msra.mxu0 %v537
    %2506 = vmatpush.msra.mxu0 %v533
    %2507 = vmatpush.msra.mxu0 %v529
    %2508 = vmatpush.msra.mxu0 %v525
    %2509 = vmatpush.msra.mxu0 %v521
    %2510 = vmatpush.msra.mxu0 %v517
    %2511 = vmatpush.msra.mxu0 %v513
    %2512 = vmatpush.msra.mxu0 %v509
    %2513 = vmatpush.msra.mxu0 %v505
    %2514 = vmatpush.msra.mxu0 %v501
    %2515 = vmatpush.msra.mxu0 %v497
    %2516 = vmatpush.msra.mxu0 %v493
    %2517 = vmatpush.msra.mxu0 %v489
    %2518 = vmatpush.msra.mxu0 %v485
    %2519 = vmatpush.msra.mxu0 %v481
    %2520 = vmatmul.f32.gmra.mxu0 %v2503
    %v2521 = vpop.f32.mrf.mxu0
    %v2522 = vadd.f32 0.0, %v2521
    %2523 = vdwg.mxu0
    %2524 = vmatpush.msra.mxu0 %v542
    %2525 = vmatpush.msra.mxu0 %v538
    %2526 = vmatpush.msra.mxu0 %v534
    %2527 = vmatpush.msra.mxu0 %v530
    %2528 = vmatpush.msra.mxu0 %v526
    %2529 = vmatpush.msra.mxu0 %v522
    %2530 = vmatpush.msra.mxu0 %v518
    %2531 = vmatpush.msra.mxu0 %v514
    %2532 = vmatpush.msra.mxu0 %v510
    %2533 = vmatpush.msra.mxu0 %v506
    %2534 = vmatpush.msra.mxu0 %v502
    %2535 = vmatpush.msra.mxu0 %v498
    %2536 = vmatpush.msra.mxu0 %v494
    %2537 = vmatpush.msra.mxu0 %v490
    %2538 = vmatpush.msra.mxu0 %v486
    %2539 = vmatpush.msra.mxu0 %v482
    %2540 = vmatmul.f32.gmra.mxu0 %v2503
    %v2541 = vpop.f32.mrf.mxu0
    %v2542 = vadd.f32 0.0, %v2541
    %2543 = vdwg.mxu0
    %2544 = vmatpush.msra.mxu0 %v543
    %2545 = vmatpush.msra.mxu0 %v539
    %2546 = vmatpush.msra.mxu0 %v535
    %2547 = vmatpush.msra.mxu0 %v531
    %2548 = vmatpush.msra.mxu0 %v527
    %2549 = vmatpush.msra.mxu0 %v523
    %2550 = vmatpush.msra.mxu0 %v519
    %2551 = vmatpush.msra.mxu0 %v515
    %2552 = vmatpush.msra.mxu0 %v511
    %2553 = vmatpush.msra.mxu0 %v507
    %2554 = vmatpush.msra.mxu0 %v503
    %2555 = vmatpush.msra.mxu0 %v499
    %2556 = vmatpush.msra.mxu0 %v495
    %2557 = vmatpush.msra.mxu0 %v491
    %2558 = vmatpush.msra.mxu0 %v487
    %2559 = vmatpush.msra.mxu0 %v483
    %2560 = vmatmul.f32.gmra.mxu0 %v2503
    %v2561 = vpop.f32.mrf.mxu0
    %v2562 = vadd.f32 0.0, %v2561
    %2563 = vdwg.mxu0
    %2564 = vmatpush.msra.mxu0 %v544
    %2565 = vmatpush.msra.mxu0 %v540
    %2566 = vmatpush.msra.mxu0 %v536
    %2567 = vmatpush.msra.mxu0 %v532
    %2568 = vmatpush.msra.mxu0 %v528
    %2569 = vmatpush.msra.mxu0 %v524
    %2570 = vmatpush.msra.mxu0 %v520
    %2571 = vmatpush.msra.mxu0 %v516
    %2572 = vmatpush.msra.mxu0 %v512
    %2573 = vmatpush.msra.mxu0 %v508
    %2574 = vmatpush.msra.mxu0 %v504
    %2575 = vmatpush.msra.mxu0 %v500
    %2576 = vmatpush.msra.mxu0 %v496
    %2577 = vmatpush.msra.mxu0 %v492
    %2578 = vmatpush.msra.mxu0 %v488
    %2579 = vmatpush.msra.mxu0 %v484
    %2580 = vmatmul.f32.gmra.mxu0 %v2503
    %v2581 = vpop.f32.mrf.mxu0
    %v2582 = vadd.f32 0.0, %v2581
    %2583 = vdwg.mxu0
    %s2584 = scalar_lea.vmem [#allocation2], 192
    %v2585 = vld [vmem:[%s2584] sm:$0xff]
    %v2586 = vld [vmem:[%s2584 + $0x8] sm:$0xff]
    %v2587 = vld [vmem:[%s2584 + $0x10] sm:$0xff]
    %v2588 = vld [vmem:[%s2584 + $0x18] sm:$0xff]
    %2589 = vmatpush.msra.mxu0 %v690
    %2590 = vmatpush.msra.mxu0 %v686
    %2591 = vmatpush.msra.mxu0 %v682
    %2592 = vmatpush.msra.mxu0 %v678
    %2593 = vmatpush.msra.mxu0 %v674
    %2594 = vmatpush.msra.mxu0 %v670
    %2595 = vmatpush.msra.mxu0 %v666
    %2596 = vmatpush.msra.mxu0 %v662
    %2597 = vmatpush.msra.mxu0 %v658
    %2598 = vmatpush.msra.mxu0 %v654
    %2599 = vmatpush.msra.mxu0 %v650
    %2600 = vmatpush.msra.mxu0 %v646
    %2601 = vmatpush.msra.mxu0 %v642
    %2602 = vmatpush.msra.mxu0 %v638
    %2603 = vmatpush.msra.mxu0 %v634
    %2604 = vmatpush.msra.mxu0 %v630
    %2605 = vmatmul.f32.gmra.mxu0 %v2356
    %v2606 = vpop.f32.mrf.mxu0
    %v2607 = vadd.f32 0.0, %v2606
    %2608 = vdwg.mxu0
    %2609 = vmatpush.msra.mxu0 %v691
    %2610 = vmatpush.msra.mxu0 %v687
    %2611 = vmatpush.msra.mxu0 %v683
    %2612 = vmatpush.msra.mxu0 %v679
    %2613 = vmatpush.msra.mxu0 %v675
    %2614 = vmatpush.msra.mxu0 %v671
    %2615 = vmatpush.msra.mxu0 %v667
    %2616 = vmatpush.msra.mxu0 %v663
    %2617 = vmatpush.msra.mxu0 %v659
    %2618 = vmatpush.msra.mxu0 %v655
    %2619 = vmatpush.msra.mxu0 %v651
    %2620 = vmatpush.msra.mxu0 %v647
    %2621 = vmatpush.msra.mxu0 %v643
    %2622 = vmatpush.msra.mxu0 %v639
    %2623 = vmatpush.msra.mxu0 %v635
    %2624 = vmatpush.msra.mxu0 %v631
    %2625 = vmatmul.f32.gmra.mxu0 %v2356
    %v2626 = vpop.f32.mrf.mxu0
    %v2627 = vadd.f32 0.0, %v2626
    %2628 = vdwg.mxu0
    %2629 = vmatpush.msra.mxu0 %v692
    %2630 = vmatpush.msra.mxu0 %v688
    %2631 = vmatpush.msra.mxu0 %v684
    %2632 = vmatpush.msra.mxu0 %v680
    %2633 = vmatpush.msra.mxu0 %v676
    %2634 = vmatpush.msra.mxu0 %v672
    %2635 = vmatpush.msra.mxu0 %v668
    %2636 = vmatpush.msra.mxu0 %v664
    %2637 = vmatpush.msra.mxu0 %v660
    %2638 = vmatpush.msra.mxu0 %v656
    %2639 = vmatpush.msra.mxu0 %v652
    %2640 = vmatpush.msra.mxu0 %v648
    %2641 = vmatpush.msra.mxu0 %v644
    %2642 = vmatpush.msra.mxu0 %v640
    %2643 = vmatpush.msra.mxu0 %v636
    %2644 = vmatpush.msra.mxu0 %v632
    %2645 = vmatmul.f32.gmra.mxu0 %v2356
    %v2646 = vpop.f32.mrf.mxu0
    %v2647 = vadd.f32 0.0, %v2646
    %2648 = vdwg.mxu0
    %2649 = vmatpush.msra.mxu0 %v693
    %2650 = vmatpush.msra.mxu0 %v689
    %2651 = vmatpush.msra.mxu0 %v685
    %2652 = vmatpush.msra.mxu0 %v681
    %2653 = vmatpush.msra.mxu0 %v677
    %2654 = vmatpush.msra.mxu0 %v673
    %2655 = vmatpush.msra.mxu0 %v669
    %2656 = vmatpush.msra.mxu0 %v665
    %2657 = vmatpush.msra.mxu0 %v661
    %2658 = vmatpush.msra.mxu0 %v657
    %2659 = vmatpush.msra.mxu0 %v653
    %2660 = vmatpush.msra.mxu0 %v649
    %2661 = vmatpush.msra.mxu0 %v645
    %2662 = vmatpush.msra.mxu0 %v641
    %2663 = vmatpush.msra.mxu0 %v637
    %2664 = vmatpush.msra.mxu0 %v633
    %2665 = vmatmul.f32.gmra.mxu0 %v2356
    %v2666 = vpop.f32.mrf.mxu0
    %v2667 = vadd.f32 0.0, %v2666
    %2668 = vdwg.mxu0
    %v2669 = vadd.f32 %v2585, %v2607
    %v2670 = vadd.f32 %v2586, %v2627
    %v2671 = vadd.f32 %v2587, %v2647
    %v2672 = vadd.f32 %v2588, %v2667
    %v2673 = vxor.u32 %v2669, 2147483648
    %v2674 = vxor.u32 %v2670, 2147483648
    %v2675 = vxor.u32 %v2671, 2147483648
    %v2676 = vmul.f32 %v2673, 1.442695
    %v2677 = vpow.pop %v2676
    %v2678 = vmul.f32 %v2674, 1.442695
    %v2679 = vpow.pop %v2678
    %v2680 = vmul.f32 %v2675, 1.442695
    %v2681 = vpow.pop %v2680
    %v2682 = vadd.f32 %v2677, 1.0
    %v2683 = vadd.f32 %v2679, 1.0
    %v2684 = vadd.f32 %v2681, 1.0
    %v2685 = vrcp.pop %v2682
    %v2686 = vmul.f32 %v2682, %v2685
    %v2687 = vsub.f32 1.0, %v2686
    %v2688 = vmul.f32 %v2685, %v2687
    %v2689 = vadd.f32 %v2685, %v2688
    %vm2690 = vweird.f32 %v2682
    %vm2691 = vweird.f32 %v2685
    %vm2692 = vmor %vm2690, %vm2691
    %v2693 = vsel %vm2692, %v2685, %v2689
    %v2694 = vand.u32 2147483647, %v2682
    %vm2695 = vcmp.eq.f32.partialorder %v2694, 8.507059e+37
    %v2696 = vand.u32 %v2682, 2147483648
    %v2697 = vor.u32 1.1754944e-38, %v2696
    %v2698 = vsel %vm2695, %v2697, %v2693
    %v2699 = vmul.f32 1.0, %v2698
    %v2700 = vrcp.pop %v2683
    %v2701 = vmul.f32 %v2683, %v2700
    %v2702 = vsub.f32 1.0, %v2701
    %v2703 = vmul.f32 %v2700, %v2702
    %v2704 = vadd.f32 %v2700, %v2703
    %vm2705 = vweird.f32 %v2683
    %vm2706 = vweird.f32 %v2700
    %vm2707 = vmor %vm2705, %vm2706
    %v2708 = vsel %vm2707, %v2700, %v2704
    %v2709 = vand.u32 2147483647, %v2683
    %vm2710 = vcmp.eq.f32.partialorder %v2709, 8.507059e+37
    %v2711 = vand.u32 %v2683, 2147483648
    %v2712 = vor.u32 1.1754944e-38, %v2711
    %v2713 = vsel %vm2710, %v2712, %v2708
    %v2714 = vmul.f32 1.0, %v2713
    %v2715 = vrcp.pop %v2684
    %v2716 = vmul.f32 %v2684, %v2715
    %v2717 = vsub.f32 1.0, %v2716
    %v2718 = vmul.f32 %v2715, %v2717
    %v2719 = vadd.f32 %v2715, %v2718
    %vm2720 = vweird.f32 %v2684
    %vm2721 = vweird.f32 %v2715
    %vm2722 = vmor %vm2720, %vm2721
    %v2723 = vsel %vm2722, %v2715, %v2719
    %v2724 = vand.u32 2147483647, %v2684
    %vm2725 = vcmp.eq.f32.partialorder %v2724, 8.507059e+37
    %v2726 = vand.u32 %v2684, 2147483648
    %v2727 = vor.u32 1.1754944e-38, %v2726
    %v2728 = vsel %vm2725, %v2727, %v2723
    %v2729 = vmul.f32 1.0, %v2728
    %v2730 = vtanh.pop %v2672
    %v2731 = vmul.f32 %v2714, %v2354
    %v2732 = vmul.f32 %v2699, %v2730
    %v2733 = vadd.f32 %v2731, %v2732
    %v2734 = vtanh.pop %v2733
    %v2735 = vmul.f32 %v2729, %v2734
    %2736 = vmatpush.msra.mxu0 %v365
    %2737 = vmatpush.msra.mxu0 %v361
    %2738 = vmatpush.msra.mxu0 %v357
    %2739 = vmatpush.msra.mxu0 %v353
    %2740 = vmatpush.msra.mxu0 %v349
    %2741 = vmatpush.msra.mxu0 %v345
    %2742 = vmatpush.msra.mxu0 %v341
    %2743 = vmatpush.msra.mxu0 %v337
    %2744 = vmatpush.msra.mxu0 %v333
    %2745 = vmatpush.msra.mxu0 %v329
    %2746 = vmatpush.msra.mxu0 %v325
    %2747 = vmatpush.msra.mxu0 %v321
    %2748 = vmatpush.msra.mxu0 %v317
    %2749 = vmatpush.msra.mxu0 %v313
    %2750 = vmatpush.msra.mxu0 %v309
    %2751 = vmatpush.msra.mxu0 %v305
    %2752 = vmatmul.f32.gmra.mxu0 %v2735
    %v2753 = vpop.f32.mrf.mxu0
    %v2754 = vadd.f32 %v2522, %v2753
    %2755 = vdwg.mxu0
    %2756 = vmatpush.msra.mxu0 %v366
    %2757 = vmatpush.msra.mxu0 %v362
    %2758 = vmatpush.msra.mxu0 %v358
    %2759 = vmatpush.msra.mxu0 %v354
    %2760 = vmatpush.msra.mxu0 %v350
    %2761 = vmatpush.msra.mxu0 %v346
    %2762 = vmatpush.msra.mxu0 %v342
    %2763 = vmatpush.msra.mxu0 %v338
    %2764 = vmatpush.msra.mxu0 %v334
    %2765 = vmatpush.msra.mxu0 %v330
    %2766 = vmatpush.msra.mxu0 %v326
    %2767 = vmatpush.msra.mxu0 %v322
    %2768 = vmatpush.msra.mxu0 %v318
    %2769 = vmatpush.msra.mxu0 %v314
    %2770 = vmatpush.msra.mxu0 %v310
    %2771 = vmatpush.msra.mxu0 %v306
    %2772 = vmatmul.f32.gmra.mxu0 %v2735
    %v2773 = vpop.f32.mrf.mxu0
    %v2774 = vadd.f32 %v2542, %v2773
    %2775 = vdwg.mxu0
    %2776 = vmatpush.msra.mxu0 %v367
    %2777 = vmatpush.msra.mxu0 %v363
    %2778 = vmatpush.msra.mxu0 %v359
    %2779 = vmatpush.msra.mxu0 %v355
    %2780 = vmatpush.msra.mxu0 %v351
    %2781 = vmatpush.msra.mxu0 %v347
    %2782 = vmatpush.msra.mxu0 %v343
    %2783 = vmatpush.msra.mxu0 %v339
    %2784 = vmatpush.msra.mxu0 %v335
    %2785 = vmatpush.msra.mxu0 %v331
    %2786 = vmatpush.msra.mxu0 %v327
    %2787 = vmatpush.msra.mxu0 %v323
    %2788 = vmatpush.msra.mxu0 %v319
    %2789 = vmatpush.msra.mxu0 %v315
    %2790 = vmatpush.msra.mxu0 %v311
    %2791 = vmatpush.msra.mxu0 %v307
    %2792 = vmatmul.f32.gmra.mxu0 %v2735
    %v2793 = vpop.f32.mrf.mxu0
    %v2794 = vadd.f32 %v2562, %v2793
    %2795 = vdwg.mxu0
    %2796 = vmatpush.msra.mxu0 %v368
    %2797 = vmatpush.msra.mxu0 %v364
    %2798 = vmatpush.msra.mxu0 %v360
    %2799 = vmatpush.msra.mxu0 %v356
    %2800 = vmatpush.msra.mxu0 %v352
    %2801 = vmatpush.msra.mxu0 %v348
    %2802 = vmatpush.msra.mxu0 %v344
    %2803 = vmatpush.msra.mxu0 %v340
    %2804 = vmatpush.msra.mxu0 %v336
    %2805 = vmatpush.msra.mxu0 %v332
    %2806 = vmatpush.msra.mxu0 %v328
    %2807 = vmatpush.msra.mxu0 %v324
    %2808 = vmatpush.msra.mxu0 %v320
    %2809 = vmatpush.msra.mxu0 %v316
    %2810 = vmatpush.msra.mxu0 %v312
    %2811 = vmatpush.msra.mxu0 %v308
    %2812 = vmatmul.f32.gmra.mxu0 %v2735
    %v2813 = vpop.f32.mrf.mxu0
    %v2814 = vadd.f32 %v2582, %v2813
    %2815 = vdwg.mxu0
    %v2816 = vadd.f32 %v2754, %v371
    %v2817 = vadd.f32 %v2774, %v372
    %v2818 = vadd.f32 %v2794, %v373
    %v2819 = vadd.f32 %v2814, %v374
    %v2820 = vxor.u32 %v2816, 2147483648
    %v2821 = vxor.u32 %v2817, 2147483648
    %v2822 = vxor.u32 %v2818, 2147483648
    %v2823 = vmul.f32 %v2820, 1.442695
    %v2824 = vpow.pop %v2823
    %v2825 = vmul.f32 %v2821, 1.442695
    %v2826 = vpow.pop %v2825
    %v2827 = vmul.f32 %v2822, 1.442695
    %v2828 = vpow.pop %v2827
    %v2829 = vadd.f32 %v2824, 1.0
    %v2830 = vadd.f32 %v2826, 1.0
    %v2831 = vadd.f32 %v2828, 1.0
    %v2832 = vrcp.pop %v2829
    %v2833 = vmul.f32 %v2829, %v2832
    %v2834 = vsub.f32 1.0, %v2833
    %v2835 = vmul.f32 %v2832, %v2834
    %v2836 = vadd.f32 %v2832, %v2835
    %vm2837 = vweird.f32 %v2829
    %vm2838 = vweird.f32 %v2832
    %vm2839 = vmor %vm2837, %vm2838
    %v2840 = vsel %vm2839, %v2832, %v2836
    %v2841 = vand.u32 2147483647, %v2829
    %vm2842 = vcmp.eq.f32.partialorder %v2841, 8.507059e+37
    %v2843 = vand.u32 %v2829, 2147483648
    %v2844 = vor.u32 1.1754944e-38, %v2843
    %v2845 = vsel %vm2842, %v2844, %v2840
    %v2846 = vmul.f32 1.0, %v2845
    %v2847 = vrcp.pop %v2830
    %v2848 = vmul.f32 %v2830, %v2847
    %v2849 = vsub.f32 1.0, %v2848
    %v2850 = vmul.f32 %v2847, %v2849
    %v2851 = vadd.f32 %v2847, %v2850
    %vm2852 = vweird.f32 %v2830
    %vm2853 = vweird.f32 %v2847
    %vm2854 = vmor %vm2852, %vm2853
    %v2855 = vsel %vm2854, %v2847, %v2851
    %v2856 = vand.u32 2147483647, %v2830
    %vm2857 = vcmp.eq.f32.partialorder %v2856, 8.507059e+37
    %v2858 = vand.u32 %v2830, 2147483648
    %v2859 = vor.u32 1.1754944e-38, %v2858
    %v2860 = vsel %vm2857, %v2859, %v2855
    %v2861 = vmul.f32 1.0, %v2860
    %v2862 = vrcp.pop %v2831
    %v2863 = vmul.f32 %v2831, %v2862
    %v2864 = vsub.f32 1.0, %v2863
    %v2865 = vmul.f32 %v2862, %v2864
    %v2866 = vadd.f32 %v2862, %v2865
    %vm2867 = vweird.f32 %v2831
    %vm2868 = vweird.f32 %v2862
    %vm2869 = vmor %vm2867, %vm2868
    %v2870 = vsel %vm2869, %v2862, %v2866
    %v2871 = vand.u32 2147483647, %v2831
    %vm2872 = vcmp.eq.f32.partialorder %v2871, 8.507059e+37
    %v2873 = vand.u32 %v2831, 2147483648
    %v2874 = vor.u32 1.1754944e-38, %v2873
    %v2875 = vsel %vm2872, %v2874, %v2870
    %v2876 = vmul.f32 1.0, %v2875
    %v2877 = vtanh.pop %v2819
    %v2878 = vmul.f32 %v2861, %v2501
    %v2879 = vmul.f32 %v2846, %v2877
    %v2880 = vadd.f32 %v2878, %v2879
    %v2881 = vtanh.pop %v2880
    %v2882 = vmul.f32 %v2876, %v2881
    %2883 = vmatpush.msra.mxu0 %v541
    %2884 = vmatpush.msra.mxu0 %v537
    %2885 = vmatpush.msra.mxu0 %v533
    %2886 = vmatpush.msra.mxu0 %v529
    %2887 = vmatpush.msra.mxu0 %v525
    %2888 = vmatpush.msra.mxu0 %v521
    %2889 = vmatpush.msra.mxu0 %v517
    %2890 = vmatpush.msra.mxu0 %v513
    %2891 = vmatpush.msra.mxu0 %v509
    %2892 = vmatpush.msra.mxu0 %v505
    %2893 = vmatpush.msra.mxu0 %v501
    %2894 = vmatpush.msra.mxu0 %v497
    %2895 = vmatpush.msra.mxu0 %v493
    %2896 = vmatpush.msra.mxu0 %v489
    %2897 = vmatpush.msra.mxu0 %v485
    %2898 = vmatpush.msra.mxu0 %v481
    %2899 = vmatmul.f32.gmra.mxu0 %v2882
    %v2900 = vpop.f32.mrf.mxu0
    %v2901 = vadd.f32 0.0, %v2900
    %2902 = vdwg.mxu0
    %2903 = vmatpush.msra.mxu0 %v542
    %2904 = vmatpush.msra.mxu0 %v538
    %2905 = vmatpush.msra.mxu0 %v534
    %2906 = vmatpush.msra.mxu0 %v530
    %2907 = vmatpush.msra.mxu0 %v526
    %2908 = vmatpush.msra.mxu0 %v522
    %2909 = vmatpush.msra.mxu0 %v518
    %2910 = vmatpush.msra.mxu0 %v514
    %2911 = vmatpush.msra.mxu0 %v510
    %2912 = vmatpush.msra.mxu0 %v506
    %2913 = vmatpush.msra.mxu0 %v502
    %2914 = vmatpush.msra.mxu0 %v498
    %2915 = vmatpush.msra.mxu0 %v494
    %2916 = vmatpush.msra.mxu0 %v490
    %2917 = vmatpush.msra.mxu0 %v486
    %2918 = vmatpush.msra.mxu0 %v482
    %2919 = vmatmul.f32.gmra.mxu0 %v2882
    %v2920 = vpop.f32.mrf.mxu0
    %v2921 = vadd.f32 0.0, %v2920
    %2922 = vdwg.mxu0
    %2923 = vmatpush.msra.mxu0 %v543
    %2924 = vmatpush.msra.mxu0 %v539
    %2925 = vmatpush.msra.mxu0 %v535
    %2926 = vmatpush.msra.mxu0 %v531
    %2927 = vmatpush.msra.mxu0 %v527
    %2928 = vmatpush.msra.mxu0 %v523
    %2929 = vmatpush.msra.mxu0 %v519
    %2930 = vmatpush.msra.mxu0 %v515
    %2931 = vmatpush.msra.mxu0 %v511
    %2932 = vmatpush.msra.mxu0 %v507
    %2933 = vmatpush.msra.mxu0 %v503
    %2934 = vmatpush.msra.mxu0 %v499
    %2935 = vmatpush.msra.mxu0 %v495
    %2936 = vmatpush.msra.mxu0 %v491
    %2937 = vmatpush.msra.mxu0 %v487
    %2938 = vmatpush.msra.mxu0 %v483
    %2939 = vmatmul.f32.gmra.mxu0 %v2882
    %v2940 = vpop.f32.mrf.mxu0
    %v2941 = vadd.f32 0.0, %v2940
    %2942 = vdwg.mxu0
    %2943 = vmatpush.msra.mxu0 %v544
    %2944 = vmatpush.msra.mxu0 %v540
    %2945 = vmatpush.msra.mxu0 %v536
    %2946 = vmatpush.msra.mxu0 %v532
    %2947 = vmatpush.msra.mxu0 %v528
    %2948 = vmatpush.msra.mxu0 %v524
    %2949 = vmatpush.msra.mxu0 %v520
    %2950 = vmatpush.msra.mxu0 %v516
    %2951 = vmatpush.msra.mxu0 %v512
    %2952 = vmatpush.msra.mxu0 %v508
    %2953 = vmatpush.msra.mxu0 %v504
    %2954 = vmatpush.msra.mxu0 %v500
    %2955 = vmatpush.msra.mxu0 %v496
    %2956 = vmatpush.msra.mxu0 %v492
    %2957 = vmatpush.msra.mxu0 %v488
    %2958 = vmatpush.msra.mxu0 %v484
    %2959 = vmatmul.f32.gmra.mxu0 %v2882
    %v2960 = vpop.f32.mrf.mxu0
    %v2961 = vadd.f32 0.0, %v2960
    %2962 = vdwg.mxu0
    %s2963 = scalar_lea.vmem [#allocation2], 224
    %v2964 = vld [vmem:[%s2963] sm:$0xff]
    %v2965 = vld [vmem:[%s2963 + $0x8] sm:$0xff]
    %v2966 = vld [vmem:[%s2963 + $0x10] sm:$0xff]
    %v2967 = vld [vmem:[%s2963 + $0x18] sm:$0xff]
    %2968 = vmatpush.msra.mxu0 %v690
    %2969 = vmatpush.msra.mxu0 %v686
    %2970 = vmatpush.msra.mxu0 %v682
    %2971 = vmatpush.msra.mxu0 %v678
    %2972 = vmatpush.msra.mxu0 %v674
    %2973 = vmatpush.msra.mxu0 %v670
    %2974 = vmatpush.msra.mxu0 %v666
    %2975 = vmatpush.msra.mxu0 %v662
    %2976 = vmatpush.msra.mxu0 %v658
    %2977 = vmatpush.msra.mxu0 %v654
    %2978 = vmatpush.msra.mxu0 %v650
    %2979 = vmatpush.msra.mxu0 %v646
    %2980 = vmatpush.msra.mxu0 %v642
    %2981 = vmatpush.msra.mxu0 %v638
    %2982 = vmatpush.msra.mxu0 %v634
    %2983 = vmatpush.msra.mxu0 %v630
    %2984 = vmatmul.f32.gmra.mxu0 %v2735
    %v2985 = vpop.f32.mrf.mxu0
    %v2986 = vadd.f32 0.0, %v2985
    %2987 = vdwg.mxu0
    %2988 = vmatpush.msra.mxu0 %v691
    %2989 = vmatpush.msra.mxu0 %v687
    %2990 = vmatpush.msra.mxu0 %v683
    %2991 = vmatpush.msra.mxu0 %v679
    %2992 = vmatpush.msra.mxu0 %v675
    %2993 = vmatpush.msra.mxu0 %v671
    %2994 = vmatpush.msra.mxu0 %v667
    %2995 = vmatpush.msra.mxu0 %v663
    %2996 = vmatpush.msra.mxu0 %v659
    %2997 = vmatpush.msra.mxu0 %v655
    %2998 = vmatpush.msra.mxu0 %v651
    %2999 = vmatpush.msra.mxu0 %v647
    %3000 = vmatpush.msra.mxu0 %v643
    %3001 = vmatpush.msra.mxu0 %v639
    %3002 = vmatpush.msra.mxu0 %v635
    %3003 = vmatpush.msra.mxu0 %v631
    %3004 = vmatmul.f32.gmra.mxu0 %v2735
    %v3005 = vpop.f32.mrf.mxu0
    %v3006 = vadd.f32 0.0, %v3005
    %3007 = vdwg.mxu0
    %3008 = vmatpush.msra.mxu0 %v692
    %3009 = vmatpush.msra.mxu0 %v688
    %3010 = vmatpush.msra.mxu0 %v684
    %3011 = vmatpush.msra.mxu0 %v680
    %3012 = vmatpush.msra.mxu0 %v676
    %3013 = vmatpush.msra.mxu0 %v672
    %3014 = vmatpush.msra.mxu0 %v668
    %3015 = vmatpush.msra.mxu0 %v664
    %3016 = vmatpush.msra.mxu0 %v660
    %3017 = vmatpush.msra.mxu0 %v656
    %3018 = vmatpush.msra.mxu0 %v652
    %3019 = vmatpush.msra.mxu0 %v648
    %3020 = vmatpush.msra.mxu0 %v644
    %3021 = vmatpush.msra.mxu0 %v640
    %3022 = vmatpush.msra.mxu0 %v636
    %3023 = vmatpush.msra.mxu0 %v632
    %3024 = vmatmul.f32.gmra.mxu0 %v2735
    %v3025 = vpop.f32.mrf.mxu0
    %v3026 = vadd.f32 0.0, %v3025
    %3027 = vdwg.mxu0
    %3028 = vmatpush.msra.mxu0 %v693
    %3029 = vmatpush.msra.mxu0 %v689
    %3030 = vmatpush.msra.mxu0 %v685
    %3031 = vmatpush.msra.mxu0 %v681
    %3032 = vmatpush.msra.mxu0 %v677
    %3033 = vmatpush.msra.mxu0 %v673
    %3034 = vmatpush.msra.mxu0 %v669
    %3035 = vmatpush.msra.mxu0 %v665
    %3036 = vmatpush.msra.mxu0 %v661
    %3037 = vmatpush.msra.mxu0 %v657
    %3038 = vmatpush.msra.mxu0 %v653
    %3039 = vmatpush.msra.mxu0 %v649
    %3040 = vmatpush.msra.mxu0 %v645
    %3041 = vmatpush.msra.mxu0 %v641
    %3042 = vmatpush.msra.mxu0 %v637
    %3043 = vmatpush.msra.mxu0 %v633
    %3044 = vmatmul.f32.gmra.mxu0 %v2735
    %v3045 = vpop.f32.mrf.mxu0
    %v3046 = vadd.f32 0.0, %v3045
    %3047 = vdwg.mxu0
    %v3048 = vadd.f32 %v2964, %v2986
    %v3049 = vadd.f32 %v2965, %v3006
    %v3050 = vadd.f32 %v2966, %v3026
    %v3051 = vadd.f32 %v2967, %v3046
    %v3052 = vxor.u32 %v3048, 2147483648
    %v3053 = vxor.u32 %v3049, 2147483648
    %v3054 = vxor.u32 %v3050, 2147483648
    %v3055 = vmul.f32 %v3052, 1.442695
    %v3056 = vpow.pop %v3055
    %v3057 = vmul.f32 %v3053, 1.442695
    %v3058 = vpow.pop %v3057
    %v3059 = vmul.f32 %v3054, 1.442695
    %v3060 = vpow.pop %v3059
    %v3061 = vadd.f32 %v3056, 1.0
    %v3062 = vadd.f32 %v3058, 1.0
    %v3063 = vadd.f32 %v3060, 1.0
    %v3064 = vrcp.pop %v3061
    %v3065 = vmul.f32 %v3061, %v3064
    %v3066 = vsub.f32 1.0, %v3065
    %v3067 = vmul.f32 %v3064, %v3066
    %v3068 = vadd.f32 %v3064, %v3067
    %vm3069 = vweird.f32 %v3061
    %vm3070 = vweird.f32 %v3064
    %vm3071 = vmor %vm3069, %vm3070
    %v3072 = vsel %vm3071, %v3064, %v3068
    %v3073 = vand.u32 2147483647, %v3061
    %vm3074 = vcmp.eq.f32.partialorder %v3073, 8.507059e+37
    %v3075 = vand.u32 %v3061, 2147483648
    %v3076 = vor.u32 1.1754944e-38, %v3075
    %v3077 = vsel %vm3074, %v3076, %v3072
    %v3078 = vmul.f32 1.0, %v3077
    %v3079 = vrcp.pop %v3062
    %v3080 = vmul.f32 %v3062, %v3079
    %v3081 = vsub.f32 1.0, %v3080
    %v3082 = vmul.f32 %v3079, %v3081
    %v3083 = vadd.f32 %v3079, %v3082
    %vm3084 = vweird.f32 %v3062
    %vm3085 = vweird.f32 %v3079
    %vm3086 = vmor %vm3084, %vm3085
    %v3087 = vsel %vm3086, %v3079, %v3083
    %v3088 = vand.u32 2147483647, %v3062
    %vm3089 = vcmp.eq.f32.partialorder %v3088, 8.507059e+37
    %v3090 = vand.u32 %v3062, 2147483648
    %v3091 = vor.u32 1.1754944e-38, %v3090
    %v3092 = vsel %vm3089, %v3091, %v3087
    %v3093 = vmul.f32 1.0, %v3092
    %v3094 = vrcp.pop %v3063
    %v3095 = vmul.f32 %v3063, %v3094
    %v3096 = vsub.f32 1.0, %v3095
    %v3097 = vmul.f32 %v3094, %v3096
    %v3098 = vadd.f32 %v3094, %v3097
    %vm3099 = vweird.f32 %v3063
    %vm3100 = vweird.f32 %v3094
    %vm3101 = vmor %vm3099, %vm3100
    %v3102 = vsel %vm3101, %v3094, %v3098
    %v3103 = vand.u32 2147483647, %v3063
    %vm3104 = vcmp.eq.f32.partialorder %v3103, 8.507059e+37
    %v3105 = vand.u32 %v3063, 2147483648
    %v3106 = vor.u32 1.1754944e-38, %v3105
    %v3107 = vsel %vm3104, %v3106, %v3102
    %v3108 = vmul.f32 1.0, %v3107
    %v3109 = vtanh.pop %v3051
    %v3110 = vmul.f32 %v3093, %v2733
    %v3111 = vmul.f32 %v3078, %v3109
    %v3112 = vadd.f32 %v3110, %v3111
    %v3113 = vtanh.pop %v3112
    %v3114 = vmul.f32 %v3108, %v3113
    %3115 = vmatpush.msra.mxu0 %v365
    %3116 = vmatpush.msra.mxu0 %v361
    %3117 = vmatpush.msra.mxu0 %v357
    %3118 = vmatpush.msra.mxu0 %v353
    %3119 = vmatpush.msra.mxu0 %v349
    %3120 = vmatpush.msra.mxu0 %v345
    %3121 = vmatpush.msra.mxu0 %v341
    %3122 = vmatpush.msra.mxu0 %v337
    %3123 = vmatpush.msra.mxu0 %v333
    %3124 = vmatpush.msra.mxu0 %v329
    %3125 = vmatpush.msra.mxu0 %v325
    %3126 = vmatpush.msra.mxu0 %v321
    %3127 = vmatpush.msra.mxu0 %v317
    %3128 = vmatpush.msra.mxu0 %v313
    %3129 = vmatpush.msra.mxu0 %v309
    %3130 = vmatpush.msra.mxu0 %v305
    %3131 = vmatmul.f32.gmra.mxu0 %v3114
    %v3132 = vpop.f32.mrf.mxu0
    %v3133 = vadd.f32 %v2901, %v3132
    %3134 = vdwg.mxu0
    %3135 = vmatpush.msra.mxu0 %v366
    %3136 = vmatpush.msra.mxu0 %v362
    %3137 = vmatpush.msra.mxu0 %v358
    %3138 = vmatpush.msra.mxu0 %v354
    %3139 = vmatpush.msra.mxu0 %v350
    %3140 = vmatpush.msra.mxu0 %v346
    %3141 = vmatpush.msra.mxu0 %v342
    %3142 = vmatpush.msra.mxu0 %v338
    %3143 = vmatpush.msra.mxu0 %v334
    %3144 = vmatpush.msra.mxu0 %v330
    %3145 = vmatpush.msra.mxu0 %v326
    %3146 = vmatpush.msra.mxu0 %v322
    %3147 = vmatpush.msra.mxu0 %v318
    %3148 = vmatpush.msra.mxu0 %v314
    %3149 = vmatpush.msra.mxu0 %v310
    %3150 = vmatpush.msra.mxu0 %v306
    %3151 = vmatmul.f32.gmra.mxu0 %v3114
    %v3152 = vpop.f32.mrf.mxu0
    %v3153 = vadd.f32 %v2921, %v3152
    %3154 = vdwg.mxu0
    %3155 = vmatpush.msra.mxu0 %v367
    %3156 = vmatpush.msra.mxu0 %v363
    %3157 = vmatpush.msra.mxu0 %v359
    %3158 = vmatpush.msra.mxu0 %v355
    %3159 = vmatpush.msra.mxu0 %v351
    %3160 = vmatpush.msra.mxu0 %v347
    %3161 = vmatpush.msra.mxu0 %v343
    %3162 = vmatpush.msra.mxu0 %v339
    %3163 = vmatpush.msra.mxu0 %v335
    %3164 = vmatpush.msra.mxu0 %v331
    %3165 = vmatpush.msra.mxu0 %v327
    %3166 = vmatpush.msra.mxu0 %v323
    %3167 = vmatpush.msra.mxu0 %v319
    %3168 = vmatpush.msra.mxu0 %v315
    %3169 = vmatpush.msra.mxu0 %v311
    %3170 = vmatpush.msra.mxu0 %v307
    %3171 = vmatmul.f32.gmra.mxu0 %v3114
    %v3172 = vpop.f32.mrf.mxu0
    %v3173 = vadd.f32 %v2941, %v3172
    %3174 = vdwg.mxu0
    %3175 = vmatpush.msra.mxu0 %v368
    %3176 = vmatpush.msra.mxu0 %v364
    %3177 = vmatpush.msra.mxu0 %v360
    %3178 = vmatpush.msra.mxu0 %v356
    %3179 = vmatpush.msra.mxu0 %v352
    %3180 = vmatpush.msra.mxu0 %v348
    %3181 = vmatpush.msra.mxu0 %v344
    %3182 = vmatpush.msra.mxu0 %v340
    %3183 = vmatpush.msra.mxu0 %v336
    %3184 = vmatpush.msra.mxu0 %v332
    %3185 = vmatpush.msra.mxu0 %v328
    %3186 = vmatpush.msra.mxu0 %v324
    %3187 = vmatpush.msra.mxu0 %v320
    %3188 = vmatpush.msra.mxu0 %v316
    %3189 = vmatpush.msra.mxu0 %v312
    %3190 = vmatpush.msra.mxu0 %v308
    %3191 = vmatmul.f32.gmra.mxu0 %v3114
    %v3192 = vpop.f32.mrf.mxu0
    %v3193 = vadd.f32 %v2961, %v3192
    %3194 = vdwg.mxu0
    %v3195 = vadd.f32 %v3133, %v371
    %v3196 = vadd.f32 %v3153, %v372
    %v3197 = vadd.f32 %v3173, %v373
    %v3198 = vadd.f32 %v3193, %v374
    %v3199 = vxor.u32 %v3195, 2147483648
    %v3200 = vxor.u32 %v3196, 2147483648
    %v3201 = vxor.u32 %v3197, 2147483648
    %v3202 = vmul.f32 %v3199, 1.442695
    %v3203 = vpow.pop %v3202
    %v3204 = vmul.f32 %v3200, 1.442695
    %v3205 = vpow.pop %v3204
    %v3206 = vmul.f32 %v3201, 1.442695
    %v3207 = vpow.pop %v3206
    %v3208 = vadd.f32 %v3203, 1.0
    %v3209 = vadd.f32 %v3205, 1.0
    %v3210 = vadd.f32 %v3207, 1.0
    %v3211 = vrcp.pop %v3208
    %v3212 = vmul.f32 %v3208, %v3211
    %v3213 = vsub.f32 1.0, %v3212
    %v3214 = vmul.f32 %v3211, %v3213
    %v3215 = vadd.f32 %v3211, %v3214
    %vm3216 = vweird.f32 %v3208
    %vm3217 = vweird.f32 %v3211
    %vm3218 = vmor %vm3216, %vm3217
    %v3219 = vsel %vm3218, %v3211, %v3215
    %v3220 = vand.u32 2147483647, %v3208
    %vm3221 = vcmp.eq.f32.partialorder %v3220, 8.507059e+37
    %v3222 = vand.u32 %v3208, 2147483648
    %v3223 = vor.u32 1.1754944e-38, %v3222
    %v3224 = vsel %vm3221, %v3223, %v3219
    %v3225 = vmul.f32 1.0, %v3224
    %v3226 = vrcp.pop %v3209
    %v3227 = vmul.f32 %v3209, %v3226
    %v3228 = vsub.f32 1.0, %v3227
    %v3229 = vmul.f32 %v3226, %v3228
    %v3230 = vadd.f32 %v3226, %v3229
    %vm3231 = vweird.f32 %v3209
    %vm3232 = vweird.f32 %v3226
    %vm3233 = vmor %vm3231, %vm3232
    %v3234 = vsel %vm3233, %v3226, %v3230
    %v3235 = vand.u32 2147483647, %v3209
    %vm3236 = vcmp.eq.f32.partialorder %v3235, 8.507059e+37
    %v3237 = vand.u32 %v3209, 2147483648
    %v3238 = vor.u32 1.1754944e-38, %v3237
    %v3239 = vsel %vm3236, %v3238, %v3234
    %v3240 = vmul.f32 1.0, %v3239
    %v3241 = vrcp.pop %v3210
    %v3242 = vmul.f32 %v3210, %v3241
    %v3243 = vsub.f32 1.0, %v3242
    %v3244 = vmul.f32 %v3241, %v3243
    %v3245 = vadd.f32 %v3241, %v3244
    %vm3246 = vweird.f32 %v3210
    %vm3247 = vweird.f32 %v3241
    %vm3248 = vmor %vm3246, %vm3247
    %v3249 = vsel %vm3248, %v3241, %v3245
    %v3250 = vand.u32 2147483647, %v3210
    %vm3251 = vcmp.eq.f32.partialorder %v3250, 8.507059e+37
    %v3252 = vand.u32 %v3210, 2147483648
    %v3253 = vor.u32 1.1754944e-38, %v3252
    %v3254 = vsel %vm3251, %v3253, %v3249
    %v3255 = vmul.f32 1.0, %v3254
    %v3256 = vtanh.pop %v3198
    %v3257 = vmul.f32 %v3240, %v2880
    %v3258 = vmul.f32 %v3225, %v3256
    %v3259 = vadd.f32 %v3257, %v3258
    %v3260 = vtanh.pop %v3259
    %v3261 = vmul.f32 %v3255, %v3260
    %v3262 = vld [vmem:[#allocation9] sm:$0xff]
    %v3263 = vld [vmem:[#allocation9 + $0x8] sm:$0xff]
    %v3264 = vld [vmem:[#allocation9 + $0x10] sm:$0xff]
    %v3265 = vld [vmem:[#allocation9 + $0x18] sm:$0xff]
    %v3266 = vld [vmem:[#allocation9 + $0x20] sm:$0xff]
    %v3267 = vld [vmem:[#allocation9 + $0x28] sm:$0xff]
    %v3268 = vld [vmem:[#allocation9 + $0x30] sm:$0xff]
    %v3269 = vld [vmem:[#allocation9 + $0x38] sm:$0xff]
    %v3270 = vld [vmem:[#allocation9 + $0x40] sm:$0xff]
    %v3271 = vld [vmem:[#allocation9 + $0x48] sm:$0xff]
    %v3272 = vld [vmem:[#allocation9 + $0x50] sm:$0xff]
    %v3273 = vld [vmem:[#allocation9 + $0x58] sm:$0xff]
    %v3274 = vld [vmem:[#allocation9 + $0x60] sm:$0xff]
    %v3275 = vld [vmem:[#allocation9 + $0x68] sm:$0xff]
    %v3276 = vld [vmem:[#allocation9 + $0x70] sm:$0xff]
    %v3277 = vld [vmem:[#allocation9 + $0x78] sm:$0xff]
    %v3278 = vld [vmem:[%s8] sm:$0x1]
    %v3280 = vperm.slane %v3278, 0
    %3282 = vmatpush.msra.mxu0 %v3277
    %3283 = vmatpush.msra.mxu0 %v3276
    %3284 = vmatpush.msra.mxu0 %v3275
    %3285 = vmatpush.msra.mxu0 %v3274
    %3286 = vmatpush.msra.mxu0 %v3273
    %3287 = vmatpush.msra.mxu0 %v3272
    %3288 = vmatpush.msra.mxu0 %v3271
    %3289 = vmatpush.msra.mxu0 %v3270
    %3290 = vmatpush.msra.mxu0 %v3269
    %3291 = vmatpush.msra.mxu0 %v3268
    %3292 = vmatpush.msra.mxu0 %v3267
    %3293 = vmatpush.msra.mxu0 %v3266
    %3294 = vmatpush.msra.mxu0 %v3265
    %3295 = vmatpush.msra.mxu0 %v3264
    %3296 = vmatpush.msra.mxu0 %v3263
    %3297 = vmatpush.msra.mxu0 %v3262
    %3298 = vmatmul.f32.gmra.mxu0 %v3261
    %v3299 = vpop.f32.mrf.mxu0
    %v3300 = vadd.f32 %v3280, %v3299
    %3301 = vdwg.mxu0
    %3302 = vst [vmem:[#allocation11] sm:$0xff] %v3300
    // Predicated region
    $region54: #{tpu_custom_call.1} parent=1 // pred_check
      _
    $region55: #{tpu_custom_call.1} parent=1 // pred_check_branch
      %3304 = sbr.rel (0) target = $region57
    $region56: #{tpu_custom_call.1} parent=1 // pred_region
      %3306 = vsyncadd [#allocation5], 0
      %s3308 = sshll.u32 [#allocation11], 4
      %s3309 = int_to_ptr.vmem [resolvable:$true] %s3308
      %s3310 = sshll.u32 %s9, 4
      %s3311 = int_to_ptr.hbm [resolvable:$true] %s3310
      %3313 = dma.vmem_to_hbm [thread:$0]  %s3309, 128, %s3311, [#allocation5]
    $region57: #{tpu_custom_call.1} parent=1 // pred_fallthru
      _
    // Predicated region
    $region58: #{tpu_custom_call.1} parent=1 // pred_check
      _
    $region59: #{tpu_custom_call.1} parent=1 // pred_check_branch
      %3315 = sbr.rel (0) target = $region61
    $region60: #{tpu_custom_call.1} parent=1 // pred_region
      %3317 = dma.done [#allocation5], 128
    $region61: #{tpu_custom_call.1} parent=1 // pred_fallthru
      _
    %3318 = vsyncpa [#allocation4], 1
    %3319 = vsyncpa [#allocation7], 1
    %3320 = vsyncpa [#allocation10], 1
    %3321 = vsyncpa [#allocation5], 1

</llo_original>
